<compile_context>
chip_gen: v7x
topology: tpu7x:2x2x1
jax: 0.10.0
libtpu: 0.0.40
codegen_flags: <defaults>
</compile_context>

<pallas_src>
import functools

import jax
import jax.numpy as jnp
from jax.experimental import pallas as pl
from jax.experimental.pallas import tpu as pltpu

D_BERT = 768      # BERT hidden size (GRU input)
HIDDEN = 64       # GRU hidden size per direction (small for the demo shapes)
NUM_TAGS = 4
VOCAB = 128


def nercrf_kernel(x_ref,                 # (T*B, D)          time-major rows (t*B + b)
                  wih_ref, bih_ref,      # (D, 6H), (1, 6H)  cols [fwd r,z,n | bwd r,z,n]
                  whh_ref, bhh_ref,      # (2H, 6H) block-diag, (1, 6H)
                  whead_ref, bint_ref,   # (2H, H), (1, H)
                  wfin_ref,              # (H, K)
                  crf_ref,               # (3+2K, K): rows = b_fin, start, end, trans, trans^T
                  mask_ref, labels_ref,  # (T*B, 1) f32 / i32, time-major
                  loss_ref,              # (1, 1)
                  proj_sc, out_sc,       # VMEM scratch: (T*B, 6H), (T*B, 2H)
                  *, T, B):
    H = HIDDEN
    K = NUM_TAGS
    H3 = 3 * H

    # ---- (1) fused bidirectional input projection: ONE (T*B,D)x(D,6H) matmul ----
    proj_sc[...] = (jnp.dot(x_ref[...], wih_ref[...],
                            preferred_element_type=jnp.float32) + bih_ref[...])

    # ---- (2) interleaved bidirectional GRU: packed (B,2H) state, 1 matmul/step ----
    # step s advances the forward direction at time s and the backward direction
    # at time T-1-s; both gate sets come from one (B,2H)x(2H,6H) dot.
    h = jnp.zeros((B, 2 * H), jnp.float32)
    for s in range(T):
        hp = (jnp.dot(h, whh_ref[...], preferred_element_type=jnp.float32)
              + bhh_ref[...])                                        # (B, 6H)
        gf = proj_sc[s * B:(s + 1) * B, 0:H3]                        # fwd gates @ t=s
        gb = proj_sc[(T - 1 - s) * B:(T - s) * B, H3:2 * H3]         # bwd gates @ t=T-1-s
        hf_prev = h[:, :H]
        hb_prev = h[:, H:]
        # forward direction (PyTorch GRU gate order r, z, n)
        rf = jax.nn.sigmoid(gf[:, 0:H] + hp[:, 0:H])
        zf = jax.nn.sigmoid(gf[:, H:2 * H] + hp[:, H:2 * H])
        nf = jnp.tanh(gf[:, 2 * H:H3] + rf * hp[:, 2 * H:H3])
        hf_new = (1.0 - zf) * nf + zf * hf_prev
        # backward direction
        rb = jax.nn.sigmoid(gb[:, 0:H] + hp[:, H3:H3 + H])
        zb = jax.nn.sigmoid(gb[:, H:2 * H] + hp[:, H3 + H:H3 + 2 * H])
        nb = jnp.tanh(gb[:, 2 * H:H3] + rb * hp[:, H3 + 2 * H:2 * H3])
        hb_new = (1.0 - zb) * nb + zb * hb_prev
        h = jnp.concatenate([hf_new, hb_new], axis=-1)               # (B, 2H)
        out_sc[s * B:(s + 1) * B, 0:H] = hf_new
        out_sc[(T - 1 - s) * B:(T - s) * B, H:2 * H] = hb_new

    # ---- (3) batched head: intermediate Linear + (dropout=identity) + final ----
    inter = (jnp.dot(out_sc[...], whead_ref[...],
                     preferred_element_type=jnp.float32) + bint_ref[...])    # (T*B, H)
    crf = crf_ref[...]
    b_fin = crf[0:1, :]
    start = crf[1:2, :]
    end = crf[2:3, :]
    logits = (jnp.dot(inter, wfin_ref[...],
                      preferred_element_type=jnp.float32) + b_fin)           # (T*B, K)
    mx = jnp.max(logits, axis=-1, keepdims=True)
    lse = mx + jnp.log(jnp.sum(jnp.exp(logits - mx), axis=-1, keepdims=True))
    emis = logits - lse                                                      # log_softmax

    # ---- (4) CRF negative log-likelihood (mean over batch), exact f32, 2D only ----
    maskv = mask_ref[...]                                                    # (T*B, 1)
    oh = (labels_ref[...] ==
          jax.lax.broadcasted_iota(jnp.int32, (T * B, K), 1)).astype(jnp.float32)

    # numerator (gold-path score), summed over the batch
    score0 = jnp.sum(jnp.sum(oh[0:B] * (start + emis[0:B]),
                             axis=-1, keepdims=True), axis=0, keepdims=True)
    emit_sel = jnp.sum(oh[B:] * emis[B:], axis=-1, keepdims=True)            # ((T-1)B,1)
    oh_prev = oh[:(T - 1) * B]
    oh_next = oh[B:]
    trans_sel = jnp.zeros(((T - 1) * B, 1), jnp.float32)
    for j in range(K):                                                        # K=4 unrolled
        row_j = crf[3 + j:4 + j, :]                                          # trans[j, :]
        trans_sel = trans_sel + oh_prev[:, j:j + 1] * jnp.sum(
            oh_next * row_j, axis=-1, keepdims=True)
    body = jnp.sum(maskv[B:] * (emit_sel + trans_sel), axis=0, keepdims=True)
    # end transition at last valid position (mask is a contiguous 1-prefix,
    # matching torchcrf's mask[0]==1 convention)
    end_per_row = jnp.sum(oh * end, axis=-1, keepdims=True)                  # (T*B, 1)
    end_tot = (jnp.sum((maskv[:(T - 1) * B] - maskv[B:]) * end_per_row[:(T - 1) * B],
                       axis=0, keepdims=True)
               + jnp.sum(maskv[(T - 1) * B:] * end_per_row[(T - 1) * B:],
                         axis=0, keepdims=True))
    numerator = score0 + body + end_tot                                      # (1, 1)

    # denominator (forward algorithm / partition function), per batch row.
    # Per next-tag logsumexp over the lane axis (prev tags); K unrolled -> 2D only.
    alpha = start + emis[0:B]                                                # (B, K)
    for t in range(1, T):
        e_t = emis[t * B:(t + 1) * B]                                        # (B, K)
        cols = []
        for k in range(K):
            tcol = crf[3 + K + k:4 + K + k, :]                               # trans[:, k]
            v = alpha + tcol                                                 # (B, K)
            m = jnp.max(v, axis=-1, keepdims=True)
            cols.append(m + jnp.log(jnp.sum(jnp.exp(v - m),
                                            axis=-1, keepdims=True)))        # (B, 1)
        nxt = jnp.concatenate(cols, axis=-1) + e_t                           # (B, K)
        keep = maskv[t * B:(t + 1) * B]                                      # (B, 1)
        alpha = keep * nxt + (1.0 - keep) * alpha
    final = alpha + end
    fmx = jnp.max(final, axis=-1, keepdims=True)
    denom_b = fmx + jnp.log(jnp.sum(jnp.exp(final - fmx), axis=-1, keepdims=True))
    denominator = jnp.sum(denom_b, axis=0, keepdims=True)                    # (1, 1)

    loss_ref[...] = -(numerator - denominator) / B


def init_params(key, vocab=VOCAB, d=D_BERT, h=HIDDEN, tags=NUM_TAGS):
    ks = jax.random.split(key, 16)

    def rn(k, shape, scale=0.1):
        return jax.random.normal(k, shape, jnp.float32) * scale

    return dict(
        emb=rn(ks[0], (vocab, d)),
        w_ih_f=rn(ks[1], (3 * h, d)), w_hh_f=rn(ks[2], (3 * h, h)),
        b_ih_f=rn(ks[3], (3 * h,)), b_hh_f=rn(ks[4], (3 * h,)),
        w_ih_b=rn(ks[5], (3 * h, d)), w_hh_b=rn(ks[6], (3 * h, h)),
        b_ih_b=rn(ks[7], (3 * h,)), b_hh_b=rn(ks[8], (3 * h,)),
        w_int=rn(ks[9], (h, 2 * h)), b_int=rn(ks[10], (h,)),
        w_fin=rn(ks[11], (tags, h)), b_fin=rn(ks[12], (tags,)),
        crf_start=rn(ks[13], (tags,)), crf_end=rn(ks[14], (tags,)),
        crf_trans=rn(ks[15], (tags, tags)),
    )


def nercrf_loss(params, tokens, masks, labels):
    """Mirrors NERCRF.forward(tokens, masks, labels) -> scalar CRF loss."""
    B, T = tokens.shape
    h, tags = HIDDEN, NUM_TAGS

    # BERT surrogate (glue): embedding lookup -> (B, T, 768), then time-major flat.
    embedd = jnp.take(params['emb'], tokens, axis=0)
    x2d = jnp.transpose(embedd, (1, 0, 2)).reshape(T * B, D_BERT).astype(jnp.float32)

    # --- pack weights in the wrapper so the kernel only does dense row-major dots ---
    wih_packed = jnp.concatenate([params['w_ih_f'].T, params['w_ih_b'].T], axis=1)
    bih_packed = jnp.concatenate([params['b_ih_f'], params['b_ih_b']]).reshape(1, 6 * h)
    # hidden-to-hidden as block-diagonal (2H, 6H): packed state [h_f | h_b]
    whh_bd = jnp.zeros((2 * h, 6 * h), jnp.float32)
    whh_bd = whh_bd.at[:h, :3 * h].set(params['w_hh_f'].T)
    whh_bd = whh_bd.at[h:, 3 * h:].set(params['w_hh_b'].T)
    bhh_packed = jnp.concatenate([params['b_hh_f'], params['b_hh_b']]).reshape(1, 6 * h)
    w_head = params['w_int'].T                       # (2H, H), rows [fwd | bwd]
    b_int = params['b_int'].reshape(1, h)
    w_finT = params['w_fin'].T                       # (H, K)
    # consolidate the tiny CRF / final-bias params into one (3+2K, K) slab
    crf_small = jnp.concatenate([params['b_fin'].reshape(1, tags),
                                 params['crf_start'].reshape(1, tags),
                                 params['crf_end'].reshape(1, tags),
                                 params['crf_trans'],
                                 params['crf_trans'].T], axis=0)
    mask2d = masks.astype(jnp.float32).T.reshape(T * B, 1)     # time-major
    labels2d = labels.astype(jnp.int32).T.reshape(T * B, 1)    # time-major

    args = [x2d, wih_packed, bih_packed, whh_bd, bhh_packed,
            w_head, b_int, w_finT, crf_small, mask2d, labels2d]

    kernel = functools.partial(nercrf_kernel, T=T, B=B)
    out = pl.pallas_call(
        kernel,
        out_shape=jax.ShapeDtypeStruct((1, 1), jnp.float32),
        in_specs=[pl.BlockSpec(memory_space=pltpu.MemorySpace.VMEM) for _ in args],
        out_specs=pl.BlockSpec(memory_space=pltpu.MemorySpace.VMEM),
        scratch_shapes=[pltpu.VMEM((T * B, 6 * h), jnp.float32),   # fused projections
                        pltpu.VMEM((T * B, 2 * h), jnp.float32)],  # GRU outputs [f|b]
    )(*args)
    return out[0, 0]


# ---------------- pure-JAX reference (mirrors PyTorch semantics) ----------------
def _ref_gru_dir(x_tbd, w_ih, w_hh, b_ih, b_hh, reverse=False):
    T, B, _ = x_tbd.shape
    H = w_hh.shape[1]
    h = jnp.zeros((B, H), jnp.float32)
    outs = [None] * T
    order = range(T - 1, -1, -1) if reverse else range(T)
    for t in order:
        g = x_tbd[t] @ w_ih.T + b_ih
        p = h @ w_hh.T + b_hh
        r = jax.nn.sigmoid(g[:, :H] + p[:, :H])
        z = jax.nn.sigmoid(g[:, H:2 * H] + p[:, H:2 * H])
        n = jnp.tanh(g[:, 2 * H:] + r * p[:, 2 * H:])
        h = (1.0 - z) * n + z * h
        outs[t] = h
    return jnp.stack(outs, 0)


def reference_loss(params, tokens, masks, labels):
    B, T = tokens.shape
    embedd = jnp.take(params['emb'], tokens, axis=0)
    x = jnp.transpose(embedd, (1, 0, 2)).astype(jnp.float32)      # (T, B, D)
    out_f = _ref_gru_dir(x, params['w_ih_f'], params['w_hh_f'],
                         params['b_ih_f'], params['b_hh_f'], reverse=False)
    out_b = _ref_gru_dir(x, params['w_ih_b'], params['w_hh_b'],
                         params['b_ih_b'], params['b_hh_b'], reverse=True)
    out = jnp.concatenate([out_f, out_b], axis=-1)                # (T, B, 2H)
    inter = out @ params['w_int'].T + params['b_int']
    logits = inter @ params['w_fin'].T + params['b_fin']          # (T, B, 4)
    emis = jax.nn.log_softmax(logits, axis=-1)

    tags_tb = labels.astype(jnp.int32).T                          # (T, B)
    mask_f = masks.astype(jnp.float32).T                          # (T, B)
    start, end, trans = params['crf_start'], params['crf_end'], params['crf_trans']

    barange = jnp.arange(B)
    score = start[tags_tb[0]] + emis[0, barange, tags_tb[0]]
    for i in range(1, T):
        score = score + trans[tags_tb[i - 1], tags_tb[i]] * mask_f[i]
        score = score + emis[i, barange, tags_tb[i]] * mask_f[i]
    seq_ends = masks.astype(jnp.int32).T.sum(0) - 1
    last_tags = tags_tb[seq_ends, barange]
    score = score + end[last_tags]

    alpha = start[None, :] + emis[0]
    for i in range(1, T):
        nxt = jax.nn.logsumexp(
            alpha[:, :, None] + trans[None] + emis[i][:, None, :], axis=1)
        alpha = jnp.where(mask_f[i][:, None] > 0, nxt, alpha)
    denom = jax.nn.logsumexp(alpha + end[None], axis=1)

    llh = score - denom
    return -jnp.mean(llh)


if __name__ == "__main__":
    key = jax.random.PRNGKey(0)
    pkey, tkey, lkey = jax.random.split(key, 3)
    params = init_params(pkey)

    B, T = 2, 8
    tokens = jax.random.randint(tkey, (B, T), 0, VOCAB)
    lengths = jnp.array([T, 5])
    masks = (jnp.arange(T)[None, :] < lengths[:, None]).astype(jnp.uint8)   # (B, T)
    labels = jax.random.randint(lkey, (B, T), 0, NUM_TAGS)

    loss = jax.jit(nercrf_loss)(params, tokens, masks, labels)
    loss = jax.block_until_ready(loss)

    ref = jax.block_until_ready(jax.jit(reference_loss)(params, tokens, masks, labels))
    assert jnp.isfinite(loss), loss
    # Both kernel and reference run the GRU/head matmuls at default (MXU bf16-pass)
    # precision but with different decompositions -> compare with a loose tolerance.
    assert jnp.allclose(loss, ref, rtol=2e-2, atol=2e-2), (loss, ref)

    print("KERNEL_OK")
</pallas_src>

<mosaic_0001>
module attributes {stable_mosaic.version = 11 : i64} {
  func.func @nercrf_kernel(%arg0: memref<16x768xf32, #tpu.memory_space<vmem>>, %arg1: memref<768x384xf32, #tpu.memory_space<vmem>>, %arg2: memref<1x384xf32, #tpu.memory_space<vmem>>, %arg3: memref<128x384xf32, #tpu.memory_space<vmem>>, %arg4: memref<1x384xf32, #tpu.memory_space<vmem>>, %arg5: memref<128x64xf32, #tpu.memory_space<vmem>>, %arg6: memref<1x64xf32, #tpu.memory_space<vmem>>, %arg7: memref<64x4xf32, #tpu.memory_space<vmem>>, %arg8: memref<11x4xf32, #tpu.memory_space<vmem>>, %arg9: memref<16x1xf32, #tpu.memory_space<vmem>>, %arg10: memref<16x1xi32, #tpu.memory_space<vmem>>, %arg11: memref<1x1xf32, #tpu.memory_space<vmem>>, %arg12: memref<16x384xf32, #tpu.memory_space<vmem>>, %arg13: memref<16x128xf32, #tpu.memory_space<vmem>>) attributes {dimension_semantics = [], scalar_prefetch = 0 : i64, scratch_operands = 2 : i64, tpu.core_type = #tpu.core_type<tc>} {
    %c0 = arith.constant 0 : index
    %c0_0 = arith.constant 0 : index
    %0 = vector.load %arg0[%c0, %c0_0] : memref<16x768xf32, #tpu.memory_space<vmem>>, vector<16x768xf32>
    %c0_1 = arith.constant 0 : index
    %c0_2 = arith.constant 0 : index
    %1 = vector.load %arg1[%c0_1, %c0_2] : memref<768x384xf32, #tpu.memory_space<vmem>>, vector<768x384xf32>
    %cst = arith.constant dense<0.000000e+00> : vector<16x384xf32>
    %2 = tpu.matmul %0, %1, %cst {dimension_numbers = #tpu.dot_dimension_numbers<[1], [0], [0], [1], [0, 0, 1, 1], [], []>} : vector<16x768xf32>, vector<768x384xf32>, vector<16x384xf32> -> vector<16x384xf32>
    %c0_3 = arith.constant 0 : index
    %c0_4 = arith.constant 0 : index
    %3 = vector.load %arg2[%c0_3, %c0_4] : memref<1x384xf32, #tpu.memory_space<vmem>>, vector<1x384xf32>
    %4 = vector.broadcast %3 : vector<1x384xf32> to vector<16x384xf32>
    %5 = arith.addf %2, %4 : vector<16x384xf32>
    %c0_5 = arith.constant 0 : index
    %c0_6 = arith.constant 0 : index
    %6 = vector.load %arg12[%c0_5, %c0_6] : memref<16x384xf32, #tpu.memory_space<vmem>>, vector<16x384xf32>
    tpu.vector_store %arg12[%c0_5, %c0_6], %5 {strides = array<i32>} : memref<16x384xf32, #tpu.memory_space<vmem>>, vector<16x384xf32>,
    %cst_7 = arith.constant 0.000000e+00 : f32
    %7 = vector.broadcast %cst_7 : f32 to vector<2x128xf32>
    %c0_8 = arith.constant 0 : index
    %c0_9 = arith.constant 0 : index
    %8 = vector.load %arg3[%c0_8, %c0_9] : memref<128x384xf32, #tpu.memory_space<vmem>>, vector<128x384xf32>
    %cst_10 = arith.constant dense<0.000000e+00> : vector<2x384xf32>
    %9 = tpu.matmul %7, %8, %cst_10 {dimension_numbers = #tpu.dot_dimension_numbers<[1], [0], [0], [1], [0, 0, 1, 1], [], []>} : vector<2x128xf32>, vector<128x384xf32>, vector<2x384xf32> -> vector<2x384xf32>
    %c0_11 = arith.constant 0 : index
    %c0_12 = arith.constant 0 : index
    %10 = vector.load %arg4[%c0_11, %c0_12] : memref<1x384xf32, #tpu.memory_space<vmem>>, vector<1x384xf32>
    %11 = vector.broadcast %10 : vector<1x384xf32> to vector<2x384xf32>
    %12 = arith.addf %9, %11 : vector<2x384xf32>
    %c0_13 = arith.constant 0 : index
    %c0_14 = arith.constant 0 : index
    %13 = vector.load %arg12[%c0_13, %c0_14] : memref<16x384xf32, #tpu.memory_space<vmem>>, vector<2x192xf32>
    %c14 = arith.constant 14 : index
    %c192 = arith.constant 192 : index
    %14 = vector.load %arg12[%c14, %c192] : memref<16x384xf32, #tpu.memory_space<vmem>>, vector<2x192xf32>
    %15 = vector.extract_strided_slice %7 {offsets = [0, 0], sizes = [2, 64], strides = [1, 1]} : vector<2x128xf32> to vector<2x64xf32>
    %16 = vector.extract_strided_slice %7 {offsets = [0, 64], sizes = [2, 64], strides = [1, 1]} : vector<2x128xf32> to vector<2x64xf32>
    %17 = vector.extract_strided_slice %13 {offsets = [0, 0], sizes = [2, 64], strides = [1, 1]} : vector<2x192xf32> to vector<2x64xf32>
    %18 = vector.extract_strided_slice %12 {offsets = [0, 0], sizes = [2, 64], strides = [1, 1]} : vector<2x384xf32> to vector<2x64xf32>
    %19 = arith.addf %17, %18 : vector<2x64xf32>
    %20 = arith.negf %19 : vector<2x64xf32>
    %21 = math.exp %20 : vector<2x64xf32>
    %cst_15 = arith.constant 1.000000e+00 : f32
    %22 = vector.broadcast %cst_15 : f32 to vector<2x64xf32>
    %23 = arith.addf %22, %21 : vector<2x64xf32>
    %24 = arith.divf %22, %23 : vector<2x64xf32>
    %25 = vector.extract_strided_slice %13 {offsets = [0, 64], sizes = [2, 64], strides = [1, 1]} : vector<2x192xf32> to vector<2x64xf32>
    %26 = vector.extract_strided_slice %12 {offsets = [0, 64], sizes = [2, 64], strides = [1, 1]} : vector<2x384xf32> to vector<2x64xf32>
    %27 = arith.addf %25, %26 : vector<2x64xf32>
    %28 = arith.negf %27 : vector<2x64xf32>
    %29 = math.exp %28 : vector<2x64xf32>
    %cst_16 = arith.constant 1.000000e+00 : f32
    %30 = vector.broadcast %cst_16 : f32 to vector<2x64xf32>
    %31 = arith.addf %30, %29 : vector<2x64xf32>
    %32 = arith.divf %30, %31 : vector<2x64xf32>
    %33 = vector.extract_strided_slice %13 {offsets = [0, 128], sizes = [2, 64], strides = [1, 1]} : vector<2x192xf32> to vector<2x64xf32>
    %34 = vector.extract_strided_slice %12 {offsets = [0, 128], sizes = [2, 64], strides = [1, 1]} : vector<2x384xf32> to vector<2x64xf32>
    %35 = arith.mulf %24, %34 : vector<2x64xf32>
    %36 = arith.addf %33, %35 : vector<2x64xf32>
    %37 = math.tanh %36 : vector<2x64xf32>
    %cst_17 = arith.constant 1.000000e+00 : f32
    %38 = vector.broadcast %cst_17 : f32 to vector<2x64xf32>
    %39 = arith.subf %38, %32 : vector<2x64xf32>
    %40 = arith.mulf %39, %37 : vector<2x64xf32>
    %41 = arith.mulf %32, %15 : vector<2x64xf32>
    %42 = arith.addf %40, %41 : vector<2x64xf32>
    %43 = vector.extract_strided_slice %14 {offsets = [0, 0], sizes = [2, 64], strides = [1, 1]} : vector<2x192xf32> to vector<2x64xf32>
    %44 = vector.extract_strided_slice %12 {offsets = [0, 192], sizes = [2, 64], strides = [1, 1]} : vector<2x384xf32> to vector<2x64xf32>
    %45 = arith.addf %43, %44 : vector<2x64xf32>
    %46 = arith.negf %45 : vector<2x64xf32>
    %47 = math.exp %46 : vector<2x64xf32>
    %cst_18 = arith.constant 1.000000e+00 : f32
    %48 = vector.broadcast %cst_18 : f32 to vector<2x64xf32>
    %49 = arith.addf %48, %47 : vector<2x64xf32>
    %50 = arith.divf %48, %49 : vector<2x64xf32>
    %51 = vector.extract_strided_slice %14 {offsets = [0, 64], sizes = [2, 64], strides = [1, 1]} : vector<2x192xf32> to vector<2x64xf32>
    %52 = vector.extract_strided_slice %12 {offsets = [0, 256], sizes = [2, 64], strides = [1, 1]} : vector<2x384xf32> to vector<2x64xf32>
    %53 = arith.addf %51, %52 : vector<2x64xf32>
    %54 = arith.negf %53 : vector<2x64xf32>
    %55 = math.exp %54 : vector<2x64xf32>
    %cst_19 = arith.constant 1.000000e+00 : f32
    %56 = vector.broadcast %cst_19 : f32 to vector<2x64xf32>
    %57 = arith.addf %56, %55 : vector<2x64xf32>
    %58 = arith.divf %56, %57 : vector<2x64xf32>
    %59 = vector.extract_strided_slice %14 {offsets = [0, 128], sizes = [2, 64], strides = [1, 1]} : vector<2x192xf32> to vector<2x64xf32>
    %60 = vector.extract_strided_slice %12 {offsets = [0, 320], sizes = [2, 64], strides = [1, 1]} : vector<2x384xf32> to vector<2x64xf32>
    %61 = arith.mulf %50, %60 : vector<2x64xf32>
    %62 = arith.addf %59, %61 : vector<2x64xf32>
    %63 = math.tanh %62 : vector<2x64xf32>
    %cst_20 = arith.constant 1.000000e+00 : f32
    %64 = vector.broadcast %cst_20 : f32 to vector<2x64xf32>
    %65 = arith.subf %64, %58 : vector<2x64xf32>
    %66 = arith.mulf %65, %63 : vector<2x64xf32>
    %67 = arith.mulf %58, %16 : vector<2x64xf32>
    %68 = arith.addf %66, %67 : vector<2x64xf32>
    %69 = tpu.concatenate %42, %68 in 1 : vector<2x64xf32>, vector<2x64xf32> -> vector<2x128xf32>
    %c0_21 = arith.constant 0 : index
    %c0_22 = arith.constant 0 : index
    %70 = vector.load %arg13[%c0_21, %c0_22] : memref<16x128xf32, #tpu.memory_space<vmem>>, vector<2x64xf32>
    tpu.vector_store %arg13[%c0_21, %c0_22], %42 {strides = array<i32>} : memref<16x128xf32, #tpu.memory_space<vmem>>, vector<2x64xf32>,
    %c14_23 = arith.constant 14 : index
    %c64 = arith.constant 64 : index
    %71 = vector.load %arg13[%c14_23, %c64] : memref<16x128xf32, #tpu.memory_space<vmem>>, vector<2x64xf32>
    tpu.vector_store %arg13[%c14_23, %c64], %68 {strides = array<i32>} : memref<16x128xf32, #tpu.memory_space<vmem>>, vector<2x64xf32>,
    %c0_24 = arith.constant 0 : index
    %c0_25 = arith.constant 0 : index
    %72 = vector.load %arg3[%c0_24, %c0_25] : memref<128x384xf32, #tpu.memory_space<vmem>>, vector<128x384xf32>
    %cst_26 = arith.constant dense<0.000000e+00> : vector<2x384xf32>
    %73 = tpu.matmul %69, %72, %cst_26 {dimension_numbers = #tpu.dot_dimension_numbers<[1], [0], [0], [1], [0, 0, 1, 1], [], []>} : vector<2x128xf32>, vector<128x384xf32>, vector<2x384xf32> -> vector<2x384xf32>
    %c0_27 = arith.constant 0 : index
    %c0_28 = arith.constant 0 : index
    %74 = vector.load %arg4[%c0_27, %c0_28] : memref<1x384xf32, #tpu.memory_space<vmem>>, vector<1x384xf32>
    %75 = vector.broadcast %74 : vector<1x384xf32> to vector<2x384xf32>
    %76 = arith.addf %73, %75 : vector<2x384xf32>
    %c2 = arith.constant 2 : index
    %c0_29 = arith.constant 0 : index
    %77 = vector.load %arg12[%c2, %c0_29] : memref<16x384xf32, #tpu.memory_space<vmem>>, vector<2x192xf32>
    %c12 = arith.constant 12 : index
    %c192_30 = arith.constant 192 : index
    %78 = vector.load %arg12[%c12, %c192_30] : memref<16x384xf32, #tpu.memory_space<vmem>>, vector<2x192xf32>
    %79 = vector.extract_strided_slice %69 {offsets = [0, 0], sizes = [2, 64], strides = [1, 1]} : vector<2x128xf32> to vector<2x64xf32>
    %80 = vector.extract_strided_slice %69 {offsets = [0, 64], sizes = [2, 64], strides = [1, 1]} : vector<2x128xf32> to vector<2x64xf32>
    %81 = vector.extract_strided_slice %77 {offsets = [0, 0], sizes = [2, 64], strides = [1, 1]} : vector<2x192xf32> to vector<2x64xf32>
    %82 = vector.extract_strided_slice %76 {offsets = [0, 0], sizes = [2, 64], strides = [1, 1]} : vector<2x384xf32> to vector<2x64xf32>
    %83 = arith.addf %81, %82 : vector<2x64xf32>
    %84 = arith.negf %83 : vector<2x64xf32>
    %85 = math.exp %84 : vector<2x64xf32>
    %cst_31 = arith.constant 1.000000e+00 : f32
    %86 = vector.broadcast %cst_31 : f32 to vector<2x64xf32>
    %87 = arith.addf %86, %85 : vector<2x64xf32>
    %88 = arith.divf %86, %87 : vector<2x64xf32>
    %89 = vector.extract_strided_slice %77 {offsets = [0, 64], sizes = [2, 64], strides = [1, 1]} : vector<2x192xf32> to vector<2x64xf32>
    %90 = vector.extract_strided_slice %76 {offsets = [0, 64], sizes = [2, 64], strides = [1, 1]} : vector<2x384xf32> to vector<2x64xf32>
    %91 = arith.addf %89, %90 : vector<2x64xf32>
    %92 = arith.negf %91 : vector<2x64xf32>
    %93 = math.exp %92 : vector<2x64xf32>
    %cst_32 = arith.constant 1.000000e+00 : f32
    %94 = vector.broadcast %cst_32 : f32 to vector<2x64xf32>
    %95 = arith.addf %94, %93 : vector<2x64xf32>
    %96 = arith.divf %94, %95 : vector<2x64xf32>
    %97 = vector.extract_strided_slice %77 {offsets = [0, 128], sizes = [2, 64], strides = [1, 1]} : vector<2x192xf32> to vector<2x64xf32>
    %98 = vector.extract_strided_slice %76 {offsets = [0, 128], sizes = [2, 64], strides = [1, 1]} : vector<2x384xf32> to vector<2x64xf32>
    %99 = arith.mulf %88, %98 : vector<2x64xf32>
    %100 = arith.addf %97, %99 : vector<2x64xf32>
    %101 = math.tanh %100 : vector<2x64xf32>
    %cst_33 = arith.constant 1.000000e+00 : f32
    %102 = vector.broadcast %cst_33 : f32 to vector<2x64xf32>
    %103 = arith.subf %102, %96 : vector<2x64xf32>
    %104 = arith.mulf %103, %101 : vector<2x64xf32>
    %105 = arith.mulf %96, %79 : vector<2x64xf32>
    %106 = arith.addf %104, %105 : vector<2x64xf32>
    %107 = vector.extract_strided_slice %78 {offsets = [0, 0], sizes = [2, 64], strides = [1, 1]} : vector<2x192xf32> to vector<2x64xf32>
    %108 = vector.extract_strided_slice %76 {offsets = [0, 192], sizes = [2, 64], strides = [1, 1]} : vector<2x384xf32> to vector<2x64xf32>
    %109 = arith.addf %107, %108 : vector<2x64xf32>
    %110 = arith.negf %109 : vector<2x64xf32>
    %111 = math.exp %110 : vector<2x64xf32>
    %cst_34 = arith.constant 1.000000e+00 : f32
    %112 = vector.broadcast %cst_34 : f32 to vector<2x64xf32>
    %113 = arith.addf %112, %111 : vector<2x64xf32>
    %114 = arith.divf %112, %113 : vector<2x64xf32>
    %115 = vector.extract_strided_slice %78 {offsets = [0, 64], sizes = [2, 64], strides = [1, 1]} : vector<2x192xf32> to vector<2x64xf32>
    %116 = vector.extract_strided_slice %76 {offsets = [0, 256], sizes = [2, 64], strides = [1, 1]} : vector<2x384xf32> to vector<2x64xf32>
    %117 = arith.addf %115, %116 : vector<2x64xf32>
    %118 = arith.negf %117 : vector<2x64xf32>
    %119 = math.exp %118 : vector<2x64xf32>
    %cst_35 = arith.constant 1.000000e+00 : f32
    %120 = vector.broadcast %cst_35 : f32 to vector<2x64xf32>
    %121 = arith.addf %120, %119 : vector<2x64xf32>
    %122 = arith.divf %120, %121 : vector<2x64xf32>
    %123 = vector.extract_strided_slice %78 {offsets = [0, 128], sizes = [2, 64], strides = [1, 1]} : vector<2x192xf32> to vector<2x64xf32>
    %124 = vector.extract_strided_slice %76 {offsets = [0, 320], sizes = [2, 64], strides = [1, 1]} : vector<2x384xf32> to vector<2x64xf32>
    %125 = arith.mulf %114, %124 : vector<2x64xf32>
    %126 = arith.addf %123, %125 : vector<2x64xf32>
    %127 = math.tanh %126 : vector<2x64xf32>
    %cst_36 = arith.constant 1.000000e+00 : f32
    %128 = vector.broadcast %cst_36 : f32 to vector<2x64xf32>
    %129 = arith.subf %128, %122 : vector<2x64xf32>
    %130 = arith.mulf %129, %127 : vector<2x64xf32>
    %131 = arith.mulf %122, %80 : vector<2x64xf32>
    %132 = arith.addf %130, %131 : vector<2x64xf32>
    %133 = tpu.concatenate %106, %132 in 1 : vector<2x64xf32>, vector<2x64xf32> -> vector<2x128xf32>
    %c2_37 = arith.constant 2 : index
    %c0_38 = arith.constant 0 : index
    %134 = vector.load %arg13[%c2_37, %c0_38] : memref<16x128xf32, #tpu.memory_space<vmem>>, vector<2x64xf32>
    tpu.vector_store %arg13[%c2_37, %c0_38], %106 {strides = array<i32>} : memref<16x128xf32, #tpu.memory_space<vmem>>, vector<2x64xf32>,
    %c12_39 = arith.constant 12 : index
    %c64_40 = arith.constant 64 : index
    %135 = vector.load %arg13[%c12_39, %c64_40] : memref<16x128xf32, #tpu.memory_space<vmem>>, vector<2x64xf32>
    tpu.vector_store %arg13[%c12_39, %c64_40], %132 {strides = array<i32>} : memref<16x128xf32, #tpu.memory_space<vmem>>, vector<2x64xf32>,
    %c0_41 = arith.constant 0 : index
    %c0_42 = arith.constant 0 : index
    %136 = vector.load %arg3[%c0_41, %c0_42] : memref<128x384xf32, #tpu.memory_space<vmem>>, vector<128x384xf32>
    %cst_43 = arith.constant dense<0.000000e+00> : vector<2x384xf32>
    %137 = tpu.matmul %133, %136, %cst_43 {dimension_numbers = #tpu.dot_dimension_numbers<[1], [0], [0], [1], [0, 0, 1, 1], [], []>} : vector<2x128xf32>, vector<128x384xf32>, vector<2x384xf32> -> vector<2x384xf32>
    %c0_44 = arith.constant 0 : index
    %c0_45 = arith.constant 0 : index
    %138 = vector.load %arg4[%c0_44, %c0_45] : memref<1x384xf32, #tpu.memory_space<vmem>>, vector<1x384xf32>
    %139 = vector.broadcast %138 : vector<1x384xf32> to vector<2x384xf32>
    %140 = arith.addf %137, %139 : vector<2x384xf32>
    %c4 = arith.constant 4 : index
    %c0_46 = arith.constant 0 : index
    %141 = vector.load %arg12[%c4, %c0_46] : memref<16x384xf32, #tpu.memory_space<vmem>>, vector<2x192xf32>
    %c10 = arith.constant 10 : index
    %c192_47 = arith.constant 192 : index
    %142 = vector.load %arg12[%c10, %c192_47] : memref<16x384xf32, #tpu.memory_space<vmem>>, vector<2x192xf32>
    %143 = vector.extract_strided_slice %133 {offsets = [0, 0], sizes = [2, 64], strides = [1, 1]} : vector<2x128xf32> to vector<2x64xf32>
    %144 = vector.extract_strided_slice %133 {offsets = [0, 64], sizes = [2, 64], strides = [1, 1]} : vector<2x128xf32> to vector<2x64xf32>
    %145 = vector.extract_strided_slice %141 {offsets = [0, 0], sizes = [2, 64], strides = [1, 1]} : vector<2x192xf32> to vector<2x64xf32>
    %146 = vector.extract_strided_slice %140 {offsets = [0, 0], sizes = [2, 64], strides = [1, 1]} : vector<2x384xf32> to vector<2x64xf32>
    %147 = arith.addf %145, %146 : vector<2x64xf32>
    %148 = arith.negf %147 : vector<2x64xf32>
    %149 = math.exp %148 : vector<2x64xf32>
    %cst_48 = arith.constant 1.000000e+00 : f32
    %150 = vector.broadcast %cst_48 : f32 to vector<2x64xf32>
    %151 = arith.addf %150, %149 : vector<2x64xf32>
    %152 = arith.divf %150, %151 : vector<2x64xf32>
    %153 = vector.extract_strided_slice %141 {offsets = [0, 64], sizes = [2, 64], strides = [1, 1]} : vector<2x192xf32> to vector<2x64xf32>
    %154 = vector.extract_strided_slice %140 {offsets = [0, 64], sizes = [2, 64], strides = [1, 1]} : vector<2x384xf32> to vector<2x64xf32>
    %155 = arith.addf %153, %154 : vector<2x64xf32>
    %156 = arith.negf %155 : vector<2x64xf32>
    %157 = math.exp %156 : vector<2x64xf32>
    %cst_49 = arith.constant 1.000000e+00 : f32
    %158 = vector.broadcast %cst_49 : f32 to vector<2x64xf32>
    %159 = arith.addf %158, %157 : vector<2x64xf32>
    %160 = arith.divf %158, %159 : vector<2x64xf32>
    %161 = vector.extract_strided_slice %141 {offsets = [0, 128], sizes = [2, 64], strides = [1, 1]} : vector<2x192xf32> to vector<2x64xf32>
    %162 = vector.extract_strided_slice %140 {offsets = [0, 128], sizes = [2, 64], strides = [1, 1]} : vector<2x384xf32> to vector<2x64xf32>
    %163 = arith.mulf %152, %162 : vector<2x64xf32>
    %164 = arith.addf %161, %163 : vector<2x64xf32>
    %165 = math.tanh %164 : vector<2x64xf32>
    %cst_50 = arith.constant 1.000000e+00 : f32
    %166 = vector.broadcast %cst_50 : f32 to vector<2x64xf32>
    %167 = arith.subf %166, %160 : vector<2x64xf32>
    %168 = arith.mulf %167, %165 : vector<2x64xf32>
    %169 = arith.mulf %160, %143 : vector<2x64xf32>
    %170 = arith.addf %168, %169 : vector<2x64xf32>
    %171 = vector.extract_strided_slice %142 {offsets = [0, 0], sizes = [2, 64], strides = [1, 1]} : vector<2x192xf32> to vector<2x64xf32>
    %172 = vector.extract_strided_slice %140 {offsets = [0, 192], sizes = [2, 64], strides = [1, 1]} : vector<2x384xf32> to vector<2x64xf32>
    %173 = arith.addf %171, %172 : vector<2x64xf32>
    %174 = arith.negf %173 : vector<2x64xf32>
    %175 = math.exp %174 : vector<2x64xf32>
    %cst_51 = arith.constant 1.000000e+00 : f32
    %176 = vector.broadcast %cst_51 : f32 to vector<2x64xf32>
    %177 = arith.addf %176, %175 : vector<2x64xf32>
    %178 = arith.divf %176, %177 : vector<2x64xf32>
    %179 = vector.extract_strided_slice %142 {offsets = [0, 64], sizes = [2, 64], strides = [1, 1]} : vector<2x192xf32> to vector<2x64xf32>
    %180 = vector.extract_strided_slice %140 {offsets = [0, 256], sizes = [2, 64], strides = [1, 1]} : vector<2x384xf32> to vector<2x64xf32>
    %181 = arith.addf %179, %180 : vector<2x64xf32>
    %182 = arith.negf %181 : vector<2x64xf32>
    %183 = math.exp %182 : vector<2x64xf32>
    %cst_52 = arith.constant 1.000000e+00 : f32
    %184 = vector.broadcast %cst_52 : f32 to vector<2x64xf32>
    %185 = arith.addf %184, %183 : vector<2x64xf32>
    %186 = arith.divf %184, %185 : vector<2x64xf32>
    %187 = vector.extract_strided_slice %142 {offsets = [0, 128], sizes = [2, 64], strides = [1, 1]} : vector<2x192xf32> to vector<2x64xf32>
    %188 = vector.extract_strided_slice %140 {offsets = [0, 320], sizes = [2, 64], strides = [1, 1]} : vector<2x384xf32> to vector<2x64xf32>
    %189 = arith.mulf %178, %188 : vector<2x64xf32>
    %190 = arith.addf %187, %189 : vector<2x64xf32>
    %191 = math.tanh %190 : vector<2x64xf32>
    %cst_53 = arith.constant 1.000000e+00 : f32
    %192 = vector.broadcast %cst_53 : f32 to vector<2x64xf32>
    %193 = arith.subf %192, %186 : vector<2x64xf32>
    %194 = arith.mulf %193, %191 : vector<2x64xf32>
    %195 = arith.mulf %186, %144 : vector<2x64xf32>
    %196 = arith.addf %194, %195 : vector<2x64xf32>
    %197 = tpu.concatenate %170, %196 in 1 : vector<2x64xf32>, vector<2x64xf32> -> vector<2x128xf32>
    %c4_54 = arith.constant 4 : index
    %c0_55 = arith.constant 0 : index
    %198 = vector.load %arg13[%c4_54, %c0_55] : memref<16x128xf32, #tpu.memory_space<vmem>>, vector<2x64xf32>
    tpu.vector_store %arg13[%c4_54, %c0_55], %170 {strides = array<i32>} : memref<16x128xf32, #tpu.memory_space<vmem>>, vector<2x64xf32>,
    %c10_56 = arith.constant 10 : index
    %c64_57 = arith.constant 64 : index
    %199 = vector.load %arg13[%c10_56, %c64_57] : memref<16x128xf32, #tpu.memory_space<vmem>>, vector<2x64xf32>
    tpu.vector_store %arg13[%c10_56, %c64_57], %196 {strides = array<i32>} : memref<16x128xf32, #tpu.memory_space<vmem>>, vector<2x64xf32>,
    %c0_58 = arith.constant 0 : index
    %c0_59 = arith.constant 0 : index
    %200 = vector.load %arg3[%c0_58, %c0_59] : memref<128x384xf32, #tpu.memory_space<vmem>>, vector<128x384xf32>
    %cst_60 = arith.constant dense<0.000000e+00> : vector<2x384xf32>
    %201 = tpu.matmul %197, %200, %cst_60 {dimension_numbers = #tpu.dot_dimension_numbers<[1], [0], [0], [1], [0, 0, 1, 1], [], []>} : vector<2x128xf32>, vector<128x384xf32>, vector<2x384xf32> -> vector<2x384xf32>
    %c0_61 = arith.constant 0 : index
    %c0_62 = arith.constant 0 : index
    %202 = vector.load %arg4[%c0_61, %c0_62] : memref<1x384xf32, #tpu.memory_space<vmem>>, vector<1x384xf32>
    %203 = vector.broadcast %202 : vector<1x384xf32> to vector<2x384xf32>
    %204 = arith.addf %201, %203 : vector<2x384xf32>
    %c6 = arith.constant 6 : index
    %c0_63 = arith.constant 0 : index
    %205 = vector.load %arg12[%c6, %c0_63] : memref<16x384xf32, #tpu.memory_space<vmem>>, vector<2x192xf32>
    %c8 = arith.constant 8 : index
    %c192_64 = arith.constant 192 : index
    %206 = vector.load %arg12[%c8, %c192_64] : memref<16x384xf32, #tpu.memory_space<vmem>>, vector<2x192xf32>
    %207 = vector.extract_strided_slice %197 {offsets = [0, 0], sizes = [2, 64], strides = [1, 1]} : vector<2x128xf32> to vector<2x64xf32>
    %208 = vector.extract_strided_slice %197 {offsets = [0, 64], sizes = [2, 64], strides = [1, 1]} : vector<2x128xf32> to vector<2x64xf32>
    %209 = vector.extract_strided_slice %205 {offsets = [0, 0], sizes = [2, 64], strides = [1, 1]} : vector<2x192xf32> to vector<2x64xf32>
    %210 = vector.extract_strided_slice %204 {offsets = [0, 0], sizes = [2, 64], strides = [1, 1]} : vector<2x384xf32> to vector<2x64xf32>
    %211 = arith.addf %209, %210 : vector<2x64xf32>
    %212 = arith.negf %211 : vector<2x64xf32>
    %213 = math.exp %212 : vector<2x64xf32>
    %cst_65 = arith.constant 1.000000e+00 : f32
    %214 = vector.broadcast %cst_65 : f32 to vector<2x64xf32>
    %215 = arith.addf %214, %213 : vector<2x64xf32>
    %216 = arith.divf %214, %215 : vector<2x64xf32>
    %217 = vector.extract_strided_slice %205 {offsets = [0, 64], sizes = [2, 64], strides = [1, 1]} : vector<2x192xf32> to vector<2x64xf32>
    %218 = vector.extract_strided_slice %204 {offsets = [0, 64], sizes = [2, 64], strides = [1, 1]} : vector<2x384xf32> to vector<2x64xf32>
    %219 = arith.addf %217, %218 : vector<2x64xf32>
    %220 = arith.negf %219 : vector<2x64xf32>
    %221 = math.exp %220 : vector<2x64xf32>
    %cst_66 = arith.constant 1.000000e+00 : f32
    %222 = vector.broadcast %cst_66 : f32 to vector<2x64xf32>
    %223 = arith.addf %222, %221 : vector<2x64xf32>
    %224 = arith.divf %222, %223 : vector<2x64xf32>
    %225 = vector.extract_strided_slice %205 {offsets = [0, 128], sizes = [2, 64], strides = [1, 1]} : vector<2x192xf32> to vector<2x64xf32>
    %226 = vector.extract_strided_slice %204 {offsets = [0, 128], sizes = [2, 64], strides = [1, 1]} : vector<2x384xf32> to vector<2x64xf32>
    %227 = arith.mulf %216, %226 : vector<2x64xf32>
    %228 = arith.addf %225, %227 : vector<2x64xf32>
    %229 = math.tanh %228 : vector<2x64xf32>
    %cst_67 = arith.constant 1.000000e+00 : f32
    %230 = vector.broadcast %cst_67 : f32 to vector<2x64xf32>
    %231 = arith.subf %230, %224 : vector<2x64xf32>
    %232 = arith.mulf %231, %229 : vector<2x64xf32>
    %233 = arith.mulf %224, %207 : vector<2x64xf32>
    %234 = arith.addf %232, %233 : vector<2x64xf32>
    %235 = vector.extract_strided_slice %206 {offsets = [0, 0], sizes = [2, 64], strides = [1, 1]} : vector<2x192xf32> to vector<2x64xf32>
    %236 = vector.extract_strided_slice %204 {offsets = [0, 192], sizes = [2, 64], strides = [1, 1]} : vector<2x384xf32> to vector<2x64xf32>
    %237 = arith.addf %235, %236 : vector<2x64xf32>
    %238 = arith.negf %237 : vector<2x64xf32>
    %239 = math.exp %238 : vector<2x64xf32>
    %cst_68 = arith.constant 1.000000e+00 : f32
    %240 = vector.broadcast %cst_68 : f32 to vector<2x64xf32>
    %241 = arith.addf %240, %239 : vector<2x64xf32>
    %242 = arith.divf %240, %241 : vector<2x64xf32>
    %243 = vector.extract_strided_slice %206 {offsets = [0, 64], sizes = [2, 64], strides = [1, 1]} : vector<2x192xf32> to vector<2x64xf32>
    %244 = vector.extract_strided_slice %204 {offsets = [0, 256], sizes = [2, 64], strides = [1, 1]} : vector<2x384xf32> to vector<2x64xf32>
    %245 = arith.addf %243, %244 : vector<2x64xf32>
    %246 = arith.negf %245 : vector<2x64xf32>
    %247 = math.exp %246 : vector<2x64xf32>
    %cst_69 = arith.constant 1.000000e+00 : f32
    %248 = vector.broadcast %cst_69 : f32 to vector<2x64xf32>
    %249 = arith.addf %248, %247 : vector<2x64xf32>
    %250 = arith.divf %248, %249 : vector<2x64xf32>
    %251 = vector.extract_strided_slice %206 {offsets = [0, 128], sizes = [2, 64], strides = [1, 1]} : vector<2x192xf32> to vector<2x64xf32>
    %252 = vector.extract_strided_slice %204 {offsets = [0, 320], sizes = [2, 64], strides = [1, 1]} : vector<2x384xf32> to vector<2x64xf32>
    %253 = arith.mulf %242, %252 : vector<2x64xf32>
    %254 = arith.addf %251, %253 : vector<2x64xf32>
    %255 = math.tanh %254 : vector<2x64xf32>
    %cst_70 = arith.constant 1.000000e+00 : f32
    %256 = vector.broadcast %cst_70 : f32 to vector<2x64xf32>
    %257 = arith.subf %256, %250 : vector<2x64xf32>
    %258 = arith.mulf %257, %255 : vector<2x64xf32>
    %259 = arith.mulf %250, %208 : vector<2x64xf32>
    %260 = arith.addf %258, %259 : vector<2x64xf32>
    %261 = tpu.concatenate %234, %260 in 1 : vector<2x64xf32>, vector<2x64xf32> -> vector<2x128xf32>
    %c6_71 = arith.constant 6 : index
    %c0_72 = arith.constant 0 : index
    %262 = vector.load %arg13[%c6_71, %c0_72] : memref<16x128xf32, #tpu.memory_space<vmem>>, vector<2x64xf32>
    tpu.vector_store %arg13[%c6_71, %c0_72], %234 {strides = array<i32>} : memref<16x128xf32, #tpu.memory_space<vmem>>, vector<2x64xf32>,
    %c8_73 = arith.constant 8 : index
    %c64_74 = arith.constant 64 : index
    %263 = vector.load %arg13[%c8_73, %c64_74] : memref<16x128xf32, #tpu.memory_space<vmem>>, vector<2x64xf32>
    tpu.vector_store %arg13[%c8_73, %c64_74], %260 {strides = array<i32>} : memref<16x128xf32, #tpu.memory_space<vmem>>, vector<2x64xf32>,
    %c0_75 = arith.constant 0 : index
    %c0_76 = arith.constant 0 : index
    %264 = vector.load %arg3[%c0_75, %c0_76] : memref<128x384xf32, #tpu.memory_space<vmem>>, vector<128x384xf32>
    %cst_77 = arith.constant dense<0.000000e+00> : vector<2x384xf32>
    %265 = tpu.matmul %261, %264, %cst_77 {dimension_numbers = #tpu.dot_dimension_numbers<[1], [0], [0], [1], [0, 0, 1, 1], [], []>} : vector<2x128xf32>, vector<128x384xf32>, vector<2x384xf32> -> vector<2x384xf32>
    %c0_78 = arith.constant 0 : index
    %c0_79 = arith.constant 0 : index
    %266 = vector.load %arg4[%c0_78, %c0_79] : memref<1x384xf32, #tpu.memory_space<vmem>>, vector<1x384xf32>
    %267 = vector.broadcast %266 : vector<1x384xf32> to vector<2x384xf32>
    %268 = arith.addf %265, %267 : vector<2x384xf32>
    %c8_80 = arith.constant 8 : index
    %c0_81 = arith.constant 0 : index
    %269 = vector.load %arg12[%c8_80, %c0_81] : memref<16x384xf32, #tpu.memory_space<vmem>>, vector<2x192xf32>
    %c6_82 = arith.constant 6 : index
    %c192_83 = arith.constant 192 : index
    %270 = vector.load %arg12[%c6_82, %c192_83] : memref<16x384xf32, #tpu.memory_space<vmem>>, vector<2x192xf32>
    %271 = vector.extract_strided_slice %261 {offsets = [0, 0], sizes = [2, 64], strides = [1, 1]} : vector<2x128xf32> to vector<2x64xf32>
    %272 = vector.extract_strided_slice %261 {offsets = [0, 64], sizes = [2, 64], strides = [1, 1]} : vector<2x128xf32> to vector<2x64xf32>
    %273 = vector.extract_strided_slice %269 {offsets = [0, 0], sizes = [2, 64], strides = [1, 1]} : vector<2x192xf32> to vector<2x64xf32>
    %274 = vector.extract_strided_slice %268 {offsets = [0, 0], sizes = [2, 64], strides = [1, 1]} : vector<2x384xf32> to vector<2x64xf32>
    %275 = arith.addf %273, %274 : vector<2x64xf32>
    %276 = arith.negf %275 : vector<2x64xf32>
    %277 = math.exp %276 : vector<2x64xf32>
    %cst_84 = arith.constant 1.000000e+00 : f32
    %278 = vector.broadcast %cst_84 : f32 to vector<2x64xf32>
    %279 = arith.addf %278, %277 : vector<2x64xf32>
    %280 = arith.divf %278, %279 : vector<2x64xf32>
    %281 = vector.extract_strided_slice %269 {offsets = [0, 64], sizes = [2, 64], strides = [1, 1]} : vector<2x192xf32> to vector<2x64xf32>
    %282 = vector.extract_strided_slice %268 {offsets = [0, 64], sizes = [2, 64], strides = [1, 1]} : vector<2x384xf32> to vector<2x64xf32>
    %283 = arith.addf %281, %282 : vector<2x64xf32>
    %284 = arith.negf %283 : vector<2x64xf32>
    %285 = math.exp %284 : vector<2x64xf32>
    %cst_85 = arith.constant 1.000000e+00 : f32
    %286 = vector.broadcast %cst_85 : f32 to vector<2x64xf32>
    %287 = arith.addf %286, %285 : vector<2x64xf32>
    %288 = arith.divf %286, %287 : vector<2x64xf32>
    %289 = vector.extract_strided_slice %269 {offsets = [0, 128], sizes = [2, 64], strides = [1, 1]} : vector<2x192xf32> to vector<2x64xf32>
    %290 = vector.extract_strided_slice %268 {offsets = [0, 128], sizes = [2, 64], strides = [1, 1]} : vector<2x384xf32> to vector<2x64xf32>
    %291 = arith.mulf %280, %290 : vector<2x64xf32>
    %292 = arith.addf %289, %291 : vector<2x64xf32>
    %293 = math.tanh %292 : vector<2x64xf32>
    %cst_86 = arith.constant 1.000000e+00 : f32
    %294 = vector.broadcast %cst_86 : f32 to vector<2x64xf32>
    %295 = arith.subf %294, %288 : vector<2x64xf32>
    %296 = arith.mulf %295, %293 : vector<2x64xf32>
    %297 = arith.mulf %288, %271 : vector<2x64xf32>
    %298 = arith.addf %296, %297 : vector<2x64xf32>
    %299 = vector.extract_strided_slice %270 {offsets = [0, 0], sizes = [2, 64], strides = [1, 1]} : vector<2x192xf32> to vector<2x64xf32>
    %300 = vector.extract_strided_slice %268 {offsets = [0, 192], sizes = [2, 64], strides = [1, 1]} : vector<2x384xf32> to vector<2x64xf32>
    %301 = arith.addf %299, %300 : vector<2x64xf32>
    %302 = arith.negf %301 : vector<2x64xf32>
    %303 = math.exp %302 : vector<2x64xf32>
    %cst_87 = arith.constant 1.000000e+00 : f32
    %304 = vector.broadcast %cst_87 : f32 to vector<2x64xf32>
    %305 = arith.addf %304, %303 : vector<2x64xf32>
    %306 = arith.divf %304, %305 : vector<2x64xf32>
    %307 = vector.extract_strided_slice %270 {offsets = [0, 64], sizes = [2, 64], strides = [1, 1]} : vector<2x192xf32> to vector<2x64xf32>
    %308 = vector.extract_strided_slice %268 {offsets = [0, 256], sizes = [2, 64], strides = [1, 1]} : vector<2x384xf32> to vector<2x64xf32>
    %309 = arith.addf %307, %308 : vector<2x64xf32>
    %310 = arith.negf %309 : vector<2x64xf32>
    %311 = math.exp %310 : vector<2x64xf32>
    %cst_88 = arith.constant 1.000000e+00 : f32
    %312 = vector.broadcast %cst_88 : f32 to vector<2x64xf32>
    %313 = arith.addf %312, %311 : vector<2x64xf32>
    %314 = arith.divf %312, %313 : vector<2x64xf32>
    %315 = vector.extract_strided_slice %270 {offsets = [0, 128], sizes = [2, 64], strides = [1, 1]} : vector<2x192xf32> to vector<2x64xf32>
    %316 = vector.extract_strided_slice %268 {offsets = [0, 320], sizes = [2, 64], strides = [1, 1]} : vector<2x384xf32> to vector<2x64xf32>
    %317 = arith.mulf %306, %316 : vector<2x64xf32>
    %318 = arith.addf %315, %317 : vector<2x64xf32>
    %319 = math.tanh %318 : vector<2x64xf32>
    %cst_89 = arith.constant 1.000000e+00 : f32
    %320 = vector.broadcast %cst_89 : f32 to vector<2x64xf32>
    %321 = arith.subf %320, %314 : vector<2x64xf32>
    %322 = arith.mulf %321, %319 : vector<2x64xf32>
    %323 = arith.mulf %314, %272 : vector<2x64xf32>
    %324 = arith.addf %322, %323 : vector<2x64xf32>
    %325 = tpu.concatenate %298, %324 in 1 : vector<2x64xf32>, vector<2x64xf32> -> vector<2x128xf32>
    %c8_90 = arith.constant 8 : index
    %c0_91 = arith.constant 0 : index
    %326 = vector.load %arg13[%c8_90, %c0_91] : memref<16x128xf32, #tpu.memory_space<vmem>>, vector<2x64xf32>
    tpu.vector_store %arg13[%c8_90, %c0_91], %298 {strides = array<i32>} : memref<16x128xf32, #tpu.memory_space<vmem>>, vector<2x64xf32>,
    %c6_92 = arith.constant 6 : index
    %c64_93 = arith.constant 64 : index
    %327 = vector.load %arg13[%c6_92, %c64_93] : memref<16x128xf32, #tpu.memory_space<vmem>>, vector<2x64xf32>
    tpu.vector_store %arg13[%c6_92, %c64_93], %324 {strides = array<i32>} : memref<16x128xf32, #tpu.memory_space<vmem>>, vector<2x64xf32>,
    %c0_94 = arith.constant 0 : index
    %c0_95 = arith.constant 0 : index
    %328 = vector.load %arg3[%c0_94, %c0_95] : memref<128x384xf32, #tpu.memory_space<vmem>>, vector<128x384xf32>
    %cst_96 = arith.constant dense<0.000000e+00> : vector<2x384xf32>
    %329 = tpu.matmul %325, %328, %cst_96 {dimension_numbers = #tpu.dot_dimension_numbers<[1], [0], [0], [1], [0, 0, 1, 1], [], []>} : vector<2x128xf32>, vector<128x384xf32>, vector<2x384xf32> -> vector<2x384xf32>
    %c0_97 = arith.constant 0 : index
    %c0_98 = arith.constant 0 : index
    %330 = vector.load %arg4[%c0_97, %c0_98] : memref<1x384xf32, #tpu.memory_space<vmem>>, vector<1x384xf32>
    %331 = vector.broadcast %330 : vector<1x384xf32> to vector<2x384xf32>
    %332 = arith.addf %329, %331 : vector<2x384xf32>
    %c10_99 = arith.constant 10 : index
    %c0_100 = arith.constant 0 : index
    %333 = vector.load %arg12[%c10_99, %c0_100] : memref<16x384xf32, #tpu.memory_space<vmem>>, vector<2x192xf32>
    %c4_101 = arith.constant 4 : index
    %c192_102 = arith.constant 192 : index
    %334 = vector.load %arg12[%c4_101, %c192_102] : memref<16x384xf32, #tpu.memory_space<vmem>>, vector<2x192xf32>
    %335 = vector.extract_strided_slice %325 {offsets = [0, 0], sizes = [2, 64], strides = [1, 1]} : vector<2x128xf32> to vector<2x64xf32>
    %336 = vector.extract_strided_slice %325 {offsets = [0, 64], sizes = [2, 64], strides = [1, 1]} : vector<2x128xf32> to vector<2x64xf32>
    %337 = vector.extract_strided_slice %333 {offsets = [0, 0], sizes = [2, 64], strides = [1, 1]} : vector<2x192xf32> to vector<2x64xf32>
    %338 = vector.extract_strided_slice %332 {offsets = [0, 0], sizes = [2, 64], strides = [1, 1]} : vector<2x384xf32> to vector<2x64xf32>
    %339 = arith.addf %337, %338 : vector<2x64xf32>
    %340 = arith.negf %339 : vector<2x64xf32>
    %341 = math.exp %340 : vector<2x64xf32>
    %cst_103 = arith.constant 1.000000e+00 : f32
    %342 = vector.broadcast %cst_103 : f32 to vector<2x64xf32>
    %343 = arith.addf %342, %341 : vector<2x64xf32>
    %344 = arith.divf %342, %343 : vector<2x64xf32>
    %345 = vector.extract_strided_slice %333 {offsets = [0, 64], sizes = [2, 64], strides = [1, 1]} : vector<2x192xf32> to vector<2x64xf32>
    %346 = vector.extract_strided_slice %332 {offsets = [0, 64], sizes = [2, 64], strides = [1, 1]} : vector<2x384xf32> to vector<2x64xf32>
    %347 = arith.addf %345, %346 : vector<2x64xf32>
    %348 = arith.negf %347 : vector<2x64xf32>
    %349 = math.exp %348 : vector<2x64xf32>
    %cst_104 = arith.constant 1.000000e+00 : f32
    %350 = vector.broadcast %cst_104 : f32 to vector<2x64xf32>
    %351 = arith.addf %350, %349 : vector<2x64xf32>
    %352 = arith.divf %350, %351 : vector<2x64xf32>
    %353 = vector.extract_strided_slice %333 {offsets = [0, 128], sizes = [2, 64], strides = [1, 1]} : vector<2x192xf32> to vector<2x64xf32>
    %354 = vector.extract_strided_slice %332 {offsets = [0, 128], sizes = [2, 64], strides = [1, 1]} : vector<2x384xf32> to vector<2x64xf32>
    %355 = arith.mulf %344, %354 : vector<2x64xf32>
    %356 = arith.addf %353, %355 : vector<2x64xf32>
    %357 = math.tanh %356 : vector<2x64xf32>
    %cst_105 = arith.constant 1.000000e+00 : f32
    %358 = vector.broadcast %cst_105 : f32 to vector<2x64xf32>
    %359 = arith.subf %358, %352 : vector<2x64xf32>
    %360 = arith.mulf %359, %357 : vector<2x64xf32>
    %361 = arith.mulf %352, %335 : vector<2x64xf32>
    %362 = arith.addf %360, %361 : vector<2x64xf32>
    %363 = vector.extract_strided_slice %334 {offsets = [0, 0], sizes = [2, 64], strides = [1, 1]} : vector<2x192xf32> to vector<2x64xf32>
    %364 = vector.extract_strided_slice %332 {offsets = [0, 192], sizes = [2, 64], strides = [1, 1]} : vector<2x384xf32> to vector<2x64xf32>
    %365 = arith.addf %363, %364 : vector<2x64xf32>
    %366 = arith.negf %365 : vector<2x64xf32>
    %367 = math.exp %366 : vector<2x64xf32>
    %cst_106 = arith.constant 1.000000e+00 : f32
    %368 = vector.broadcast %cst_106 : f32 to vector<2x64xf32>
    %369 = arith.addf %368, %367 : vector<2x64xf32>
    %370 = arith.divf %368, %369 : vector<2x64xf32>
    %371 = vector.extract_strided_slice %334 {offsets = [0, 64], sizes = [2, 64], strides = [1, 1]} : vector<2x192xf32> to vector<2x64xf32>
    %372 = vector.extract_strided_slice %332 {offsets = [0, 256], sizes = [2, 64], strides = [1, 1]} : vector<2x384xf32> to vector<2x64xf32>
    %373 = arith.addf %371, %372 : vector<2x64xf32>
    %374 = arith.negf %373 : vector<2x64xf32>
    %375 = math.exp %374 : vector<2x64xf32>
    %cst_107 = arith.constant 1.000000e+00 : f32
    %376 = vector.broadcast %cst_107 : f32 to vector<2x64xf32>
    %377 = arith.addf %376, %375 : vector<2x64xf32>
    %378 = arith.divf %376, %377 : vector<2x64xf32>
    %379 = vector.extract_strided_slice %334 {offsets = [0, 128], sizes = [2, 64], strides = [1, 1]} : vector<2x192xf32> to vector<2x64xf32>
    %380 = vector.extract_strided_slice %332 {offsets = [0, 320], sizes = [2, 64], strides = [1, 1]} : vector<2x384xf32> to vector<2x64xf32>
    %381 = arith.mulf %370, %380 : vector<2x64xf32>
    %382 = arith.addf %379, %381 : vector<2x64xf32>
    %383 = math.tanh %382 : vector<2x64xf32>
    %cst_108 = arith.constant 1.000000e+00 : f32
    %384 = vector.broadcast %cst_108 : f32 to vector<2x64xf32>
    %385 = arith.subf %384, %378 : vector<2x64xf32>
    %386 = arith.mulf %385, %383 : vector<2x64xf32>
    %387 = arith.mulf %378, %336 : vector<2x64xf32>
    %388 = arith.addf %386, %387 : vector<2x64xf32>
    %389 = tpu.concatenate %362, %388 in 1 : vector<2x64xf32>, vector<2x64xf32> -> vector<2x128xf32>
    %c10_109 = arith.constant 10 : index
    %c0_110 = arith.constant 0 : index
    %390 = vector.load %arg13[%c10_109, %c0_110] : memref<16x128xf32, #tpu.memory_space<vmem>>, vector<2x64xf32>
    tpu.vector_store %arg13[%c10_109, %c0_110], %362 {strides = array<i32>} : memref<16x128xf32, #tpu.memory_space<vmem>>, vector<2x64xf32>,
    %c4_111 = arith.constant 4 : index
    %c64_112 = arith.constant 64 : index
    %391 = vector.load %arg13[%c4_111, %c64_112] : memref<16x128xf32, #tpu.memory_space<vmem>>, vector<2x64xf32>
    tpu.vector_store %arg13[%c4_111, %c64_112], %388 {strides = array<i32>} : memref<16x128xf32, #tpu.memory_space<vmem>>, vector<2x64xf32>,
    %c0_113 = arith.constant 0 : index
    %c0_114 = arith.constant 0 : index
    %392 = vector.load %arg3[%c0_113, %c0_114] : memref<128x384xf32, #tpu.memory_space<vmem>>, vector<128x384xf32>
    %cst_115 = arith.constant dense<0.000000e+00> : vector<2x384xf32>
    %393 = tpu.matmul %389, %392, %cst_115 {dimension_numbers = #tpu.dot_dimension_numbers<[1], [0], [0], [1], [0, 0, 1, 1], [], []>} : vector<2x128xf32>, vector<128x384xf32>, vector<2x384xf32> -> vector<2x384xf32>
    %c0_116 = arith.constant 0 : index
    %c0_117 = arith.constant 0 : index
    %394 = vector.load %arg4[%c0_116, %c0_117] : memref<1x384xf32, #tpu.memory_space<vmem>>, vector<1x384xf32>
    %395 = vector.broadcast %394 : vector<1x384xf32> to vector<2x384xf32>
    %396 = arith.addf %393, %395 : vector<2x384xf32>
    %c12_118 = arith.constant 12 : index
    %c0_119 = arith.constant 0 : index
    %397 = vector.load %arg12[%c12_118, %c0_119] : memref<16x384xf32, #tpu.memory_space<vmem>>, vector<2x192xf32>
    %c2_120 = arith.constant 2 : index
    %c192_121 = arith.constant 192 : index
    %398 = vector.load %arg12[%c2_120, %c192_121] : memref<16x384xf32, #tpu.memory_space<vmem>>, vector<2x192xf32>
    %399 = vector.extract_strided_slice %389 {offsets = [0, 0], sizes = [2, 64], strides = [1, 1]} : vector<2x128xf32> to vector<2x64xf32>
    %400 = vector.extract_strided_slice %389 {offsets = [0, 64], sizes = [2, 64], strides = [1, 1]} : vector<2x128xf32> to vector<2x64xf32>
    %401 = vector.extract_strided_slice %397 {offsets = [0, 0], sizes = [2, 64], strides = [1, 1]} : vector<2x192xf32> to vector<2x64xf32>
    %402 = vector.extract_strided_slice %396 {offsets = [0, 0], sizes = [2, 64], strides = [1, 1]} : vector<2x384xf32> to vector<2x64xf32>
    %403 = arith.addf %401, %402 : vector<2x64xf32>
    %404 = arith.negf %403 : vector<2x64xf32>
    %405 = math.exp %404 : vector<2x64xf32>
    %cst_122 = arith.constant 1.000000e+00 : f32
    %406 = vector.broadcast %cst_122 : f32 to vector<2x64xf32>
    %407 = arith.addf %406, %405 : vector<2x64xf32>
    %408 = arith.divf %406, %407 : vector<2x64xf32>
    %409 = vector.extract_strided_slice %397 {offsets = [0, 64], sizes = [2, 64], strides = [1, 1]} : vector<2x192xf32> to vector<2x64xf32>
    %410 = vector.extract_strided_slice %396 {offsets = [0, 64], sizes = [2, 64], strides = [1, 1]} : vector<2x384xf32> to vector<2x64xf32>
    %411 = arith.addf %409, %410 : vector<2x64xf32>
    %412 = arith.negf %411 : vector<2x64xf32>
    %413 = math.exp %412 : vector<2x64xf32>
    %cst_123 = arith.constant 1.000000e+00 : f32
    %414 = vector.broadcast %cst_123 : f32 to vector<2x64xf32>
    %415 = arith.addf %414, %413 : vector<2x64xf32>
    %416 = arith.divf %414, %415 : vector<2x64xf32>
    %417 = vector.extract_strided_slice %397 {offsets = [0, 128], sizes = [2, 64], strides = [1, 1]} : vector<2x192xf32> to vector<2x64xf32>
    %418 = vector.extract_strided_slice %396 {offsets = [0, 128], sizes = [2, 64], strides = [1, 1]} : vector<2x384xf32> to vector<2x64xf32>
    %419 = arith.mulf %408, %418 : vector<2x64xf32>
    %420 = arith.addf %417, %419 : vector<2x64xf32>
    %421 = math.tanh %420 : vector<2x64xf32>
    %cst_124 = arith.constant 1.000000e+00 : f32
    %422 = vector.broadcast %cst_124 : f32 to vector<2x64xf32>
    %423 = arith.subf %422, %416 : vector<2x64xf32>
    %424 = arith.mulf %423, %421 : vector<2x64xf32>
    %425 = arith.mulf %416, %399 : vector<2x64xf32>
    %426 = arith.addf %424, %425 : vector<2x64xf32>
    %427 = vector.extract_strided_slice %398 {offsets = [0, 0], sizes = [2, 64], strides = [1, 1]} : vector<2x192xf32> to vector<2x64xf32>
    %428 = vector.extract_strided_slice %396 {offsets = [0, 192], sizes = [2, 64], strides = [1, 1]} : vector<2x384xf32> to vector<2x64xf32>
    %429 = arith.addf %427, %428 : vector<2x64xf32>
    %430 = arith.negf %429 : vector<2x64xf32>
    %431 = math.exp %430 : vector<2x64xf32>
    %cst_125 = arith.constant 1.000000e+00 : f32
    %432 = vector.broadcast %cst_125 : f32 to vector<2x64xf32>
    %433 = arith.addf %432, %431 : vector<2x64xf32>
    %434 = arith.divf %432, %433 : vector<2x64xf32>
    %435 = vector.extract_strided_slice %398 {offsets = [0, 64], sizes = [2, 64], strides = [1, 1]} : vector<2x192xf32> to vector<2x64xf32>
    %436 = vector.extract_strided_slice %396 {offsets = [0, 256], sizes = [2, 64], strides = [1, 1]} : vector<2x384xf32> to vector<2x64xf32>
    %437 = arith.addf %435, %436 : vector<2x64xf32>
    %438 = arith.negf %437 : vector<2x64xf32>
    %439 = math.exp %438 : vector<2x64xf32>
    %cst_126 = arith.constant 1.000000e+00 : f32
    %440 = vector.broadcast %cst_126 : f32 to vector<2x64xf32>
    %441 = arith.addf %440, %439 : vector<2x64xf32>
    %442 = arith.divf %440, %441 : vector<2x64xf32>
    %443 = vector.extract_strided_slice %398 {offsets = [0, 128], sizes = [2, 64], strides = [1, 1]} : vector<2x192xf32> to vector<2x64xf32>
    %444 = vector.extract_strided_slice %396 {offsets = [0, 320], sizes = [2, 64], strides = [1, 1]} : vector<2x384xf32> to vector<2x64xf32>
    %445 = arith.mulf %434, %444 : vector<2x64xf32>
    %446 = arith.addf %443, %445 : vector<2x64xf32>
    %447 = math.tanh %446 : vector<2x64xf32>
    %cst_127 = arith.constant 1.000000e+00 : f32
    %448 = vector.broadcast %cst_127 : f32 to vector<2x64xf32>
    %449 = arith.subf %448, %442 : vector<2x64xf32>
    %450 = arith.mulf %449, %447 : vector<2x64xf32>
    %451 = arith.mulf %442, %400 : vector<2x64xf32>
    %452 = arith.addf %450, %451 : vector<2x64xf32>
    %453 = tpu.concatenate %426, %452 in 1 : vector<2x64xf32>, vector<2x64xf32> -> vector<2x128xf32>
    %c12_128 = arith.constant 12 : index
    %c0_129 = arith.constant 0 : index
    %454 = vector.load %arg13[%c12_128, %c0_129] : memref<16x128xf32, #tpu.memory_space<vmem>>, vector<2x64xf32>
    tpu.vector_store %arg13[%c12_128, %c0_129], %426 {strides = array<i32>} : memref<16x128xf32, #tpu.memory_space<vmem>>, vector<2x64xf32>,
    %c2_130 = arith.constant 2 : index
    %c64_131 = arith.constant 64 : index
    %455 = vector.load %arg13[%c2_130, %c64_131] : memref<16x128xf32, #tpu.memory_space<vmem>>, vector<2x64xf32>
    tpu.vector_store %arg13[%c2_130, %c64_131], %452 {strides = array<i32>} : memref<16x128xf32, #tpu.memory_space<vmem>>, vector<2x64xf32>,
    %c0_132 = arith.constant 0 : index
    %c0_133 = arith.constant 0 : index
    %456 = vector.load %arg3[%c0_132, %c0_133] : memref<128x384xf32, #tpu.memory_space<vmem>>, vector<128x384xf32>
    %cst_134 = arith.constant dense<0.000000e+00> : vector<2x384xf32>
    %457 = tpu.matmul %453, %456, %cst_134 {dimension_numbers = #tpu.dot_dimension_numbers<[1], [0], [0], [1], [0, 0, 1, 1], [], []>} : vector<2x128xf32>, vector<128x384xf32>, vector<2x384xf32> -> vector<2x384xf32>
    %c0_135 = arith.constant 0 : index
    %c0_136 = arith.constant 0 : index
    %458 = vector.load %arg4[%c0_135, %c0_136] : memref<1x384xf32, #tpu.memory_space<vmem>>, vector<1x384xf32>
    %459 = vector.broadcast %458 : vector<1x384xf32> to vector<2x384xf32>
    %460 = arith.addf %457, %459 : vector<2x384xf32>
    %c14_137 = arith.constant 14 : index
    %c0_138 = arith.constant 0 : index
    %461 = vector.load %arg12[%c14_137, %c0_138] : memref<16x384xf32, #tpu.memory_space<vmem>>, vector<2x192xf32>
    %c0_139 = arith.constant 0 : index
    %c192_140 = arith.constant 192 : index
    %462 = vector.load %arg12[%c0_139, %c192_140] : memref<16x384xf32, #tpu.memory_space<vmem>>, vector<2x192xf32>
    %463 = vector.extract_strided_slice %453 {offsets = [0, 0], sizes = [2, 64], strides = [1, 1]} : vector<2x128xf32> to vector<2x64xf32>
    %464 = vector.extract_strided_slice %453 {offsets = [0, 64], sizes = [2, 64], strides = [1, 1]} : vector<2x128xf32> to vector<2x64xf32>
    %465 = vector.extract_strided_slice %461 {offsets = [0, 0], sizes = [2, 64], strides = [1, 1]} : vector<2x192xf32> to vector<2x64xf32>
    %466 = vector.extract_strided_slice %460 {offsets = [0, 0], sizes = [2, 64], strides = [1, 1]} : vector<2x384xf32> to vector<2x64xf32>
    %467 = arith.addf %465, %466 : vector<2x64xf32>
    %468 = arith.negf %467 : vector<2x64xf32>
    %469 = math.exp %468 : vector<2x64xf32>
    %cst_141 = arith.constant 1.000000e+00 : f32
    %470 = vector.broadcast %cst_141 : f32 to vector<2x64xf32>
    %471 = arith.addf %470, %469 : vector<2x64xf32>
    %472 = arith.divf %470, %471 : vector<2x64xf32>
    %473 = vector.extract_strided_slice %461 {offsets = [0, 64], sizes = [2, 64], strides = [1, 1]} : vector<2x192xf32> to vector<2x64xf32>
    %474 = vector.extract_strided_slice %460 {offsets = [0, 64], sizes = [2, 64], strides = [1, 1]} : vector<2x384xf32> to vector<2x64xf32>
    %475 = arith.addf %473, %474 : vector<2x64xf32>
    %476 = arith.negf %475 : vector<2x64xf32>
    %477 = math.exp %476 : vector<2x64xf32>
    %cst_142 = arith.constant 1.000000e+00 : f32
    %478 = vector.broadcast %cst_142 : f32 to vector<2x64xf32>
    %479 = arith.addf %478, %477 : vector<2x64xf32>
    %480 = arith.divf %478, %479 : vector<2x64xf32>
    %481 = vector.extract_strided_slice %461 {offsets = [0, 128], sizes = [2, 64], strides = [1, 1]} : vector<2x192xf32> to vector<2x64xf32>
    %482 = vector.extract_strided_slice %460 {offsets = [0, 128], sizes = [2, 64], strides = [1, 1]} : vector<2x384xf32> to vector<2x64xf32>
    %483 = arith.mulf %472, %482 : vector<2x64xf32>
    %484 = arith.addf %481, %483 : vector<2x64xf32>
    %485 = math.tanh %484 : vector<2x64xf32>
    %cst_143 = arith.constant 1.000000e+00 : f32
    %486 = vector.broadcast %cst_143 : f32 to vector<2x64xf32>
    %487 = arith.subf %486, %480 : vector<2x64xf32>
    %488 = arith.mulf %487, %485 : vector<2x64xf32>
    %489 = arith.mulf %480, %463 : vector<2x64xf32>
    %490 = arith.addf %488, %489 : vector<2x64xf32>
    %491 = vector.extract_strided_slice %462 {offsets = [0, 0], sizes = [2, 64], strides = [1, 1]} : vector<2x192xf32> to vector<2x64xf32>
    %492 = vector.extract_strided_slice %460 {offsets = [0, 192], sizes = [2, 64], strides = [1, 1]} : vector<2x384xf32> to vector<2x64xf32>
    %493 = arith.addf %491, %492 : vector<2x64xf32>
    %494 = arith.negf %493 : vector<2x64xf32>
    %495 = math.exp %494 : vector<2x64xf32>
    %cst_144 = arith.constant 1.000000e+00 : f32
    %496 = vector.broadcast %cst_144 : f32 to vector<2x64xf32>
    %497 = arith.addf %496, %495 : vector<2x64xf32>
    %498 = arith.divf %496, %497 : vector<2x64xf32>
    %499 = vector.extract_strided_slice %462 {offsets = [0, 64], sizes = [2, 64], strides = [1, 1]} : vector<2x192xf32> to vector<2x64xf32>
    %500 = vector.extract_strided_slice %460 {offsets = [0, 256], sizes = [2, 64], strides = [1, 1]} : vector<2x384xf32> to vector<2x64xf32>
    %501 = arith.addf %499, %500 : vector<2x64xf32>
    %502 = arith.negf %501 : vector<2x64xf32>
    %503 = math.exp %502 : vector<2x64xf32>
    %cst_145 = arith.constant 1.000000e+00 : f32
    %504 = vector.broadcast %cst_145 : f32 to vector<2x64xf32>
    %505 = arith.addf %504, %503 : vector<2x64xf32>
    %506 = arith.divf %504, %505 : vector<2x64xf32>
    %507 = vector.extract_strided_slice %462 {offsets = [0, 128], sizes = [2, 64], strides = [1, 1]} : vector<2x192xf32> to vector<2x64xf32>
    %508 = vector.extract_strided_slice %460 {offsets = [0, 320], sizes = [2, 64], strides = [1, 1]} : vector<2x384xf32> to vector<2x64xf32>
    %509 = arith.mulf %498, %508 : vector<2x64xf32>
    %510 = arith.addf %507, %509 : vector<2x64xf32>
    %511 = math.tanh %510 : vector<2x64xf32>
    %cst_146 = arith.constant 1.000000e+00 : f32
    %512 = vector.broadcast %cst_146 : f32 to vector<2x64xf32>
    %513 = arith.subf %512, %506 : vector<2x64xf32>
    %514 = arith.mulf %513, %511 : vector<2x64xf32>
    %515 = arith.mulf %506, %464 : vector<2x64xf32>
    %516 = arith.addf %514, %515 : vector<2x64xf32>
    %c14_147 = arith.constant 14 : index
    %c0_148 = arith.constant 0 : index
    %517 = vector.load %arg13[%c14_147, %c0_148] : memref<16x128xf32, #tpu.memory_space<vmem>>, vector<2x64xf32>
    tpu.vector_store %arg13[%c14_147, %c0_148], %490 {strides = array<i32>} : memref<16x128xf32, #tpu.memory_space<vmem>>, vector<2x64xf32>,
    %c0_149 = arith.constant 0 : index
    %c64_150 = arith.constant 64 : index
    %518 = vector.load %arg13[%c0_149, %c64_150] : memref<16x128xf32, #tpu.memory_space<vmem>>, vector<2x64xf32>
    tpu.vector_store %arg13[%c0_149, %c64_150], %516 {strides = array<i32>} : memref<16x128xf32, #tpu.memory_space<vmem>>, vector<2x64xf32>,
    %c0_151 = arith.constant 0 : index
    %c0_152 = arith.constant 0 : index
    %519 = vector.load %arg13[%c0_151, %c0_152] : memref<16x128xf32, #tpu.memory_space<vmem>>, vector<16x128xf32>
    %c0_153 = arith.constant 0 : index
    %c0_154 = arith.constant 0 : index
    %520 = vector.load %arg5[%c0_153, %c0_154] : memref<128x64xf32, #tpu.memory_space<vmem>>, vector<128x64xf32>
    %cst_155 = arith.constant dense<0.000000e+00> : vector<16x64xf32>
    %521 = tpu.matmul %519, %520, %cst_155 {dimension_numbers = #tpu.dot_dimension_numbers<[1], [0], [0], [1], [0, 0, 1, 1], [], []>} : vector<16x128xf32>, vector<128x64xf32>, vector<16x64xf32> -> vector<16x64xf32>
    %c0_156 = arith.constant 0 : index
    %c0_157 = arith.constant 0 : index
    %522 = vector.load %arg6[%c0_156, %c0_157] : memref<1x64xf32, #tpu.memory_space<vmem>>, vector<1x64xf32>
    %523 = vector.broadcast %522 : vector<1x64xf32> to vector<16x64xf32>
    %524 = arith.addf %521, %523 : vector<16x64xf32>
    %c0_158 = arith.constant 0 : index
    %c0_159 = arith.constant 0 : index
    %525 = vector.load %arg8[%c0_158, %c0_159] : memref<11x4xf32, #tpu.memory_space<vmem>>, vector<11x4xf32>
    %526 = vector.extract_strided_slice %525 {offsets = [0, 0], sizes = [1, 4], strides = [1, 1]} : vector<11x4xf32> to vector<1x4xf32>
    %527 = vector.extract_strided_slice %525 {offsets = [1, 0], sizes = [1, 4], strides = [1, 1]} : vector<11x4xf32> to vector<1x4xf32>
    %528 = vector.extract_strided_slice %525 {offsets = [2, 0], sizes = [1, 4], strides = [1, 1]} : vector<11x4xf32> to vector<1x4xf32>
    %c0_160 = arith.constant 0 : index
    %c0_161 = arith.constant 0 : index
    %529 = vector.load %arg7[%c0_160, %c0_161] : memref<64x4xf32, #tpu.memory_space<vmem>>, vector<64x4xf32>
    %cst_162 = arith.constant dense<0.000000e+00> : vector<16x4xf32>
    %530 = tpu.matmul %524, %529, %cst_162 {dimension_numbers = #tpu.dot_dimension_numbers<[1], [0], [0], [1], [0, 0, 1, 1], [], []>} : vector<16x64xf32>, vector<64x4xf32>, vector<16x4xf32> -> vector<16x4xf32>
    %531 = vector.broadcast %526 : vector<1x4xf32> to vector<16x4xf32>
    %532 = arith.addf %530, %531 : vector<16x4xf32>
    %cst_163 = arith.constant dense<0xFF800000> : vector<16xf32>
    %533 = vector.multi_reduction <maximumf>, %532, %cst_163 [1] : vector<16x4xf32> to vector<16xf32>
    %534 = vector.shape_cast %533 : vector<16xf32> to vector<16x1xf32>
    %535 = vector.broadcast %534 : vector<16x1xf32> to vector<16x4xf32>
    %536 = arith.subf %532, %535 : vector<16x4xf32>
    %537 = math.exp %536 : vector<16x4xf32>
    %cst_164 = arith.constant dense<0.000000e+00> : vector<16xf32>
    %538 = vector.multi_reduction <add>, %537, %cst_164 [1] : vector<16x4xf32> to vector<16xf32>
    %539 = vector.shape_cast %538 : vector<16xf32> to vector<16x1xf32>
    %540 = math.log %539 : vector<16x1xf32>
    %541 = arith.addf %534, %540 : vector<16x1xf32>
    %542 = vector.broadcast %541 : vector<16x1xf32> to vector<16x4xf32>
    %543 = arith.subf %532, %542 : vector<16x4xf32>
    %c0_165 = arith.constant 0 : index
    %c0_166 = arith.constant 0 : index
    %544 = vector.load %arg9[%c0_165, %c0_166] : memref<16x1xf32, #tpu.memory_space<vmem>>, vector<16x1xf32>
    %c0_167 = arith.constant 0 : index
    %c0_168 = arith.constant 0 : index
    %545 = vector.load %arg10[%c0_167, %c0_168] : memref<16x1xi32, #tpu.memory_space<vmem>>, vector<16x1xi32>
    %546 = tpu.iota {dimensions = array<i32: 1>} : vector<16x4xi32>
    %547 = vector.broadcast %545 : vector<16x1xi32> to vector<16x4xi32>
    %548 = arith.cmpi eq, %547, %546 : vector<16x4xi32>
    %549 = arith.extui %548 : vector<16x4xi1> to vector<16x4xi32>
    %550 = arith.sitofp %549 : vector<16x4xi32> to vector<16x4xf32>
    %551 = vector.extract_strided_slice %550 {offsets = [0, 0], sizes = [2, 4], strides = [1, 1]} : vector<16x4xf32> to vector<2x4xf32>
    %552 = vector.extract_strided_slice %543 {offsets = [0, 0], sizes = [2, 4], strides = [1, 1]} : vector<16x4xf32> to vector<2x4xf32>
    %553 = vector.broadcast %527 : vector<1x4xf32> to vector<2x4xf32>
    %554 = arith.addf %553, %552 : vector<2x4xf32>
    %555 = arith.mulf %551, %554 : vector<2x4xf32>
    %cst_169 = arith.constant dense<0.000000e+00> : vector<2xf32>
    %556 = vector.multi_reduction <add>, %555, %cst_169 [1] : vector<2x4xf32> to vector<2xf32>
    %557 = vector.shape_cast %556 : vector<2xf32> to vector<2x1xf32>
    %cst_170 = arith.constant dense<0.000000e+00> : vector<1xf32>
    %558 = vector.multi_reduction <add>, %557, %cst_170 [0] : vector<2x1xf32> to vector<1xf32>
    %559 = vector.shape_cast %558 : vector<1xf32> to vector<1x1xf32>
    %560 = vector.extract_strided_slice %550 {offsets = [2, 0], sizes = [14, 4], strides = [1, 1]} : vector<16x4xf32> to vector<14x4xf32>
    %561 = vector.extract_strided_slice %543 {offsets = [2, 0], sizes = [14, 4], strides = [1, 1]} : vector<16x4xf32> to vector<14x4xf32>
    %562 = arith.mulf %560, %561 : vector<14x4xf32>
    %cst_171 = arith.constant dense<0.000000e+00> : vector<14xf32>
    %563 = vector.multi_reduction <add>, %562, %cst_171 [1] : vector<14x4xf32> to vector<14xf32>
    %564 = vector.shape_cast %563 : vector<14xf32> to vector<14x1xf32>
    %565 = vector.extract_strided_slice %550 {offsets = [0, 0], sizes = [14, 4], strides = [1, 1]} : vector<16x4xf32> to vector<14x4xf32>
    %566 = vector.extract_strided_slice %550 {offsets = [2, 0], sizes = [14, 4], strides = [1, 1]} : vector<16x4xf32> to vector<14x4xf32>
    %cst_172 = arith.constant 0.000000e+00 : f32
    %567 = vector.broadcast %cst_172 : f32 to vector<14x1xf32>
    %568 = vector.extract_strided_slice %525 {offsets = [3, 0], sizes = [1, 4], strides = [1, 1]} : vector<11x4xf32> to vector<1x4xf32>
    %569 = vector.extract_strided_slice %565 {offsets = [0, 0], sizes = [14, 1], strides = [1, 1]} : vector<14x4xf32> to vector<14x1xf32>
    %570 = vector.broadcast %568 : vector<1x4xf32> to vector<14x4xf32>
    %571 = arith.mulf %566, %570 : vector<14x4xf32>
    %cst_173 = arith.constant dense<0.000000e+00> : vector<14xf32>
    %572 = vector.multi_reduction <add>, %571, %cst_173 [1] : vector<14x4xf32> to vector<14xf32>
    %573 = vector.shape_cast %572 : vector<14xf32> to vector<14x1xf32>
    %574 = arith.mulf %569, %573 : vector<14x1xf32>
    %575 = arith.addf %567, %574 : vector<14x1xf32>
    %576 = vector.extract_strided_slice %525 {offsets = [4, 0], sizes = [1, 4], strides = [1, 1]} : vector<11x4xf32> to vector<1x4xf32>
    %577 = vector.extract_strided_slice %565 {offsets = [0, 1], sizes = [14, 1], strides = [1, 1]} : vector<14x4xf32> to vector<14x1xf32>
    %578 = vector.broadcast %576 : vector<1x4xf32> to vector<14x4xf32>
    %579 = arith.mulf %566, %578 : vector<14x4xf32>
    %cst_174 = arith.constant dense<0.000000e+00> : vector<14xf32>
    %580 = vector.multi_reduction <add>, %579, %cst_174 [1] : vector<14x4xf32> to vector<14xf32>
    %581 = vector.shape_cast %580 : vector<14xf32> to vector<14x1xf32>
    %582 = arith.mulf %577, %581 : vector<14x1xf32>
    %583 = arith.addf %575, %582 : vector<14x1xf32>
    %584 = vector.extract_strided_slice %525 {offsets = [5, 0], sizes = [1, 4], strides = [1, 1]} : vector<11x4xf32> to vector<1x4xf32>
    %585 = vector.extract_strided_slice %565 {offsets = [0, 2], sizes = [14, 1], strides = [1, 1]} : vector<14x4xf32> to vector<14x1xf32>
    %586 = vector.broadcast %584 : vector<1x4xf32> to vector<14x4xf32>
    %587 = arith.mulf %566, %586 : vector<14x4xf32>
    %cst_175 = arith.constant dense<0.000000e+00> : vector<14xf32>
    %588 = vector.multi_reduction <add>, %587, %cst_175 [1] : vector<14x4xf32> to vector<14xf32>
    %589 = vector.shape_cast %588 : vector<14xf32> to vector<14x1xf32>
    %590 = arith.mulf %585, %589 : vector<14x1xf32>
    %591 = arith.addf %583, %590 : vector<14x1xf32>
    %592 = vector.extract_strided_slice %525 {offsets = [6, 0], sizes = [1, 4], strides = [1, 1]} : vector<11x4xf32> to vector<1x4xf32>
    %593 = vector.extract_strided_slice %565 {offsets = [0, 3], sizes = [14, 1], strides = [1, 1]} : vector<14x4xf32> to vector<14x1xf32>
    %594 = vector.broadcast %592 : vector<1x4xf32> to vector<14x4xf32>
    %595 = arith.mulf %566, %594 : vector<14x4xf32>
    %cst_176 = arith.constant dense<0.000000e+00> : vector<14xf32>
    %596 = vector.multi_reduction <add>, %595, %cst_176 [1] : vector<14x4xf32> to vector<14xf32>
    %597 = vector.shape_cast %596 : vector<14xf32> to vector<14x1xf32>
    %598 = arith.mulf %593, %597 : vector<14x1xf32>
    %599 = arith.addf %591, %598 : vector<14x1xf32>
    %600 = vector.extract_strided_slice %544 {offsets = [2, 0], sizes = [14, 1], strides = [1, 1]} : vector<16x1xf32> to vector<14x1xf32>
    %601 = arith.addf %564, %599 : vector<14x1xf32>
    %602 = arith.mulf %600, %601 : vector<14x1xf32>
    %cst_177 = arith.constant dense<0.000000e+00> : vector<1xf32>
    %603 = vector.multi_reduction <add>, %602, %cst_177 [0] : vector<14x1xf32> to vector<1xf32>
    %604 = vector.shape_cast %603 : vector<1xf32> to vector<1x1xf32>
    %605 = vector.broadcast %528 : vector<1x4xf32> to vector<16x4xf32>
    %606 = arith.mulf %550, %605 : vector<16x4xf32>
    %cst_178 = arith.constant dense<0.000000e+00> : vector<16xf32>
    %607 = vector.multi_reduction <add>, %606, %cst_178 [1] : vector<16x4xf32> to vector<16xf32>
    %608 = vector.shape_cast %607 : vector<16xf32> to vector<16x1xf32>
    %609 = vector.extract_strided_slice %544 {offsets = [0, 0], sizes = [14, 1], strides = [1, 1]} : vector<16x1xf32> to vector<14x1xf32>
    %610 = vector.extract_strided_slice %544 {offsets = [2, 0], sizes = [14, 1], strides = [1, 1]} : vector<16x1xf32> to vector<14x1xf32>
    %611 = arith.subf %609, %610 : vector<14x1xf32>
    %612 = vector.extract_strided_slice %608 {offsets = [0, 0], sizes = [14, 1], strides = [1, 1]} : vector<16x1xf32> to vector<14x1xf32>
    %613 = arith.mulf %611, %612 : vector<14x1xf32>
    %cst_179 = arith.constant dense<0.000000e+00> : vector<1xf32>
    %614 = vector.multi_reduction <add>, %613, %cst_179 [0] : vector<14x1xf32> to vector<1xf32>
    %615 = vector.shape_cast %614 : vector<1xf32> to vector<1x1xf32>
    %616 = vector.extract_strided_slice %544 {offsets = [14, 0], sizes = [2, 1], strides = [1, 1]} : vector<16x1xf32> to vector<2x1xf32>
    %617 = vector.extract_strided_slice %608 {offsets = [14, 0], sizes = [2, 1], strides = [1, 1]} : vector<16x1xf32> to vector<2x1xf32>
    %618 = arith.mulf %616, %617 : vector<2x1xf32>
    %cst_180 = arith.constant dense<0.000000e+00> : vector<1xf32>
    %619 = vector.multi_reduction <add>, %618, %cst_180 [0] : vector<2x1xf32> to vector<1xf32>
    %620 = vector.shape_cast %619 : vector<1xf32> to vector<1x1xf32>
    %621 = arith.addf %615, %620 : vector<1x1xf32>
    %622 = arith.addf %559, %604 : vector<1x1xf32>
    %623 = arith.addf %622, %621 : vector<1x1xf32>
    %624 = vector.extract_strided_slice %543 {offsets = [0, 0], sizes = [2, 4], strides = [1, 1]} : vector<16x4xf32> to vector<2x4xf32>
    %625 = vector.broadcast %527 : vector<1x4xf32> to vector<2x4xf32>
    %626 = arith.addf %625, %624 : vector<2x4xf32>
    %627 = vector.extract_strided_slice %543 {offsets = [2, 0], sizes = [2, 4], strides = [1, 1]} : vector<16x4xf32> to vector<2x4xf32>
    %628 = vector.extract_strided_slice %525 {offsets = [7, 0], sizes = [1, 4], strides = [1, 1]} : vector<11x4xf32> to vector<1x4xf32>
    %629 = vector.broadcast %628 : vector<1x4xf32> to vector<2x4xf32>
    %630 = arith.addf %626, %629 : vector<2x4xf32>
    %cst_181 = arith.constant dense<0xFF800000> : vector<2xf32>
    %631 = vector.multi_reduction <maximumf>, %630, %cst_181 [1] : vector<2x4xf32> to vector<2xf32>
    %632 = vector.shape_cast %631 : vector<2xf32> to vector<2x1xf32>
    %633 = vector.broadcast %632 : vector<2x1xf32> to vector<2x4xf32>
    %634 = arith.subf %630, %633 : vector<2x4xf32>
    %635 = math.exp %634 : vector<2x4xf32>
    %cst_182 = arith.constant dense<0.000000e+00> : vector<2xf32>
    %636 = vector.multi_reduction <add>, %635, %cst_182 [1] : vector<2x4xf32> to vector<2xf32>
    %637 = vector.shape_cast %636 : vector<2xf32> to vector<2x1xf32>
    %638 = math.log %637 : vector<2x1xf32>
    %639 = arith.addf %632, %638 : vector<2x1xf32>
    %640 = vector.extract_strided_slice %525 {offsets = [8, 0], sizes = [1, 4], strides = [1, 1]} : vector<11x4xf32> to vector<1x4xf32>
    %641 = vector.broadcast %640 : vector<1x4xf32> to vector<2x4xf32>
    %642 = arith.addf %626, %641 : vector<2x4xf32>
    %cst_183 = arith.constant dense<0xFF800000> : vector<2xf32>
    %643 = vector.multi_reduction <maximumf>, %642, %cst_183 [1] : vector<2x4xf32> to vector<2xf32>
    %644 = vector.shape_cast %643 : vector<2xf32> to vector<2x1xf32>
    %645 = vector.broadcast %644 : vector<2x1xf32> to vector<2x4xf32>
    %646 = arith.subf %642, %645 : vector<2x4xf32>
    %647 = math.exp %646 : vector<2x4xf32>
    %cst_184 = arith.constant dense<0.000000e+00> : vector<2xf32>
    %648 = vector.multi_reduction <add>, %647, %cst_184 [1] : vector<2x4xf32> to vector<2xf32>
    %649 = vector.shape_cast %648 : vector<2xf32> to vector<2x1xf32>
    %650 = math.log %649 : vector<2x1xf32>
    %651 = arith.addf %644, %650 : vector<2x1xf32>
    %652 = vector.extract_strided_slice %525 {offsets = [9, 0], sizes = [1, 4], strides = [1, 1]} : vector<11x4xf32> to vector<1x4xf32>
    %653 = vector.broadcast %652 : vector<1x4xf32> to vector<2x4xf32>
    %654 = arith.addf %626, %653 : vector<2x4xf32>
    %cst_185 = arith.constant dense<0xFF800000> : vector<2xf32>
    %655 = vector.multi_reduction <maximumf>, %654, %cst_185 [1] : vector<2x4xf32> to vector<2xf32>
    %656 = vector.shape_cast %655 : vector<2xf32> to vector<2x1xf32>
    %657 = vector.broadcast %656 : vector<2x1xf32> to vector<2x4xf32>
    %658 = arith.subf %654, %657 : vector<2x4xf32>
    %659 = math.exp %658 : vector<2x4xf32>
    %cst_186 = arith.constant dense<0.000000e+00> : vector<2xf32>
    %660 = vector.multi_reduction <add>, %659, %cst_186 [1] : vector<2x4xf32> to vector<2xf32>
    %661 = vector.shape_cast %660 : vector<2xf32> to vector<2x1xf32>
    %662 = math.log %661 : vector<2x1xf32>
    %663 = arith.addf %656, %662 : vector<2x1xf32>
    %664 = vector.extract_strided_slice %525 {offsets = [10, 0], sizes = [1, 4], strides = [1, 1]} : vector<11x4xf32> to vector<1x4xf32>
    %665 = vector.broadcast %664 : vector<1x4xf32> to vector<2x4xf32>
    %666 = arith.addf %626, %665 : vector<2x4xf32>
    %cst_187 = arith.constant dense<0xFF800000> : vector<2xf32>
    %667 = vector.multi_reduction <maximumf>, %666, %cst_187 [1] : vector<2x4xf32> to vector<2xf32>
    %668 = vector.shape_cast %667 : vector<2xf32> to vector<2x1xf32>
    %669 = vector.broadcast %668 : vector<2x1xf32> to vector<2x4xf32>
    %670 = arith.subf %666, %669 : vector<2x4xf32>
    %671 = math.exp %670 : vector<2x4xf32>
    %cst_188 = arith.constant dense<0.000000e+00> : vector<2xf32>
    %672 = vector.multi_reduction <add>, %671, %cst_188 [1] : vector<2x4xf32> to vector<2xf32>
    %673 = vector.shape_cast %672 : vector<2xf32> to vector<2x1xf32>
    %674 = math.log %673 : vector<2x1xf32>
    %675 = arith.addf %668, %674 : vector<2x1xf32>
    %676 = tpu.concatenate %639, %651, %663, %675 in 1 : vector<2x1xf32>, vector<2x1xf32>, vector<2x1xf32>, vector<2x1xf32> -> vector<2x4xf32>
    %677 = arith.addf %676, %627 : vector<2x4xf32>
    %678 = vector.extract_strided_slice %544 {offsets = [2, 0], sizes = [2, 1], strides = [1, 1]} : vector<16x1xf32> to vector<2x1xf32>
    %679 = vector.broadcast %678 : vector<2x1xf32> to vector<2x4xf32>
    %680 = arith.mulf %679, %677 : vector<2x4xf32>
    %cst_189 = arith.constant 1.000000e+00 : f32
    %681 = vector.broadcast %cst_189 : f32 to vector<2x1xf32>
    %682 = arith.subf %681, %678 : vector<2x1xf32>
    %683 = vector.broadcast %682 : vector<2x1xf32> to vector<2x4xf32>
    %684 = arith.mulf %683, %626 : vector<2x4xf32>
    %685 = arith.addf %680, %684 : vector<2x4xf32>
    %686 = vector.extract_strided_slice %543 {offsets = [4, 0], sizes = [2, 4], strides = [1, 1]} : vector<16x4xf32> to vector<2x4xf32>
    %687 = vector.extract_strided_slice %525 {offsets = [7, 0], sizes = [1, 4], strides = [1, 1]} : vector<11x4xf32> to vector<1x4xf32>
    %688 = vector.broadcast %687 : vector<1x4xf32> to vector<2x4xf32>
    %689 = arith.addf %685, %688 : vector<2x4xf32>
    %cst_190 = arith.constant dense<0xFF800000> : vector<2xf32>
    %690 = vector.multi_reduction <maximumf>, %689, %cst_190 [1] : vector<2x4xf32> to vector<2xf32>
    %691 = vector.shape_cast %690 : vector<2xf32> to vector<2x1xf32>
    %692 = vector.broadcast %691 : vector<2x1xf32> to vector<2x4xf32>
    %693 = arith.subf %689, %692 : vector<2x4xf32>
    %694 = math.exp %693 : vector<2x4xf32>
    %cst_191 = arith.constant dense<0.000000e+00> : vector<2xf32>
    %695 = vector.multi_reduction <add>, %694, %cst_191 [1] : vector<2x4xf32> to vector<2xf32>
    %696 = vector.shape_cast %695 : vector<2xf32> to vector<2x1xf32>
    %697 = math.log %696 : vector<2x1xf32>
    %698 = arith.addf %691, %697 : vector<2x1xf32>
    %699 = vector.extract_strided_slice %525 {offsets = [8, 0], sizes = [1, 4], strides = [1, 1]} : vector<11x4xf32> to vector<1x4xf32>
    %700 = vector.broadcast %699 : vector<1x4xf32> to vector<2x4xf32>
    %701 = arith.addf %685, %700 : vector<2x4xf32>
    %cst_192 = arith.constant dense<0xFF800000> : vector<2xf32>
    %702 = vector.multi_reduction <maximumf>, %701, %cst_192 [1] : vector<2x4xf32> to vector<2xf32>
    %703 = vector.shape_cast %702 : vector<2xf32> to vector<2x1xf32>
    %704 = vector.broadcast %703 : vector<2x1xf32> to vector<2x4xf32>
    %705 = arith.subf %701, %704 : vector<2x4xf32>
    %706 = math.exp %705 : vector<2x4xf32>
    %cst_193 = arith.constant dense<0.000000e+00> : vector<2xf32>
    %707 = vector.multi_reduction <add>, %706, %cst_193 [1] : vector<2x4xf32> to vector<2xf32>
    %708 = vector.shape_cast %707 : vector<2xf32> to vector<2x1xf32>
    %709 = math.log %708 : vector<2x1xf32>
    %710 = arith.addf %703, %709 : vector<2x1xf32>
    %711 = vector.extract_strided_slice %525 {offsets = [9, 0], sizes = [1, 4], strides = [1, 1]} : vector<11x4xf32> to vector<1x4xf32>
    %712 = vector.broadcast %711 : vector<1x4xf32> to vector<2x4xf32>
    %713 = arith.addf %685, %712 : vector<2x4xf32>
    %cst_194 = arith.constant dense<0xFF800000> : vector<2xf32>
    %714 = vector.multi_reduction <maximumf>, %713, %cst_194 [1] : vector<2x4xf32> to vector<2xf32>
    %715 = vector.shape_cast %714 : vector<2xf32> to vector<2x1xf32>
    %716 = vector.broadcast %715 : vector<2x1xf32> to vector<2x4xf32>
    %717 = arith.subf %713, %716 : vector<2x4xf32>
    %718 = math.exp %717 : vector<2x4xf32>
    %cst_195 = arith.constant dense<0.000000e+00> : vector<2xf32>
    %719 = vector.multi_reduction <add>, %718, %cst_195 [1] : vector<2x4xf32> to vector<2xf32>
    %720 = vector.shape_cast %719 : vector<2xf32> to vector<2x1xf32>
    %721 = math.log %720 : vector<2x1xf32>
    %722 = arith.addf %715, %721 : vector<2x1xf32>
    %723 = vector.extract_strided_slice %525 {offsets = [10, 0], sizes = [1, 4], strides = [1, 1]} : vector<11x4xf32> to vector<1x4xf32>
    %724 = vector.broadcast %723 : vector<1x4xf32> to vector<2x4xf32>
    %725 = arith.addf %685, %724 : vector<2x4xf32>
    %cst_196 = arith.constant dense<0xFF800000> : vector<2xf32>
    %726 = vector.multi_reduction <maximumf>, %725, %cst_196 [1] : vector<2x4xf32> to vector<2xf32>
    %727 = vector.shape_cast %726 : vector<2xf32> to vector<2x1xf32>
    %728 = vector.broadcast %727 : vector<2x1xf32> to vector<2x4xf32>
    %729 = arith.subf %725, %728 : vector<2x4xf32>
    %730 = math.exp %729 : vector<2x4xf32>
    %cst_197 = arith.constant dense<0.000000e+00> : vector<2xf32>
    %731 = vector.multi_reduction <add>, %730, %cst_197 [1] : vector<2x4xf32> to vector<2xf32>
    %732 = vector.shape_cast %731 : vector<2xf32> to vector<2x1xf32>
    %733 = math.log %732 : vector<2x1xf32>
    %734 = arith.addf %727, %733 : vector<2x1xf32>
    %735 = tpu.concatenate %698, %710, %722, %734 in 1 : vector<2x1xf32>, vector<2x1xf32>, vector<2x1xf32>, vector<2x1xf32> -> vector<2x4xf32>
    %736 = arith.addf %735, %686 : vector<2x4xf32>
    %737 = vector.extract_strided_slice %544 {offsets = [4, 0], sizes = [2, 1], strides = [1, 1]} : vector<16x1xf32> to vector<2x1xf32>
    %738 = vector.broadcast %737 : vector<2x1xf32> to vector<2x4xf32>
    %739 = arith.mulf %738, %736 : vector<2x4xf32>
    %cst_198 = arith.constant 1.000000e+00 : f32
    %740 = vector.broadcast %cst_198 : f32 to vector<2x1xf32>
    %741 = arith.subf %740, %737 : vector<2x1xf32>
    %742 = vector.broadcast %741 : vector<2x1xf32> to vector<2x4xf32>
    %743 = arith.mulf %742, %685 : vector<2x4xf32>
    %744 = arith.addf %739, %743 : vector<2x4xf32>
    %745 = vector.extract_strided_slice %543 {offsets = [6, 0], sizes = [2, 4], strides = [1, 1]} : vector<16x4xf32> to vector<2x4xf32>
    %746 = vector.extract_strided_slice %525 {offsets = [7, 0], sizes = [1, 4], strides = [1, 1]} : vector<11x4xf32> to vector<1x4xf32>
    %747 = vector.broadcast %746 : vector<1x4xf32> to vector<2x4xf32>
    %748 = arith.addf %744, %747 : vector<2x4xf32>
    %cst_199 = arith.constant dense<0xFF800000> : vector<2xf32>
    %749 = vector.multi_reduction <maximumf>, %748, %cst_199 [1] : vector<2x4xf32> to vector<2xf32>
    %750 = vector.shape_cast %749 : vector<2xf32> to vector<2x1xf32>
    %751 = vector.broadcast %750 : vector<2x1xf32> to vector<2x4xf32>
    %752 = arith.subf %748, %751 : vector<2x4xf32>
    %753 = math.exp %752 : vector<2x4xf32>
    %cst_200 = arith.constant dense<0.000000e+00> : vector<2xf32>
    %754 = vector.multi_reduction <add>, %753, %cst_200 [1] : vector<2x4xf32> to vector<2xf32>
    %755 = vector.shape_cast %754 : vector<2xf32> to vector<2x1xf32>
    %756 = math.log %755 : vector<2x1xf32>
    %757 = arith.addf %750, %756 : vector<2x1xf32>
    %758 = vector.extract_strided_slice %525 {offsets = [8, 0], sizes = [1, 4], strides = [1, 1]} : vector<11x4xf32> to vector<1x4xf32>
    %759 = vector.broadcast %758 : vector<1x4xf32> to vector<2x4xf32>
    %760 = arith.addf %744, %759 : vector<2x4xf32>
    %cst_201 = arith.constant dense<0xFF800000> : vector<2xf32>
    %761 = vector.multi_reduction <maximumf>, %760, %cst_201 [1] : vector<2x4xf32> to vector<2xf32>
    %762 = vector.shape_cast %761 : vector<2xf32> to vector<2x1xf32>
    %763 = vector.broadcast %762 : vector<2x1xf32> to vector<2x4xf32>
    %764 = arith.subf %760, %763 : vector<2x4xf32>
    %765 = math.exp %764 : vector<2x4xf32>
    %cst_202 = arith.constant dense<0.000000e+00> : vector<2xf32>
    %766 = vector.multi_reduction <add>, %765, %cst_202 [1] : vector<2x4xf32> to vector<2xf32>
    %767 = vector.shape_cast %766 : vector<2xf32> to vector<2x1xf32>
    %768 = math.log %767 : vector<2x1xf32>
    %769 = arith.addf %762, %768 : vector<2x1xf32>
    %770 = vector.extract_strided_slice %525 {offsets = [9, 0], sizes = [1, 4], strides = [1, 1]} : vector<11x4xf32> to vector<1x4xf32>
    %771 = vector.broadcast %770 : vector<1x4xf32> to vector<2x4xf32>
    %772 = arith.addf %744, %771 : vector<2x4xf32>
    %cst_203 = arith.constant dense<0xFF800000> : vector<2xf32>
    %773 = vector.multi_reduction <maximumf>, %772, %cst_203 [1] : vector<2x4xf32> to vector<2xf32>
    %774 = vector.shape_cast %773 : vector<2xf32> to vector<2x1xf32>
    %775 = vector.broadcast %774 : vector<2x1xf32> to vector<2x4xf32>
    %776 = arith.subf %772, %775 : vector<2x4xf32>
    %777 = math.exp %776 : vector<2x4xf32>
    %cst_204 = arith.constant dense<0.000000e+00> : vector<2xf32>
    %778 = vector.multi_reduction <add>, %777, %cst_204 [1] : vector<2x4xf32> to vector<2xf32>
    %779 = vector.shape_cast %778 : vector<2xf32> to vector<2x1xf32>
    %780 = math.log %779 : vector<2x1xf32>
    %781 = arith.addf %774, %780 : vector<2x1xf32>
    %782 = vector.extract_strided_slice %525 {offsets = [10, 0], sizes = [1, 4], strides = [1, 1]} : vector<11x4xf32> to vector<1x4xf32>
    %783 = vector.broadcast %782 : vector<1x4xf32> to vector<2x4xf32>
    %784 = arith.addf %744, %783 : vector<2x4xf32>
    %cst_205 = arith.constant dense<0xFF800000> : vector<2xf32>
    %785 = vector.multi_reduction <maximumf>, %784, %cst_205 [1] : vector<2x4xf32> to vector<2xf32>
    %786 = vector.shape_cast %785 : vector<2xf32> to vector<2x1xf32>
    %787 = vector.broadcast %786 : vector<2x1xf32> to vector<2x4xf32>
    %788 = arith.subf %784, %787 : vector<2x4xf32>
    %789 = math.exp %788 : vector<2x4xf32>
    %cst_206 = arith.constant dense<0.000000e+00> : vector<2xf32>
    %790 = vector.multi_reduction <add>, %789, %cst_206 [1] : vector<2x4xf32> to vector<2xf32>
    %791 = vector.shape_cast %790 : vector<2xf32> to vector<2x1xf32>
    %792 = math.log %791 : vector<2x1xf32>
    %793 = arith.addf %786, %792 : vector<2x1xf32>
    %794 = tpu.concatenate %757, %769, %781, %793 in 1 : vector<2x1xf32>, vector<2x1xf32>, vector<2x1xf32>, vector<2x1xf32> -> vector<2x4xf32>
    %795 = arith.addf %794, %745 : vector<2x4xf32>
    %796 = vector.extract_strided_slice %544 {offsets = [6, 0], sizes = [2, 1], strides = [1, 1]} : vector<16x1xf32> to vector<2x1xf32>
    %797 = vector.broadcast %796 : vector<2x1xf32> to vector<2x4xf32>
    %798 = arith.mulf %797, %795 : vector<2x4xf32>
    %cst_207 = arith.constant 1.000000e+00 : f32
    %799 = vector.broadcast %cst_207 : f32 to vector<2x1xf32>
    %800 = arith.subf %799, %796 : vector<2x1xf32>
    %801 = vector.broadcast %800 : vector<2x1xf32> to vector<2x4xf32>
    %802 = arith.mulf %801, %744 : vector<2x4xf32>
    %803 = arith.addf %798, %802 : vector<2x4xf32>
    %804 = vector.extract_strided_slice %543 {offsets = [8, 0], sizes = [2, 4], strides = [1, 1]} : vector<16x4xf32> to vector<2x4xf32>
    %805 = vector.extract_strided_slice %525 {offsets = [7, 0], sizes = [1, 4], strides = [1, 1]} : vector<11x4xf32> to vector<1x4xf32>
    %806 = vector.broadcast %805 : vector<1x4xf32> to vector<2x4xf32>
    %807 = arith.addf %803, %806 : vector<2x4xf32>
    %cst_208 = arith.constant dense<0xFF800000> : vector<2xf32>
    %808 = vector.multi_reduction <maximumf>, %807, %cst_208 [1] : vector<2x4xf32> to vector<2xf32>
    %809 = vector.shape_cast %808 : vector<2xf32> to vector<2x1xf32>
    %810 = vector.broadcast %809 : vector<2x1xf32> to vector<2x4xf32>
    %811 = arith.subf %807, %810 : vector<2x4xf32>
    %812 = math.exp %811 : vector<2x4xf32>
    %cst_209 = arith.constant dense<0.000000e+00> : vector<2xf32>
    %813 = vector.multi_reduction <add>, %812, %cst_209 [1] : vector<2x4xf32> to vector<2xf32>
    %814 = vector.shape_cast %813 : vector<2xf32> to vector<2x1xf32>
    %815 = math.log %814 : vector<2x1xf32>
    %816 = arith.addf %809, %815 : vector<2x1xf32>
    %817 = vector.extract_strided_slice %525 {offsets = [8, 0], sizes = [1, 4], strides = [1, 1]} : vector<11x4xf32> to vector<1x4xf32>
    %818 = vector.broadcast %817 : vector<1x4xf32> to vector<2x4xf32>
    %819 = arith.addf %803, %818 : vector<2x4xf32>
    %cst_210 = arith.constant dense<0xFF800000> : vector<2xf32>
    %820 = vector.multi_reduction <maximumf>, %819, %cst_210 [1] : vector<2x4xf32> to vector<2xf32>
    %821 = vector.shape_cast %820 : vector<2xf32> to vector<2x1xf32>
    %822 = vector.broadcast %821 : vector<2x1xf32> to vector<2x4xf32>
    %823 = arith.subf %819, %822 : vector<2x4xf32>
    %824 = math.exp %823 : vector<2x4xf32>
    %cst_211 = arith.constant dense<0.000000e+00> : vector<2xf32>
    %825 = vector.multi_reduction <add>, %824, %cst_211 [1] : vector<2x4xf32> to vector<2xf32>
    %826 = vector.shape_cast %825 : vector<2xf32> to vector<2x1xf32>
    %827 = math.log %826 : vector<2x1xf32>
    %828 = arith.addf %821, %827 : vector<2x1xf32>
    %829 = vector.extract_strided_slice %525 {offsets = [9, 0], sizes = [1, 4], strides = [1, 1]} : vector<11x4xf32> to vector<1x4xf32>
    %830 = vector.broadcast %829 : vector<1x4xf32> to vector<2x4xf32>
    %831 = arith.addf %803, %830 : vector<2x4xf32>
    %cst_212 = arith.constant dense<0xFF800000> : vector<2xf32>
    %832 = vector.multi_reduction <maximumf>, %831, %cst_212 [1] : vector<2x4xf32> to vector<2xf32>
    %833 = vector.shape_cast %832 : vector<2xf32> to vector<2x1xf32>
    %834 = vector.broadcast %833 : vector<2x1xf32> to vector<2x4xf32>
    %835 = arith.subf %831, %834 : vector<2x4xf32>
    %836 = math.exp %835 : vector<2x4xf32>
    %cst_213 = arith.constant dense<0.000000e+00> : vector<2xf32>
    %837 = vector.multi_reduction <add>, %836, %cst_213 [1] : vector<2x4xf32> to vector<2xf32>
    %838 = vector.shape_cast %837 : vector<2xf32> to vector<2x1xf32>
    %839 = math.log %838 : vector<2x1xf32>
    %840 = arith.addf %833, %839 : vector<2x1xf32>
    %841 = vector.extract_strided_slice %525 {offsets = [10, 0], sizes = [1, 4], strides = [1, 1]} : vector<11x4xf32> to vector<1x4xf32>
    %842 = vector.broadcast %841 : vector<1x4xf32> to vector<2x4xf32>
    %843 = arith.addf %803, %842 : vector<2x4xf32>
    %cst_214 = arith.constant dense<0xFF800000> : vector<2xf32>
    %844 = vector.multi_reduction <maximumf>, %843, %cst_214 [1] : vector<2x4xf32> to vector<2xf32>
    %845 = vector.shape_cast %844 : vector<2xf32> to vector<2x1xf32>
    %846 = vector.broadcast %845 : vector<2x1xf32> to vector<2x4xf32>
    %847 = arith.subf %843, %846 : vector<2x4xf32>
    %848 = math.exp %847 : vector<2x4xf32>
    %cst_215 = arith.constant dense<0.000000e+00> : vector<2xf32>
    %849 = vector.multi_reduction <add>, %848, %cst_215 [1] : vector<2x4xf32> to vector<2xf32>
    %850 = vector.shape_cast %849 : vector<2xf32> to vector<2x1xf32>
    %851 = math.log %850 : vector<2x1xf32>
    %852 = arith.addf %845, %851 : vector<2x1xf32>
    %853 = tpu.concatenate %816, %828, %840, %852 in 1 : vector<2x1xf32>, vector<2x1xf32>, vector<2x1xf32>, vector<2x1xf32> -> vector<2x4xf32>
    %854 = arith.addf %853, %804 : vector<2x4xf32>
    %855 = vector.extract_strided_slice %544 {offsets = [8, 0], sizes = [2, 1], strides = [1, 1]} : vector<16x1xf32> to vector<2x1xf32>
    %856 = vector.broadcast %855 : vector<2x1xf32> to vector<2x4xf32>
    %857 = arith.mulf %856, %854 : vector<2x4xf32>
    %cst_216 = arith.constant 1.000000e+00 : f32
    %858 = vector.broadcast %cst_216 : f32 to vector<2x1xf32>
    %859 = arith.subf %858, %855 : vector<2x1xf32>
    %860 = vector.broadcast %859 : vector<2x1xf32> to vector<2x4xf32>
    %861 = arith.mulf %860, %803 : vector<2x4xf32>
    %862 = arith.addf %857, %861 : vector<2x4xf32>
    %863 = vector.extract_strided_slice %543 {offsets = [10, 0], sizes = [2, 4], strides = [1, 1]} : vector<16x4xf32> to vector<2x4xf32>
    %864 = vector.extract_strided_slice %525 {offsets = [7, 0], sizes = [1, 4], strides = [1, 1]} : vector<11x4xf32> to vector<1x4xf32>
    %865 = vector.broadcast %864 : vector<1x4xf32> to vector<2x4xf32>
    %866 = arith.addf %862, %865 : vector<2x4xf32>
    %cst_217 = arith.constant dense<0xFF800000> : vector<2xf32>
    %867 = vector.multi_reduction <maximumf>, %866, %cst_217 [1] : vector<2x4xf32> to vector<2xf32>
    %868 = vector.shape_cast %867 : vector<2xf32> to vector<2x1xf32>
    %869 = vector.broadcast %868 : vector<2x1xf32> to vector<2x4xf32>
    %870 = arith.subf %866, %869 : vector<2x4xf32>
    %871 = math.exp %870 : vector<2x4xf32>
    %cst_218 = arith.constant dense<0.000000e+00> : vector<2xf32>
    %872 = vector.multi_reduction <add>, %871, %cst_218 [1] : vector<2x4xf32> to vector<2xf32>
    %873 = vector.shape_cast %872 : vector<2xf32> to vector<2x1xf32>
    %874 = math.log %873 : vector<2x1xf32>
    %875 = arith.addf %868, %874 : vector<2x1xf32>
    %876 = vector.extract_strided_slice %525 {offsets = [8, 0], sizes = [1, 4], strides = [1, 1]} : vector<11x4xf32> to vector<1x4xf32>
    %877 = vector.broadcast %876 : vector<1x4xf32> to vector<2x4xf32>
    %878 = arith.addf %862, %877 : vector<2x4xf32>
    %cst_219 = arith.constant dense<0xFF800000> : vector<2xf32>
    %879 = vector.multi_reduction <maximumf>, %878, %cst_219 [1] : vector<2x4xf32> to vector<2xf32>
    %880 = vector.shape_cast %879 : vector<2xf32> to vector<2x1xf32>
    %881 = vector.broadcast %880 : vector<2x1xf32> to vector<2x4xf32>
    %882 = arith.subf %878, %881 : vector<2x4xf32>
    %883 = math.exp %882 : vector<2x4xf32>
    %cst_220 = arith.constant dense<0.000000e+00> : vector<2xf32>
    %884 = vector.multi_reduction <add>, %883, %cst_220 [1] : vector<2x4xf32> to vector<2xf32>
    %885 = vector.shape_cast %884 : vector<2xf32> to vector<2x1xf32>
    %886 = math.log %885 : vector<2x1xf32>
    %887 = arith.addf %880, %886 : vector<2x1xf32>
    %888 = vector.extract_strided_slice %525 {offsets = [9, 0], sizes = [1, 4], strides = [1, 1]} : vector<11x4xf32> to vector<1x4xf32>
    %889 = vector.broadcast %888 : vector<1x4xf32> to vector<2x4xf32>
    %890 = arith.addf %862, %889 : vector<2x4xf32>
    %cst_221 = arith.constant dense<0xFF800000> : vector<2xf32>
    %891 = vector.multi_reduction <maximumf>, %890, %cst_221 [1] : vector<2x4xf32> to vector<2xf32>
    %892 = vector.shape_cast %891 : vector<2xf32> to vector<2x1xf32>
    %893 = vector.broadcast %892 : vector<2x1xf32> to vector<2x4xf32>
    %894 = arith.subf %890, %893 : vector<2x4xf32>
    %895 = math.exp %894 : vector<2x4xf32>
    %cst_222 = arith.constant dense<0.000000e+00> : vector<2xf32>
    %896 = vector.multi_reduction <add>, %895, %cst_222 [1] : vector<2x4xf32> to vector<2xf32>
    %897 = vector.shape_cast %896 : vector<2xf32> to vector<2x1xf32>
    %898 = math.log %897 : vector<2x1xf32>
    %899 = arith.addf %892, %898 : vector<2x1xf32>
    %900 = vector.extract_strided_slice %525 {offsets = [10, 0], sizes = [1, 4], strides = [1, 1]} : vector<11x4xf32> to vector<1x4xf32>
    %901 = vector.broadcast %900 : vector<1x4xf32> to vector<2x4xf32>
    %902 = arith.addf %862, %901 : vector<2x4xf32>
    %cst_223 = arith.constant dense<0xFF800000> : vector<2xf32>
    %903 = vector.multi_reduction <maximumf>, %902, %cst_223 [1] : vector<2x4xf32> to vector<2xf32>
    %904 = vector.shape_cast %903 : vector<2xf32> to vector<2x1xf32>
    %905 = vector.broadcast %904 : vector<2x1xf32> to vector<2x4xf32>
    %906 = arith.subf %902, %905 : vector<2x4xf32>
    %907 = math.exp %906 : vector<2x4xf32>
    %cst_224 = arith.constant dense<0.000000e+00> : vector<2xf32>
    %908 = vector.multi_reduction <add>, %907, %cst_224 [1] : vector<2x4xf32> to vector<2xf32>
    %909 = vector.shape_cast %908 : vector<2xf32> to vector<2x1xf32>
    %910 = math.log %909 : vector<2x1xf32>
    %911 = arith.addf %904, %910 : vector<2x1xf32>
    %912 = tpu.concatenate %875, %887, %899, %911 in 1 : vector<2x1xf32>, vector<2x1xf32>, vector<2x1xf32>, vector<2x1xf32> -> vector<2x4xf32>
    %913 = arith.addf %912, %863 : vector<2x4xf32>
    %914 = vector.extract_strided_slice %544 {offsets = [10, 0], sizes = [2, 1], strides = [1, 1]} : vector<16x1xf32> to vector<2x1xf32>
    %915 = vector.broadcast %914 : vector<2x1xf32> to vector<2x4xf32>
    %916 = arith.mulf %915, %913 : vector<2x4xf32>
    %cst_225 = arith.constant 1.000000e+00 : f32
    %917 = vector.broadcast %cst_225 : f32 to vector<2x1xf32>
    %918 = arith.subf %917, %914 : vector<2x1xf32>
    %919 = vector.broadcast %918 : vector<2x1xf32> to vector<2x4xf32>
    %920 = arith.mulf %919, %862 : vector<2x4xf32>
    %921 = arith.addf %916, %920 : vector<2x4xf32>
    %922 = vector.extract_strided_slice %543 {offsets = [12, 0], sizes = [2, 4], strides = [1, 1]} : vector<16x4xf32> to vector<2x4xf32>
    %923 = vector.extract_strided_slice %525 {offsets = [7, 0], sizes = [1, 4], strides = [1, 1]} : vector<11x4xf32> to vector<1x4xf32>
    %924 = vector.broadcast %923 : vector<1x4xf32> to vector<2x4xf32>
    %925 = arith.addf %921, %924 : vector<2x4xf32>
    %cst_226 = arith.constant dense<0xFF800000> : vector<2xf32>
    %926 = vector.multi_reduction <maximumf>, %925, %cst_226 [1] : vector<2x4xf32> to vector<2xf32>
    %927 = vector.shape_cast %926 : vector<2xf32> to vector<2x1xf32>
    %928 = vector.broadcast %927 : vector<2x1xf32> to vector<2x4xf32>
    %929 = arith.subf %925, %928 : vector<2x4xf32>
    %930 = math.exp %929 : vector<2x4xf32>
    %cst_227 = arith.constant dense<0.000000e+00> : vector<2xf32>
    %931 = vector.multi_reduction <add>, %930, %cst_227 [1] : vector<2x4xf32> to vector<2xf32>
    %932 = vector.shape_cast %931 : vector<2xf32> to vector<2x1xf32>
    %933 = math.log %932 : vector<2x1xf32>
    %934 = arith.addf %927, %933 : vector<2x1xf32>
    %935 = vector.extract_strided_slice %525 {offsets = [8, 0], sizes = [1, 4], strides = [1, 1]} : vector<11x4xf32> to vector<1x4xf32>
    %936 = vector.broadcast %935 : vector<1x4xf32> to vector<2x4xf32>
    %937 = arith.addf %921, %936 : vector<2x4xf32>
    %cst_228 = arith.constant dense<0xFF800000> : vector<2xf32>
    %938 = vector.multi_reduction <maximumf>, %937, %cst_228 [1] : vector<2x4xf32> to vector<2xf32>
    %939 = vector.shape_cast %938 : vector<2xf32> to vector<2x1xf32>
    %940 = vector.broadcast %939 : vector<2x1xf32> to vector<2x4xf32>
    %941 = arith.subf %937, %940 : vector<2x4xf32>
    %942 = math.exp %941 : vector<2x4xf32>
    %cst_229 = arith.constant dense<0.000000e+00> : vector<2xf32>
    %943 = vector.multi_reduction <add>, %942, %cst_229 [1] : vector<2x4xf32> to vector<2xf32>
    %944 = vector.shape_cast %943 : vector<2xf32> to vector<2x1xf32>
    %945 = math.log %944 : vector<2x1xf32>
    %946 = arith.addf %939, %945 : vector<2x1xf32>
    %947 = vector.extract_strided_slice %525 {offsets = [9, 0], sizes = [1, 4], strides = [1, 1]} : vector<11x4xf32> to vector<1x4xf32>
    %948 = vector.broadcast %947 : vector<1x4xf32> to vector<2x4xf32>
    %949 = arith.addf %921, %948 : vector<2x4xf32>
    %cst_230 = arith.constant dense<0xFF800000> : vector<2xf32>
    %950 = vector.multi_reduction <maximumf>, %949, %cst_230 [1] : vector<2x4xf32> to vector<2xf32>
    %951 = vector.shape_cast %950 : vector<2xf32> to vector<2x1xf32>
    %952 = vector.broadcast %951 : vector<2x1xf32> to vector<2x4xf32>
    %953 = arith.subf %949, %952 : vector<2x4xf32>
    %954 = math.exp %953 : vector<2x4xf32>
    %cst_231 = arith.constant dense<0.000000e+00> : vector<2xf32>
    %955 = vector.multi_reduction <add>, %954, %cst_231 [1] : vector<2x4xf32> to vector<2xf32>
    %956 = vector.shape_cast %955 : vector<2xf32> to vector<2x1xf32>
    %957 = math.log %956 : vector<2x1xf32>
    %958 = arith.addf %951, %957 : vector<2x1xf32>
    %959 = vector.extract_strided_slice %525 {offsets = [10, 0], sizes = [1, 4], strides = [1, 1]} : vector<11x4xf32> to vector<1x4xf32>
    %960 = vector.broadcast %959 : vector<1x4xf32> to vector<2x4xf32>
    %961 = arith.addf %921, %960 : vector<2x4xf32>
    %cst_232 = arith.constant dense<0xFF800000> : vector<2xf32>
    %962 = vector.multi_reduction <maximumf>, %961, %cst_232 [1] : vector<2x4xf32> to vector<2xf32>
    %963 = vector.shape_cast %962 : vector<2xf32> to vector<2x1xf32>
    %964 = vector.broadcast %963 : vector<2x1xf32> to vector<2x4xf32>
    %965 = arith.subf %961, %964 : vector<2x4xf32>
    %966 = math.exp %965 : vector<2x4xf32>
    %cst_233 = arith.constant dense<0.000000e+00> : vector<2xf32>
    %967 = vector.multi_reduction <add>, %966, %cst_233 [1] : vector<2x4xf32> to vector<2xf32>
    %968 = vector.shape_cast %967 : vector<2xf32> to vector<2x1xf32>
    %969 = math.log %968 : vector<2x1xf32>
    %970 = arith.addf %963, %969 : vector<2x1xf32>
    %971 = tpu.concatenate %934, %946, %958, %970 in 1 : vector<2x1xf32>, vector<2x1xf32>, vector<2x1xf32>, vector<2x1xf32> -> vector<2x4xf32>
    %972 = arith.addf %971, %922 : vector<2x4xf32>
    %973 = vector.extract_strided_slice %544 {offsets = [12, 0], sizes = [2, 1], strides = [1, 1]} : vector<16x1xf32> to vector<2x1xf32>
    %974 = vector.broadcast %973 : vector<2x1xf32> to vector<2x4xf32>
    %975 = arith.mulf %974, %972 : vector<2x4xf32>
    %cst_234 = arith.constant 1.000000e+00 : f32
    %976 = vector.broadcast %cst_234 : f32 to vector<2x1xf32>
    %977 = arith.subf %976, %973 : vector<2x1xf32>
    %978 = vector.broadcast %977 : vector<2x1xf32> to vector<2x4xf32>
    %979 = arith.mulf %978, %921 : vector<2x4xf32>
    %980 = arith.addf %975, %979 : vector<2x4xf32>
    %981 = vector.extract_strided_slice %543 {offsets = [14, 0], sizes = [2, 4], strides = [1, 1]} : vector<16x4xf32> to vector<2x4xf32>
    %982 = vector.extract_strided_slice %525 {offsets = [7, 0], sizes = [1, 4], strides = [1, 1]} : vector<11x4xf32> to vector<1x4xf32>
    %983 = vector.broadcast %982 : vector<1x4xf32> to vector<2x4xf32>
    %984 = arith.addf %980, %983 : vector<2x4xf32>
    %cst_235 = arith.constant dense<0xFF800000> : vector<2xf32>
    %985 = vector.multi_reduction <maximumf>, %984, %cst_235 [1] : vector<2x4xf32> to vector<2xf32>
    %986 = vector.shape_cast %985 : vector<2xf32> to vector<2x1xf32>
    %987 = vector.broadcast %986 : vector<2x1xf32> to vector<2x4xf32>
    %988 = arith.subf %984, %987 : vector<2x4xf32>
    %989 = math.exp %988 : vector<2x4xf32>
    %cst_236 = arith.constant dense<0.000000e+00> : vector<2xf32>
    %990 = vector.multi_reduction <add>, %989, %cst_236 [1] : vector<2x4xf32> to vector<2xf32>
    %991 = vector.shape_cast %990 : vector<2xf32> to vector<2x1xf32>
    %992 = math.log %991 : vector<2x1xf32>
    %993 = arith.addf %986, %992 : vector<2x1xf32>
    %994 = vector.extract_strided_slice %525 {offsets = [8, 0], sizes = [1, 4], strides = [1, 1]} : vector<11x4xf32> to vector<1x4xf32>
    %995 = vector.broadcast %994 : vector<1x4xf32> to vector<2x4xf32>
    %996 = arith.addf %980, %995 : vector<2x4xf32>
    %cst_237 = arith.constant dense<0xFF800000> : vector<2xf32>
    %997 = vector.multi_reduction <maximumf>, %996, %cst_237 [1] : vector<2x4xf32> to vector<2xf32>
    %998 = vector.shape_cast %997 : vector<2xf32> to vector<2x1xf32>
    %999 = vector.broadcast %998 : vector<2x1xf32> to vector<2x4xf32>
    %1000 = arith.subf %996, %999 : vector<2x4xf32>
    %1001 = math.exp %1000 : vector<2x4xf32>
    %cst_238 = arith.constant dense<0.000000e+00> : vector<2xf32>
    %1002 = vector.multi_reduction <add>, %1001, %cst_238 [1] : vector<2x4xf32> to vector<2xf32>
    %1003 = vector.shape_cast %1002 : vector<2xf32> to vector<2x1xf32>
    %1004 = math.log %1003 : vector<2x1xf32>
    %1005 = arith.addf %998, %1004 : vector<2x1xf32>
    %1006 = vector.extract_strided_slice %525 {offsets = [9, 0], sizes = [1, 4], strides = [1, 1]} : vector<11x4xf32> to vector<1x4xf32>
    %1007 = vector.broadcast %1006 : vector<1x4xf32> to vector<2x4xf32>
    %1008 = arith.addf %980, %1007 : vector<2x4xf32>
    %cst_239 = arith.constant dense<0xFF800000> : vector<2xf32>
    %1009 = vector.multi_reduction <maximumf>, %1008, %cst_239 [1] : vector<2x4xf32> to vector<2xf32>
    %1010 = vector.shape_cast %1009 : vector<2xf32> to vector<2x1xf32>
    %1011 = vector.broadcast %1010 : vector<2x1xf32> to vector<2x4xf32>
    %1012 = arith.subf %1008, %1011 : vector<2x4xf32>
    %1013 = math.exp %1012 : vector<2x4xf32>
    %cst_240 = arith.constant dense<0.000000e+00> : vector<2xf32>
    %1014 = vector.multi_reduction <add>, %1013, %cst_240 [1] : vector<2x4xf32> to vector<2xf32>
    %1015 = vector.shape_cast %1014 : vector<2xf32> to vector<2x1xf32>
    %1016 = math.log %1015 : vector<2x1xf32>
    %1017 = arith.addf %1010, %1016 : vector<2x1xf32>
    %1018 = vector.extract_strided_slice %525 {offsets = [10, 0], sizes = [1, 4], strides = [1, 1]} : vector<11x4xf32> to vector<1x4xf32>
    %1019 = vector.broadcast %1018 : vector<1x4xf32> to vector<2x4xf32>
    %1020 = arith.addf %980, %1019 : vector<2x4xf32>
    %cst_241 = arith.constant dense<0xFF800000> : vector<2xf32>
    %1021 = vector.multi_reduction <maximumf>, %1020, %cst_241 [1] : vector<2x4xf32> to vector<2xf32>
    %1022 = vector.shape_cast %1021 : vector<2xf32> to vector<2x1xf32>
    %1023 = vector.broadcast %1022 : vector<2x1xf32> to vector<2x4xf32>
    %1024 = arith.subf %1020, %1023 : vector<2x4xf32>
    %1025 = math.exp %1024 : vector<2x4xf32>
    %cst_242 = arith.constant dense<0.000000e+00> : vector<2xf32>
    %1026 = vector.multi_reduction <add>, %1025, %cst_242 [1] : vector<2x4xf32> to vector<2xf32>
    %1027 = vector.shape_cast %1026 : vector<2xf32> to vector<2x1xf32>
    %1028 = math.log %1027 : vector<2x1xf32>
    %1029 = arith.addf %1022, %1028 : vector<2x1xf32>
    %1030 = tpu.concatenate %993, %1005, %1017, %1029 in 1 : vector<2x1xf32>, vector<2x1xf32>, vector<2x1xf32>, vector<2x1xf32> -> vector<2x4xf32>
    %1031 = arith.addf %1030, %981 : vector<2x4xf32>
    %1032 = vector.extract_strided_slice %544 {offsets = [14, 0], sizes = [2, 1], strides = [1, 1]} : vector<16x1xf32> to vector<2x1xf32>
    %1033 = vector.broadcast %1032 : vector<2x1xf32> to vector<2x4xf32>
    %1034 = arith.mulf %1033, %1031 : vector<2x4xf32>
    %cst_243 = arith.constant 1.000000e+00 : f32
    %1035 = vector.broadcast %cst_243 : f32 to vector<2x1xf32>
    %1036 = arith.subf %1035, %1032 : vector<2x1xf32>
    %1037 = vector.broadcast %1036 : vector<2x1xf32> to vector<2x4xf32>
    %1038 = arith.mulf %1037, %980 : vector<2x4xf32>
    %1039 = arith.addf %1034, %1038 : vector<2x4xf32>
    %1040 = vector.broadcast %528 : vector<1x4xf32> to vector<2x4xf32>
    %1041 = arith.addf %1039, %1040 : vector<2x4xf32>
    %cst_244 = arith.constant dense<0xFF800000> : vector<2xf32>
    %1042 = vector.multi_reduction <maximumf>, %1041, %cst_244 [1] : vector<2x4xf32> to vector<2xf32>
    %1043 = vector.shape_cast %1042 : vector<2xf32> to vector<2x1xf32>
    %1044 = vector.broadcast %1043 : vector<2x1xf32> to vector<2x4xf32>
    %1045 = arith.subf %1041, %1044 : vector<2x4xf32>
    %1046 = math.exp %1045 : vector<2x4xf32>
    %cst_245 = arith.constant dense<0.000000e+00> : vector<2xf32>
    %1047 = vector.multi_reduction <add>, %1046, %cst_245 [1] : vector<2x4xf32> to vector<2xf32>
    %1048 = vector.shape_cast %1047 : vector<2xf32> to vector<2x1xf32>
    %1049 = math.log %1048 : vector<2x1xf32>
    %1050 = arith.addf %1043, %1049 : vector<2x1xf32>
    %cst_246 = arith.constant dense<0.000000e+00> : vector<1xf32>
    %1051 = vector.multi_reduction <add>, %1050, %cst_246 [0] : vector<2x1xf32> to vector<1xf32>
    %1052 = vector.shape_cast %1051 : vector<1xf32> to vector<1x1xf32>
    %1053 = arith.subf %623, %1052 : vector<1x1xf32>
    %cst_247 = arith.constant 0.000000e+00 : f32
    %1054 = vector.broadcast %cst_247 : f32 to vector<1x1xf32>
    %1055 = arith.subf %1054, %1053 : vector<1x1xf32>
    %cst_248 = arith.constant 2.000000e+00 : f32
    %1056 = vector.broadcast %cst_248 : f32 to vector<1x1xf32>
    %1057 = arith.divf %1055, %1056 : vector<1x1xf32>
    %c0_249 = arith.constant 0 : index
    %c0_250 = arith.constant 0 : index
    %1058 = vector.load %arg11[%c0_249, %c0_250] : memref<1x1xf32, #tpu.memory_space<vmem>>, vector<1x1xf32>
    tpu.vector_store %arg11[%c0_249, %c0_250], %1057 {strides = array<i32>} : memref<1x1xf32, #tpu.memory_space<vmem>>, vector<1x1xf32>,
    return
  }
}

</mosaic_0001>

<llo_original>
// kernel: nercrf_loss.1
$region0: #{nercrf_loss.1}
  #allocation0 [shape = 'u32[]', space=smem, size = 0x4, offset = 0x4, fixed_abs, tag = 'smem constant byte address 0x4 - core index']
  #allocation1 [shape = 'u32[144,128]{1,0:T(1,128)}', space=vmem, size = 0x12000, scoped, tag = 'internal scratch']
  #allocation2 [shape = 'f32[16,384]{1,0:T(8,128)}', space=vmem, size = 0x6000, scoped, tag = 'scratch operand']
  #allocation3 [shape = 'f32[16,128]{1,0:T(8,128)}', space=vmem, size = 0x2000, scoped, tag = 'scratch operand']
  %s0 = inlined_call_operand.vmem [shape: f32[16,768], index: 0, kind: input, shape index: {}]
  %s1 = inlined_call_operand.vmem [shape: f32[768,384], index: 1, kind: input, shape index: {}]
  %s2 = inlined_call_operand.vmem [shape: f32[1,384], index: 2, kind: input, shape index: {}]
  %s3 = inlined_call_operand.vmem [shape: f32[128,384], index: 3, kind: input, shape index: {}]
  %s4 = inlined_call_operand.vmem [shape: f32[1,384], index: 4, kind: input, shape index: {}]
  %s5 = inlined_call_operand.vmem [shape: f32[128,64], index: 5, kind: input, shape index: {}]
  %s6 = inlined_call_operand.vmem [shape: f32[1,64], index: 6, kind: input, shape index: {}]
  %s7 = inlined_call_operand.vmem [shape: f32[64,4], index: 7, kind: input, shape index: {}]
  %s8 = inlined_call_operand.vmem [shape: f32[11,4], index: 8, kind: input, shape index: {}]
  %s9 = inlined_call_operand.vmem [shape: f32[16,1], index: 9, kind: input, shape index: {}]
  %s10 = inlined_call_operand.vmem [shape: s32[16,1], index: 10, kind: input, shape index: {}]
  %s11 = inlined_call_operand.hbm [shape: f32[1,1], index: 11, kind: output, shape index: {}]
  %s12 = sld [smem:[#allocation0]]
  $region54: #{nercrf_loss.1} parent=0
    _
  %s14 = ssub.s32 1, %s12
  %s15 = scalar_select 0, %s14, %s12
  $region1: #{nercrf_loss.1} parent=0
    #allocation4 [shape = 'u8[512]{0}', space=vmem, size = 0x400, scoped, tag = 'output window, operand 0, single buffered']
    #allocation5 [shape = 's32[1]{0}', space=sflag, size = 0x4, scoped, tag = 'scoped memory for nercrf_loss.1']
    %16 = vsyncpa [#allocation5], 0
    // Predicated region
    $region2: #{nercrf_loss.1} parent=1 // pred_check
      _
    $region3: #{nercrf_loss.1} parent=1 // pred_check_branch
      %18 = sbr.rel (0) target = $region5
    $region4: #{nercrf_loss.1} parent=1 // pred_region
      _
    $region5: #{nercrf_loss.1} parent=1 // pred_fallthru
      _
    // Predicated region
    $region6: #{nercrf_loss.1} parent=1 // pred_check
      _
    $region7: #{nercrf_loss.1} parent=1 // pred_check_branch
      %20 = sbr.rel (0) target = $region9
    $region8: #{nercrf_loss.1} parent=1 // pred_region
      _
    $region9: #{nercrf_loss.1} parent=1 // pred_fallthru
      _
    // Predicated region
    $region10: #{nercrf_loss.1} parent=1 // pred_check
      _
    $region11: #{nercrf_loss.1} parent=1 // pred_check_branch
      %22 = sbr.rel (0) target = $region13
    $region12: #{nercrf_loss.1} parent=1 // pred_region
      _
    $region13: #{nercrf_loss.1} parent=1 // pred_fallthru
      _
    // Predicated region
    $region14: #{nercrf_loss.1} parent=1 // pred_check
      _
    $region15: #{nercrf_loss.1} parent=1 // pred_check_branch
      %24 = sbr.rel (0) target = $region17
    $region16: #{nercrf_loss.1} parent=1 // pred_region
      _
    $region17: #{nercrf_loss.1} parent=1 // pred_fallthru
      _
    // Predicated region
    $region18: #{nercrf_loss.1} parent=1 // pred_check
      _
    $region19: #{nercrf_loss.1} parent=1 // pred_check_branch
      %26 = sbr.rel (0) target = $region21
    $region20: #{nercrf_loss.1} parent=1 // pred_region
      _
    $region21: #{nercrf_loss.1} parent=1 // pred_fallthru
      _
    // Predicated region
    $region22: #{nercrf_loss.1} parent=1 // pred_check
      _
    $region23: #{nercrf_loss.1} parent=1 // pred_check_branch
      %28 = sbr.rel (0) target = $region25
    $region24: #{nercrf_loss.1} parent=1 // pred_region
      _
    $region25: #{nercrf_loss.1} parent=1 // pred_fallthru
      _
    // Predicated region
    $region26: #{nercrf_loss.1} parent=1 // pred_check
      _
    $region27: #{nercrf_loss.1} parent=1 // pred_check_branch
      %30 = sbr.rel (0) target = $region29
    $region28: #{nercrf_loss.1} parent=1 // pred_region
      _
    $region29: #{nercrf_loss.1} parent=1 // pred_fallthru
      _
    // Predicated region
    $region30: #{nercrf_loss.1} parent=1 // pred_check
      _
    $region31: #{nercrf_loss.1} parent=1 // pred_check_branch
      %32 = sbr.rel (0) target = $region33
    $region32: #{nercrf_loss.1} parent=1 // pred_region
      _
    $region33: #{nercrf_loss.1} parent=1 // pred_fallthru
      _
    // Predicated region
    $region34: #{nercrf_loss.1} parent=1 // pred_check
      _
    $region35: #{nercrf_loss.1} parent=1 // pred_check_branch
      %34 = sbr.rel (0) target = $region37
    $region36: #{nercrf_loss.1} parent=1 // pred_region
      _
    $region37: #{nercrf_loss.1} parent=1 // pred_fallthru
      _
    // Predicated region
    $region38: #{nercrf_loss.1} parent=1 // pred_check
      _
    $region39: #{nercrf_loss.1} parent=1 // pred_check_branch
      %36 = sbr.rel (0) target = $region41
    $region40: #{nercrf_loss.1} parent=1 // pred_region
      _
    $region41: #{nercrf_loss.1} parent=1 // pred_fallthru
      _
    // Predicated region
    $region42: #{nercrf_loss.1} parent=1 // pred_check
      _
    $region43: #{nercrf_loss.1} parent=1 // pred_check_branch
      %38 = sbr.rel (0) target = $region45
    $region44: #{nercrf_loss.1} parent=1 // pred_region
      _
    $region45: #{nercrf_loss.1} parent=1 // pred_fallthru
      _
    %v39 = vld [vmem:[%s0] sm:$0xff]
    %v40 = vld [vmem:[%s0 + $0x8] sm:$0xff]
    %v41 = vld [vmem:[%s0 + $0x10] sm:$0xff]
    %v42 = vld [vmem:[%s0 + $0x18] sm:$0xff]
    %v43 = vld [vmem:[%s0 + $0x20] sm:$0xff]
    %v44 = vld [vmem:[%s0 + $0x28] sm:$0xff]
    %v45 = vld [vmem:[%s0 + $0x30] sm:$0xff]
    %v46 = vld [vmem:[%s0 + $0x38] sm:$0xff]
    %v47 = vld [vmem:[%s0 + $0x40] sm:$0xff]
    %v48 = vld [vmem:[%s0 + $0x48] sm:$0xff]
    %v49 = vld [vmem:[%s0 + $0x50] sm:$0xff]
    %v50 = vld [vmem:[%s0 + $0x58] sm:$0xff]
    %v51 = vld [vmem:[%s1] sm:$0xff]
    %v52 = vld [vmem:[%s1 + $0x8] sm:$0xff]
    %v53 = vld [vmem:[%s1 + $0x10] sm:$0xff]
    %v54 = vld [vmem:[%s1 + $0x18] sm:$0xff]
    %v55 = vld [vmem:[%s1 + $0x20] sm:$0xff]
    %v56 = vld [vmem:[%s1 + $0x28] sm:$0xff]
    %v57 = vld [vmem:[%s1 + $0x30] sm:$0xff]
    %v58 = vld [vmem:[%s1 + $0x38] sm:$0xff]
    %v59 = vld [vmem:[%s1 + $0x40] sm:$0xff]
    %v60 = vld [vmem:[%s1 + $0x48] sm:$0xff]
    %v61 = vld [vmem:[%s1 + $0x50] sm:$0xff]
    %v62 = vld [vmem:[%s1 + $0x58] sm:$0xff]
    %v63 = vld [vmem:[%s1 + $0x60] sm:$0xff]
    %v64 = vld [vmem:[%s1 + $0x68] sm:$0xff]
    %v65 = vld [vmem:[%s1 + $0x70] sm:$0xff]
    %v66 = vld [vmem:[%s1 + $0x78] sm:$0xff]
    %v67 = vld [vmem:[%s1 + $0x80] sm:$0xff]
    %v68 = vld [vmem:[%s1 + $0x88] sm:$0xff]
    %v69 = vld [vmem:[%s1 + $0x90] sm:$0xff]
    %v70 = vld [vmem:[%s1 + $0x98] sm:$0xff]
    %v71 = vld [vmem:[%s1 + $0xa0] sm:$0xff]
    %v72 = vld [vmem:[%s1 + $0xa8] sm:$0xff]
    %v73 = vld [vmem:[%s1 + $0xb0] sm:$0xff]
    %v74 = vld [vmem:[%s1 + $0xb8] sm:$0xff]
    %v75 = vld [vmem:[%s1 + $0xc0] sm:$0xff]
    %v76 = vld [vmem:[%s1 + $0xc8] sm:$0xff]
    %v77 = vld [vmem:[%s1 + $0xd0] sm:$0xff]
    %v78 = vld [vmem:[%s1 + $0xd8] sm:$0xff]
    %v79 = vld [vmem:[%s1 + $0xe0] sm:$0xff]
    %v80 = vld [vmem:[%s1 + $0xe8] sm:$0xff]
    %v81 = vld [vmem:[%s1 + $0xf0] sm:$0xff]
    %v82 = vld [vmem:[%s1 + $0xf8] sm:$0xff]
    %v83 = vld [vmem:[%s1 + $0x100] sm:$0xff]
    %v84 = vld [vmem:[%s1 + $0x108] sm:$0xff]
    %v85 = vld [vmem:[%s1 + $0x110] sm:$0xff]
    %v86 = vld [vmem:[%s1 + $0x118] sm:$0xff]
    %v87 = vld [vmem:[%s1 + $0x120] sm:$0xff]
    %v88 = vld [vmem:[%s1 + $0x128] sm:$0xff]
    %v89 = vld [vmem:[%s1 + $0x130] sm:$0xff]
    %v90 = vld [vmem:[%s1 + $0x138] sm:$0xff]
    %v91 = vld [vmem:[%s1 + $0x140] sm:$0xff]
    %v92 = vld [vmem:[%s1 + $0x148] sm:$0xff]
    %v93 = vld [vmem:[%s1 + $0x150] sm:$0xff]
    %v94 = vld [vmem:[%s1 + $0x158] sm:$0xff]
    %v95 = vld [vmem:[%s1 + $0x160] sm:$0xff]
    %v96 = vld [vmem:[%s1 + $0x168] sm:$0xff]
    %v97 = vld [vmem:[%s1 + $0x170] sm:$0xff]
    %v98 = vld [vmem:[%s1 + $0x178] sm:$0xff]
    %v99 = vld [vmem:[%s1 + $0x180] sm:$0xff]
    %v100 = vld [vmem:[%s1 + $0x188] sm:$0xff]
    %v101 = vld [vmem:[%s1 + $0x190] sm:$0xff]
    %v102 = vld [vmem:[%s1 + $0x198] sm:$0xff]
    %v103 = vld [vmem:[%s1 + $0x1a0] sm:$0xff]
    %v104 = vld [vmem:[%s1 + $0x1a8] sm:$0xff]
    %v105 = vld [vmem:[%s1 + $0x1b0] sm:$0xff]
    %v106 = vld [vmem:[%s1 + $0x1b8] sm:$0xff]
    %v107 = vld [vmem:[%s1 + $0x1c0] sm:$0xff]
    %v108 = vld [vmem:[%s1 + $0x1c8] sm:$0xff]
    %v109 = vld [vmem:[%s1 + $0x1d0] sm:$0xff]
    %v110 = vld [vmem:[%s1 + $0x1d8] sm:$0xff]
    %v111 = vld [vmem:[%s1 + $0x1e0] sm:$0xff]
    %v112 = vld [vmem:[%s1 + $0x1e8] sm:$0xff]
    %v113 = vld [vmem:[%s1 + $0x1f0] sm:$0xff]
    %v114 = vld [vmem:[%s1 + $0x1f8] sm:$0xff]
    %v115 = vld [vmem:[%s1 + $0x200] sm:$0xff]
    %v116 = vld [vmem:[%s1 + $0x208] sm:$0xff]
    %v117 = vld [vmem:[%s1 + $0x210] sm:$0xff]
    %v118 = vld [vmem:[%s1 + $0x218] sm:$0xff]
    %v119 = vld [vmem:[%s1 + $0x220] sm:$0xff]
    %v120 = vld [vmem:[%s1 + $0x228] sm:$0xff]
    %v121 = vld [vmem:[%s1 + $0x230] sm:$0xff]
    %v122 = vld [vmem:[%s1 + $0x238] sm:$0xff]
    %v123 = vld [vmem:[%s1 + $0x240] sm:$0xff]
    %v124 = vld [vmem:[%s1 + $0x248] sm:$0xff]
    %v125 = vld [vmem:[%s1 + $0x250] sm:$0xff]
    %v126 = vld [vmem:[%s1 + $0x258] sm:$0xff]
    %v127 = vld [vmem:[%s1 + $0x260] sm:$0xff]
    %v128 = vld [vmem:[%s1 + $0x268] sm:$0xff]
    %v129 = vld [vmem:[%s1 + $0x270] sm:$0xff]
    %v130 = vld [vmem:[%s1 + $0x278] sm:$0xff]
    %v131 = vld [vmem:[%s1 + $0x280] sm:$0xff]
    %v132 = vld [vmem:[%s1 + $0x288] sm:$0xff]
    %v133 = vld [vmem:[%s1 + $0x290] sm:$0xff]
    %v134 = vld [vmem:[%s1 + $0x298] sm:$0xff]
    %v135 = vld [vmem:[%s1 + $0x2a0] sm:$0xff]
    %v136 = vld [vmem:[%s1 + $0x2a8] sm:$0xff]
    %v137 = vld [vmem:[%s1 + $0x2b0] sm:$0xff]
    %v138 = vld [vmem:[%s1 + $0x2b8] sm:$0xff]
    %v139 = vld [vmem:[%s1 + $0x2c0] sm:$0xff]
    %v140 = vld [vmem:[%s1 + $0x2c8] sm:$0xff]
    %v141 = vld [vmem:[%s1 + $0x2d0] sm:$0xff]
    %v142 = vld [vmem:[%s1 + $0x2d8] sm:$0xff]
    %v143 = vld [vmem:[%s1 + $0x2e0] sm:$0xff]
    %v144 = vld [vmem:[%s1 + $0x2e8] sm:$0xff]
    %v145 = vld [vmem:[%s1 + $0x2f0] sm:$0xff]
    %v146 = vld [vmem:[%s1 + $0x2f8] sm:$0xff]
    %v147 = vld [vmem:[%s1 + $0x300] sm:$0xff]
    %v148 = vld [vmem:[%s1 + $0x308] sm:$0xff]
    %v149 = vld [vmem:[%s1 + $0x310] sm:$0xff]
    %v150 = vld [vmem:[%s1 + $0x318] sm:$0xff]
    %v151 = vld [vmem:[%s1 + $0x320] sm:$0xff]
    %v152 = vld [vmem:[%s1 + $0x328] sm:$0xff]
    %v153 = vld [vmem:[%s1 + $0x330] sm:$0xff]
    %v154 = vld [vmem:[%s1 + $0x338] sm:$0xff]
    %v155 = vld [vmem:[%s1 + $0x340] sm:$0xff]
    %v156 = vld [vmem:[%s1 + $0x348] sm:$0xff]
    %v157 = vld [vmem:[%s1 + $0x350] sm:$0xff]
    %v158 = vld [vmem:[%s1 + $0x358] sm:$0xff]
    %v159 = vld [vmem:[%s1 + $0x360] sm:$0xff]
    %v160 = vld [vmem:[%s1 + $0x368] sm:$0xff]
    %v161 = vld [vmem:[%s1 + $0x370] sm:$0xff]
    %v162 = vld [vmem:[%s1 + $0x378] sm:$0xff]
    %v163 = vld [vmem:[%s1 + $0x380] sm:$0xff]
    %v164 = vld [vmem:[%s1 + $0x388] sm:$0xff]
    %v165 = vld [vmem:[%s1 + $0x390] sm:$0xff]
    %v166 = vld [vmem:[%s1 + $0x398] sm:$0xff]
    %v167 = vld [vmem:[%s1 + $0x3a0] sm:$0xff]
    %v168 = vld [vmem:[%s1 + $0x3a8] sm:$0xff]
    %v169 = vld [vmem:[%s1 + $0x3b0] sm:$0xff]
    %v170 = vld [vmem:[%s1 + $0x3b8] sm:$0xff]
    %v171 = vld [vmem:[%s1 + $0x3c0] sm:$0xff]
    %v172 = vld [vmem:[%s1 + $0x3c8] sm:$0xff]
    %v173 = vld [vmem:[%s1 + $0x3d0] sm:$0xff]
    %v174 = vld [vmem:[%s1 + $0x3d8] sm:$0xff]
    %v175 = vld [vmem:[%s1 + $0x3e0] sm:$0xff]
    %v176 = vld [vmem:[%s1 + $0x3e8] sm:$0xff]
    %v177 = vld [vmem:[%s1 + $0x3f0] sm:$0xff]
    %v178 = vld [vmem:[%s1 + $0x3f8] sm:$0xff]
    %v179 = vld [vmem:[%s1 + $0x400] sm:$0xff]
    %v180 = vld [vmem:[%s1 + $0x408] sm:$0xff]
    %v181 = vld [vmem:[%s1 + $0x410] sm:$0xff]
    %v182 = vld [vmem:[%s1 + $0x418] sm:$0xff]
    %v183 = vld [vmem:[%s1 + $0x420] sm:$0xff]
    %v184 = vld [vmem:[%s1 + $0x428] sm:$0xff]
    %v185 = vld [vmem:[%s1 + $0x430] sm:$0xff]
    %v186 = vld [vmem:[%s1 + $0x438] sm:$0xff]
    %v187 = vld [vmem:[%s1 + $0x440] sm:$0xff]
    %v188 = vld [vmem:[%s1 + $0x448] sm:$0xff]
    %v189 = vld [vmem:[%s1 + $0x450] sm:$0xff]
    %v190 = vld [vmem:[%s1 + $0x458] sm:$0xff]
    %v191 = vld [vmem:[%s1 + $0x460] sm:$0xff]
    %v192 = vld [vmem:[%s1 + $0x468] sm:$0xff]
    %v193 = vld [vmem:[%s1 + $0x470] sm:$0xff]
    %v194 = vld [vmem:[%s1 + $0x478] sm:$0xff]
    %v195 = vld [vmem:[%s1 + $0x480] sm:$0xff]
    %v196 = vld [vmem:[%s1 + $0x488] sm:$0xff]
    %v197 = vld [vmem:[%s1 + $0x490] sm:$0xff]
    %v198 = vld [vmem:[%s1 + $0x498] sm:$0xff]
    %v199 = vld [vmem:[%s1 + $0x4a0] sm:$0xff]
    %v200 = vld [vmem:[%s1 + $0x4a8] sm:$0xff]
    %v201 = vld [vmem:[%s1 + $0x4b0] sm:$0xff]
    %v202 = vld [vmem:[%s1 + $0x4b8] sm:$0xff]
    %v203 = vld [vmem:[%s1 + $0x4c0] sm:$0xff]
    %v204 = vld [vmem:[%s1 + $0x4c8] sm:$0xff]
    %v205 = vld [vmem:[%s1 + $0x4d0] sm:$0xff]
    %v206 = vld [vmem:[%s1 + $0x4d8] sm:$0xff]
    %v207 = vld [vmem:[%s1 + $0x4e0] sm:$0xff]
    %v208 = vld [vmem:[%s1 + $0x4e8] sm:$0xff]
    %v209 = vld [vmem:[%s1 + $0x4f0] sm:$0xff]
    %v210 = vld [vmem:[%s1 + $0x4f8] sm:$0xff]
    %v211 = vld [vmem:[%s1 + $0x500] sm:$0xff]
    %v212 = vld [vmem:[%s1 + $0x508] sm:$0xff]
    %v213 = vld [vmem:[%s1 + $0x510] sm:$0xff]
    %v214 = vld [vmem:[%s1 + $0x518] sm:$0xff]
    %v215 = vld [vmem:[%s1 + $0x520] sm:$0xff]
    %v216 = vld [vmem:[%s1 + $0x528] sm:$0xff]
    %v217 = vld [vmem:[%s1 + $0x530] sm:$0xff]
    %v218 = vld [vmem:[%s1 + $0x538] sm:$0xff]
    %v219 = vld [vmem:[%s1 + $0x540] sm:$0xff]
    %v220 = vld [vmem:[%s1 + $0x548] sm:$0xff]
    %v221 = vld [vmem:[%s1 + $0x550] sm:$0xff]
    %v222 = vld [vmem:[%s1 + $0x558] sm:$0xff]
    %v223 = vld [vmem:[%s1 + $0x560] sm:$0xff]
    %v224 = vld [vmem:[%s1 + $0x568] sm:$0xff]
    %v225 = vld [vmem:[%s1 + $0x570] sm:$0xff]
    %v226 = vld [vmem:[%s1 + $0x578] sm:$0xff]
    %v227 = vld [vmem:[%s1 + $0x580] sm:$0xff]
    %v228 = vld [vmem:[%s1 + $0x588] sm:$0xff]
    %v229 = vld [vmem:[%s1 + $0x590] sm:$0xff]
    %v230 = vld [vmem:[%s1 + $0x598] sm:$0xff]
    %v231 = vld [vmem:[%s1 + $0x5a0] sm:$0xff]
    %v232 = vld [vmem:[%s1 + $0x5a8] sm:$0xff]
    %v233 = vld [vmem:[%s1 + $0x5b0] sm:$0xff]
    %v234 = vld [vmem:[%s1 + $0x5b8] sm:$0xff]
    %v235 = vld [vmem:[%s1 + $0x5c0] sm:$0xff]
    %v236 = vld [vmem:[%s1 + $0x5c8] sm:$0xff]
    %v237 = vld [vmem:[%s1 + $0x5d0] sm:$0xff]
    %v238 = vld [vmem:[%s1 + $0x5d8] sm:$0xff]
    %v239 = vld [vmem:[%s1 + $0x5e0] sm:$0xff]
    %v240 = vld [vmem:[%s1 + $0x5e8] sm:$0xff]
    %v241 = vld [vmem:[%s1 + $0x5f0] sm:$0xff]
    %v242 = vld [vmem:[%s1 + $0x5f8] sm:$0xff]
    %v243 = vld [vmem:[%s1 + $0x600] sm:$0xff]
    %v244 = vld [vmem:[%s1 + $0x608] sm:$0xff]
    %v245 = vld [vmem:[%s1 + $0x610] sm:$0xff]
    %v246 = vld [vmem:[%s1 + $0x618] sm:$0xff]
    %v247 = vld [vmem:[%s1 + $0x620] sm:$0xff]
    %v248 = vld [vmem:[%s1 + $0x628] sm:$0xff]
    %v249 = vld [vmem:[%s1 + $0x630] sm:$0xff]
    %v250 = vld [vmem:[%s1 + $0x638] sm:$0xff]
    %v251 = vld [vmem:[%s1 + $0x640] sm:$0xff]
    %v252 = vld [vmem:[%s1 + $0x648] sm:$0xff]
    %v253 = vld [vmem:[%s1 + $0x650] sm:$0xff]
    %v254 = vld [vmem:[%s1 + $0x658] sm:$0xff]
    %v255 = vld [vmem:[%s1 + $0x660] sm:$0xff]
    %v256 = vld [vmem:[%s1 + $0x668] sm:$0xff]
    %v257 = vld [vmem:[%s1 + $0x670] sm:$0xff]
    %v258 = vld [vmem:[%s1 + $0x678] sm:$0xff]
    %v259 = vld [vmem:[%s1 + $0x680] sm:$0xff]
    %v260 = vld [vmem:[%s1 + $0x688] sm:$0xff]
    %v261 = vld [vmem:[%s1 + $0x690] sm:$0xff]
    %v262 = vld [vmem:[%s1 + $0x698] sm:$0xff]
    %v263 = vld [vmem:[%s1 + $0x6a0] sm:$0xff]
    %v264 = vld [vmem:[%s1 + $0x6a8] sm:$0xff]
    %v265 = vld [vmem:[%s1 + $0x6b0] sm:$0xff]
    %v266 = vld [vmem:[%s1 + $0x6b8] sm:$0xff]
    %v267 = vld [vmem:[%s1 + $0x6c0] sm:$0xff]
    %v268 = vld [vmem:[%s1 + $0x6c8] sm:$0xff]
    %v269 = vld [vmem:[%s1 + $0x6d0] sm:$0xff]
    %v270 = vld [vmem:[%s1 + $0x6d8] sm:$0xff]
    %v271 = vld [vmem:[%s1 + $0x6e0] sm:$0xff]
    %v272 = vld [vmem:[%s1 + $0x6e8] sm:$0xff]
    %v273 = vld [vmem:[%s1 + $0x6f0] sm:$0xff]
    %v274 = vld [vmem:[%s1 + $0x6f8] sm:$0xff]
    %v275 = vld [vmem:[%s1 + $0x700] sm:$0xff]
    %v276 = vld [vmem:[%s1 + $0x708] sm:$0xff]
    %v277 = vld [vmem:[%s1 + $0x710] sm:$0xff]
    %v278 = vld [vmem:[%s1 + $0x718] sm:$0xff]
    %v279 = vld [vmem:[%s1 + $0x720] sm:$0xff]
    %v280 = vld [vmem:[%s1 + $0x728] sm:$0xff]
    %v281 = vld [vmem:[%s1 + $0x730] sm:$0xff]
    %v282 = vld [vmem:[%s1 + $0x738] sm:$0xff]
    %v283 = vld [vmem:[%s1 + $0x740] sm:$0xff]
    %v284 = vld [vmem:[%s1 + $0x748] sm:$0xff]
    %v285 = vld [vmem:[%s1 + $0x750] sm:$0xff]
    %v286 = vld [vmem:[%s1 + $0x758] sm:$0xff]
    %v287 = vld [vmem:[%s1 + $0x760] sm:$0xff]
    %v288 = vld [vmem:[%s1 + $0x768] sm:$0xff]
    %v289 = vld [vmem:[%s1 + $0x770] sm:$0xff]
    %v290 = vld [vmem:[%s1 + $0x778] sm:$0xff]
    %v291 = vld [vmem:[%s1 + $0x780] sm:$0xff]
    %v292 = vld [vmem:[%s1 + $0x788] sm:$0xff]
    %v293 = vld [vmem:[%s1 + $0x790] sm:$0xff]
    %v294 = vld [vmem:[%s1 + $0x798] sm:$0xff]
    %v295 = vld [vmem:[%s1 + $0x7a0] sm:$0xff]
    %v296 = vld [vmem:[%s1 + $0x7a8] sm:$0xff]
    %v297 = vld [vmem:[%s1 + $0x7b0] sm:$0xff]
    %v298 = vld [vmem:[%s1 + $0x7b8] sm:$0xff]
    %v299 = vld [vmem:[%s1 + $0x7c0] sm:$0xff]
    %v300 = vld [vmem:[%s1 + $0x7c8] sm:$0xff]
    %v301 = vld [vmem:[%s1 + $0x7d0] sm:$0xff]
    %v302 = vld [vmem:[%s1 + $0x7d8] sm:$0xff]
    %v303 = vld [vmem:[%s1 + $0x7e0] sm:$0xff]
    %v304 = vld [vmem:[%s1 + $0x7e8] sm:$0xff]
    %v305 = vld [vmem:[%s1 + $0x7f0] sm:$0xff]
    %v306 = vld [vmem:[%s1 + $0x7f8] sm:$0xff]
    %v307 = vld [vmem:[%s1 + $0x800] sm:$0xff]
    %v308 = vld [vmem:[%s1 + $0x808] sm:$0xff]
    %v309 = vld [vmem:[%s1 + $0x810] sm:$0xff]
    %v310 = vld [vmem:[%s1 + $0x818] sm:$0xff]
    %v311 = vld [vmem:[%s1 + $0x820] sm:$0xff]
    %v312 = vld [vmem:[%s1 + $0x828] sm:$0xff]
    %v313 = vld [vmem:[%s1 + $0x830] sm:$0xff]
    %v314 = vld [vmem:[%s1 + $0x838] sm:$0xff]
    %v315 = vld [vmem:[%s1 + $0x840] sm:$0xff]
    %v316 = vld [vmem:[%s1 + $0x848] sm:$0xff]
    %v317 = vld [vmem:[%s1 + $0x850] sm:$0xff]
    %v318 = vld [vmem:[%s1 + $0x858] sm:$0xff]
    %v319 = vld [vmem:[%s1 + $0x860] sm:$0xff]
    %v320 = vld [vmem:[%s1 + $0x868] sm:$0xff]
    %v321 = vld [vmem:[%s1 + $0x870] sm:$0xff]
    %v322 = vld [vmem:[%s1 + $0x878] sm:$0xff]
    %v323 = vld [vmem:[%s1 + $0x880] sm:$0xff]
    %v324 = vld [vmem:[%s1 + $0x888] sm:$0xff]
    %v325 = vld [vmem:[%s1 + $0x890] sm:$0xff]
    %v326 = vld [vmem:[%s1 + $0x898] sm:$0xff]
    %v327 = vld [vmem:[%s1 + $0x8a0] sm:$0xff]
    %v328 = vld [vmem:[%s1 + $0x8a8] sm:$0xff]
    %v329 = vld [vmem:[%s1 + $0x8b0] sm:$0xff]
    %v330 = vld [vmem:[%s1 + $0x8b8] sm:$0xff]
    %v331 = vld [vmem:[%s1 + $0x8c0] sm:$0xff]
    %v332 = vld [vmem:[%s1 + $0x8c8] sm:$0xff]
    %v333 = vld [vmem:[%s1 + $0x8d0] sm:$0xff]
    %v334 = vld [vmem:[%s1 + $0x8d8] sm:$0xff]
    %v335 = vld [vmem:[%s1 + $0x8e0] sm:$0xff]
    %v336 = vld [vmem:[%s1 + $0x8e8] sm:$0xff]
    %v337 = vld [vmem:[%s1 + $0x8f0] sm:$0xff]
    %v338 = vld [vmem:[%s1 + $0x8f8] sm:$0xff]
    %v339 = vld [vmem:[%s2] sm:$0x7]
    %v341 = vlaneseq
    %v342 = vshrl.u32 %v341, 7
    %v343 = vsub.s32 0, %v342
    %v344 = vrot.slane %v339, %v343
    %v345 = vlaneseq
    %v346 = vshrl.u32 %v345, 7
    %v347 = vsub.s32 1, %v346
    %v348 = vrot.slane %v339, %v347
    %v349 = vlaneseq
    %v350 = vshrl.u32 %v349, 7
    %v351 = vsub.s32 2, %v350
    %v352 = vrot.slane %v339, %v351
    %356 = vmatprep.subr.mxu0 %v52
    %357 = vmatpush1.msra.mxu0 %v51
    %358 = vmatprep.subr.mxu0 %v55
    %359 = vmatpush1.msra.mxu0 %v54
    %360 = vmatprep.subr.mxu0 %v58
    %361 = vmatpush1.msra.mxu0 %v57
    %362 = vmatprep.subr.mxu0 %v61
    %363 = vmatpush1.msra.mxu0 %v60
    %364 = vmatprep.subr.mxu0 %v64
    %365 = vmatpush1.msra.mxu0 %v63
    %366 = vmatprep.subr.mxu0 %v67
    %367 = vmatpush1.msra.mxu0 %v66
    %368 = vmatprep.subr.mxu0 %v70
    %369 = vmatpush1.msra.mxu0 %v69
    %370 = vmatprep.subr.mxu0 %v73
    %371 = vmatpush1.msra.mxu0 %v72
    %372 = vmatprep.subr.mxu0 %v76
    %373 = vmatpush1.msra.mxu0 %v75
    %374 = vmatprep.subr.mxu0 %v79
    %375 = vmatpush1.msra.mxu0 %v78
    %376 = vmatprep.subr.mxu0 %v82
    %377 = vmatpush1.msra.mxu0 %v81
    %378 = vmatprep.subr.mxu0 %v85
    %379 = vmatpush1.msra.mxu0 %v84
    %380 = vmatprep.subr.mxu0 %v88
    %381 = vmatpush1.msra.mxu0 %v87
    %382 = vmatprep.subr.mxu0 %v91
    %383 = vmatpush1.msra.mxu0 %v90
    %384 = vmatprep.subr.mxu0 %v94
    %385 = vmatpush1.msra.mxu0 %v93
    %386 = vmatprep.subr.mxu0 %v97
    %387 = vmatpush1.msra.mxu0 %v96
    %388 = vmatprep.subr.mxu0 %v100
    %389 = vmatpush1.msra.mxu0 %v99
    %390 = vmatprep.subr.mxu0 %v103
    %391 = vmatpush1.msra.mxu0 %v102
    %392 = vmatprep.subr.mxu0 %v106
    %393 = vmatpush1.msra.mxu0 %v105
    %394 = vmatprep.subr.mxu0 %v109
    %395 = vmatpush1.msra.mxu0 %v108
    %396 = vmatprep.subr.mxu0 %v112
    %397 = vmatpush1.msra.mxu0 %v111
    %398 = vmatprep.subr.mxu0 %v115
    %399 = vmatpush1.msra.mxu0 %v114
    %400 = vmatprep.subr.mxu0 %v118
    %401 = vmatpush1.msra.mxu0 %v117
    %402 = vmatprep.subr.mxu0 %v121
    %403 = vmatpush1.msra.mxu0 %v120
    %404 = vmatprep.subr.mxu0 %v124
    %405 = vmatpush1.msra.mxu0 %v123
    %406 = vmatprep.subr.mxu0 %v127
    %407 = vmatpush1.msra.mxu0 %v126
    %408 = vmatprep.subr.mxu0 %v130
    %409 = vmatpush1.msra.mxu0 %v129
    %410 = vmatprep.subr.mxu0 %v133
    %411 = vmatpush1.msra.mxu0 %v132
    %412 = vmatprep.subr.mxu0 %v136
    %413 = vmatpush1.msra.mxu0 %v135
    %414 = vmatprep.subr.mxu0 %v139
    %415 = vmatpush1.msra.mxu0 %v138
    %416 = vmatprep.subr.mxu0 %v142
    %417 = vmatpush1.msra.mxu0 %v141
    %418 = vmatprep.subr.mxu0 %v145
    %419 = vmatpush1.msra.mxu0 %v144
    %420 = vmatprep.mubr.f32.mxu0 %v40
    %421 = vmatmul.mubr.f32.gmra.mrb[0].mxu0 %v39
    %v422 = vpop.f32.mrb[0].mxu0
    %v423 = vadd.f32 %v344, %v422
    %v424 = vpop.f32.mrb[0].mxu0
    %v425 = vadd.f32 %v348, %v424
    %426 = vmatprep.mubr.f32.mxu0 %v46
    %427 = vmatmul.mubr.f32.gmra.mrb[0].mxu0 %v45
    %v428 = vpop.f32.mrb[0].mxu0
    %v429 = vadd.f32 %v344, %v428
    %v430 = vpop.f32.mrb[0].mxu0
    %v431 = vadd.f32 %v348, %v430
    %432 = vdwg.mxu0
    %433 = vmatprep.subr.mxu0 %v148
    %434 = vmatpush1.msra.mxu0 %v147
    %435 = vmatprep.subr.mxu0 %v151
    %436 = vmatpush1.msra.mxu0 %v150
    %437 = vmatprep.subr.mxu0 %v154
    %438 = vmatpush1.msra.mxu0 %v153
    %439 = vmatprep.subr.mxu0 %v157
    %440 = vmatpush1.msra.mxu0 %v156
    %441 = vmatprep.subr.mxu0 %v160
    %442 = vmatpush1.msra.mxu0 %v159
    %443 = vmatprep.subr.mxu0 %v163
    %444 = vmatpush1.msra.mxu0 %v162
    %445 = vmatprep.subr.mxu0 %v166
    %446 = vmatpush1.msra.mxu0 %v165
    %447 = vmatprep.subr.mxu0 %v169
    %448 = vmatpush1.msra.mxu0 %v168
    %449 = vmatprep.subr.mxu0 %v172
    %450 = vmatpush1.msra.mxu0 %v171
    %451 = vmatprep.subr.mxu0 %v175
    %452 = vmatpush1.msra.mxu0 %v174
    %453 = vmatprep.subr.mxu0 %v178
    %454 = vmatpush1.msra.mxu0 %v177
    %455 = vmatprep.subr.mxu0 %v181
    %456 = vmatpush1.msra.mxu0 %v180
    %457 = vmatprep.subr.mxu0 %v184
    %458 = vmatpush1.msra.mxu0 %v183
    %459 = vmatprep.subr.mxu0 %v187
    %460 = vmatpush1.msra.mxu0 %v186
    %461 = vmatprep.subr.mxu0 %v190
    %462 = vmatpush1.msra.mxu0 %v189
    %463 = vmatprep.subr.mxu0 %v193
    %464 = vmatpush1.msra.mxu0 %v192
    %465 = vmatprep.subr.mxu0 %v196
    %466 = vmatpush1.msra.mxu0 %v195
    %467 = vmatprep.subr.mxu0 %v199
    %468 = vmatpush1.msra.mxu0 %v198
    %469 = vmatprep.subr.mxu0 %v202
    %470 = vmatpush1.msra.mxu0 %v201
    %471 = vmatprep.subr.mxu0 %v205
    %472 = vmatpush1.msra.mxu0 %v204
    %473 = vmatprep.subr.mxu0 %v208
    %474 = vmatpush1.msra.mxu0 %v207
    %475 = vmatprep.subr.mxu0 %v211
    %476 = vmatpush1.msra.mxu0 %v210
    %477 = vmatprep.subr.mxu0 %v214
    %478 = vmatpush1.msra.mxu0 %v213
    %479 = vmatprep.subr.mxu0 %v217
    %480 = vmatpush1.msra.mxu0 %v216
    %481 = vmatprep.subr.mxu0 %v220
    %482 = vmatpush1.msra.mxu0 %v219
    %483 = vmatprep.subr.mxu0 %v223
    %484 = vmatpush1.msra.mxu0 %v222
    %485 = vmatprep.subr.mxu0 %v226
    %486 = vmatpush1.msra.mxu0 %v225
    %487 = vmatprep.subr.mxu0 %v229
    %488 = vmatpush1.msra.mxu0 %v228
    %489 = vmatprep.subr.mxu0 %v232
    %490 = vmatpush1.msra.mxu0 %v231
    %491 = vmatprep.subr.mxu0 %v235
    %492 = vmatpush1.msra.mxu0 %v234
    %493 = vmatprep.subr.mxu0 %v238
    %494 = vmatpush1.msra.mxu0 %v237
    %495 = vmatprep.subr.mxu0 %v241
    %496 = vmatpush1.msra.mxu0 %v240
    %497 = vmatprep.mubr.f32.mxu0 %v42
    %498 = vmatmul.mubr.f32.gmra.mrb[0].mxu0 %v41
    %v499 = vpop.f32.mrb[0].mxu0
    %v500 = vadd.f32 %v423, %v499
    %v501 = vpop.f32.mrb[0].mxu0
    %v502 = vadd.f32 %v425, %v501
    %503 = vmatprep.mubr.f32.mxu0 %v48
    %504 = vmatmul.mubr.f32.gmra.mrb[0].mxu0 %v47
    %v505 = vpop.f32.mrb[0].mxu0
    %v506 = vadd.f32 %v429, %v505
    %v507 = vpop.f32.mrb[0].mxu0
    %v508 = vadd.f32 %v431, %v507
    %509 = vdwg.mxu0
    %510 = vmatprep.subr.mxu0 %v244
    %511 = vmatpush1.msra.mxu0 %v243
    %512 = vmatprep.subr.mxu0 %v247
    %513 = vmatpush1.msra.mxu0 %v246
    %514 = vmatprep.subr.mxu0 %v250
    %515 = vmatpush1.msra.mxu0 %v249
    %516 = vmatprep.subr.mxu0 %v253
    %517 = vmatpush1.msra.mxu0 %v252
    %518 = vmatprep.subr.mxu0 %v256
    %519 = vmatpush1.msra.mxu0 %v255
    %520 = vmatprep.subr.mxu0 %v259
    %521 = vmatpush1.msra.mxu0 %v258
    %522 = vmatprep.subr.mxu0 %v262
    %523 = vmatpush1.msra.mxu0 %v261
    %524 = vmatprep.subr.mxu0 %v265
    %525 = vmatpush1.msra.mxu0 %v264
    %526 = vmatprep.subr.mxu0 %v268
    %527 = vmatpush1.msra.mxu0 %v267
    %528 = vmatprep.subr.mxu0 %v271
    %529 = vmatpush1.msra.mxu0 %v270
    %530 = vmatprep.subr.mxu0 %v274
    %531 = vmatpush1.msra.mxu0 %v273
    %532 = vmatprep.subr.mxu0 %v277
    %533 = vmatpush1.msra.mxu0 %v276
    %534 = vmatprep.subr.mxu0 %v280
    %535 = vmatpush1.msra.mxu0 %v279
    %536 = vmatprep.subr.mxu0 %v283
    %537 = vmatpush1.msra.mxu0 %v282
    %538 = vmatprep.subr.mxu0 %v286
    %539 = vmatpush1.msra.mxu0 %v285
    %540 = vmatprep.subr.mxu0 %v289
    %541 = vmatpush1.msra.mxu0 %v288
    %542 = vmatprep.subr.mxu0 %v292
    %543 = vmatpush1.msra.mxu0 %v291
    %544 = vmatprep.subr.mxu0 %v295
    %545 = vmatpush1.msra.mxu0 %v294
    %546 = vmatprep.subr.mxu0 %v298
    %547 = vmatpush1.msra.mxu0 %v297
    %548 = vmatprep.subr.mxu0 %v301
    %549 = vmatpush1.msra.mxu0 %v300
    %550 = vmatprep.subr.mxu0 %v304
    %551 = vmatpush1.msra.mxu0 %v303
    %552 = vmatprep.subr.mxu0 %v307
    %553 = vmatpush1.msra.mxu0 %v306
    %554 = vmatprep.subr.mxu0 %v310
    %555 = vmatpush1.msra.mxu0 %v309
    %556 = vmatprep.subr.mxu0 %v313
    %557 = vmatpush1.msra.mxu0 %v312
    %558 = vmatprep.subr.mxu0 %v316
    %559 = vmatpush1.msra.mxu0 %v315
    %560 = vmatprep.subr.mxu0 %v319
    %561 = vmatpush1.msra.mxu0 %v318
    %562 = vmatprep.subr.mxu0 %v322
    %563 = vmatpush1.msra.mxu0 %v321
    %564 = vmatprep.subr.mxu0 %v325
    %565 = vmatpush1.msra.mxu0 %v324
    %566 = vmatprep.subr.mxu0 %v328
    %567 = vmatpush1.msra.mxu0 %v327
    %568 = vmatprep.subr.mxu0 %v331
    %569 = vmatpush1.msra.mxu0 %v330
    %570 = vmatprep.subr.mxu0 %v334
    %571 = vmatpush1.msra.mxu0 %v333
    %572 = vmatprep.subr.mxu0 %v337
    %573 = vmatpush1.msra.mxu0 %v336
    %574 = vmatprep.mubr.f32.mxu0 %v44
    %575 = vmatmul.mubr.f32.gmra.mrb[0].mxu0 %v43
    %v576 = vpop.f32.mrb[0].mxu0
    %v577 = vadd.f32 %v500, %v576
    %v578 = vpop.f32.mrb[0].mxu0
    %v579 = vadd.f32 %v502, %v578
    %580 = vmatprep.mubr.f32.mxu0 %v50
    %581 = vmatmul.mubr.f32.gmra.mrb[0].mxu0 %v49
    %v582 = vpop.f32.mrb[0].mxu0
    %v583 = vadd.f32 %v506, %v582
    %v584 = vpop.f32.mrb[0].mxu0
    %v585 = vadd.f32 %v508, %v584
    %586 = vdwg.mxu0
    %587 = vmatprep.subr.mxu0 0.0
    %588 = vmatpush1.msra.mxu0 %v53
    %589 = vmatprep.subr.mxu0 0.0
    %590 = vmatpush1.msra.mxu0 %v56
    %591 = vmatprep.subr.mxu0 0.0
    %592 = vmatpush1.msra.mxu0 %v59
    %593 = vmatprep.subr.mxu0 0.0
    %594 = vmatpush1.msra.mxu0 %v62
    %595 = vmatprep.subr.mxu0 0.0
    %596 = vmatpush1.msra.mxu0 %v65
    %597 = vmatprep.subr.mxu0 0.0
    %598 = vmatpush1.msra.mxu0 %v68
    %599 = vmatprep.subr.mxu0 0.0
    %600 = vmatpush1.msra.mxu0 %v71
    %601 = vmatprep.subr.mxu0 0.0
    %602 = vmatpush1.msra.mxu0 %v74
    %603 = vmatprep.subr.mxu0 0.0
    %604 = vmatpush1.msra.mxu0 %v77
    %605 = vmatprep.subr.mxu0 0.0
    %606 = vmatpush1.msra.mxu0 %v80
    %607 = vmatprep.subr.mxu0 0.0
    %608 = vmatpush1.msra.mxu0 %v83
    %609 = vmatprep.subr.mxu0 0.0
    %610 = vmatpush1.msra.mxu0 %v86
    %611 = vmatprep.subr.mxu0 0.0
    %612 = vmatpush1.msra.mxu0 %v89
    %613 = vmatprep.subr.mxu0 0.0
    %614 = vmatpush1.msra.mxu0 %v92
    %615 = vmatprep.subr.mxu0 0.0
    %616 = vmatpush1.msra.mxu0 %v95
    %617 = vmatprep.subr.mxu0 0.0
    %618 = vmatpush1.msra.mxu0 %v98
    %619 = vmatprep.subr.mxu0 0.0
    %620 = vmatpush1.msra.mxu0 %v101
    %621 = vmatprep.subr.mxu0 0.0
    %622 = vmatpush1.msra.mxu0 %v104
    %623 = vmatprep.subr.mxu0 0.0
    %624 = vmatpush1.msra.mxu0 %v107
    %625 = vmatprep.subr.mxu0 0.0
    %626 = vmatpush1.msra.mxu0 %v110
    %627 = vmatprep.subr.mxu0 0.0
    %628 = vmatpush1.msra.mxu0 %v113
    %629 = vmatprep.subr.mxu0 0.0
    %630 = vmatpush1.msra.mxu0 %v116
    %631 = vmatprep.subr.mxu0 0.0
    %632 = vmatpush1.msra.mxu0 %v119
    %633 = vmatprep.subr.mxu0 0.0
    %634 = vmatpush1.msra.mxu0 %v122
    %635 = vmatprep.subr.mxu0 0.0
    %636 = vmatpush1.msra.mxu0 %v125
    %637 = vmatprep.subr.mxu0 0.0
    %638 = vmatpush1.msra.mxu0 %v128
    %639 = vmatprep.subr.mxu0 0.0
    %640 = vmatpush1.msra.mxu0 %v131
    %641 = vmatprep.subr.mxu0 0.0
    %642 = vmatpush1.msra.mxu0 %v134
    %643 = vmatprep.subr.mxu0 0.0
    %644 = vmatpush1.msra.mxu0 %v137
    %645 = vmatprep.subr.mxu0 0.0
    %646 = vmatpush1.msra.mxu0 %v140
    %647 = vmatprep.subr.mxu0 0.0
    %648 = vmatpush1.msra.mxu0 %v143
    %649 = vmatprep.subr.mxu0 0.0
    %650 = vmatpush1.msra.mxu0 %v146
    %651 = vmatprep.mubr.f32.mxu0 %v40
    %652 = vmatmul.mubr.f32.gmra.mrb[0].mxu0 %v39
    %v653 = vpop.f32.mrb[0].mxu0
    %v654 = vadd.f32 %v352, %v653
    %v655 = vpop.f32.mrb[0].mxu0
    %656 = vmatprep.mubr.f32.mxu0 %v46
    %657 = vmatmul.mubr.f32.gmra.mrb[0].mxu0 %v45
    %v658 = vpop.f32.mrb[0].mxu0
    %v659 = vadd.f32 %v352, %v658
    %v660 = vpop.f32.mrb[0].mxu0
    %661 = vdwg.mxu0
    %662 = vmatprep.subr.mxu0 0.0
    %663 = vmatpush1.msra.mxu0 %v149
    %664 = vmatprep.subr.mxu0 0.0
    %665 = vmatpush1.msra.mxu0 %v152
    %666 = vmatprep.subr.mxu0 0.0
    %667 = vmatpush1.msra.mxu0 %v155
    %668 = vmatprep.subr.mxu0 0.0
    %669 = vmatpush1.msra.mxu0 %v158
    %670 = vmatprep.subr.mxu0 0.0
    %671 = vmatpush1.msra.mxu0 %v161
    %672 = vmatprep.subr.mxu0 0.0
    %673 = vmatpush1.msra.mxu0 %v164
    %674 = vmatprep.subr.mxu0 0.0
    %675 = vmatpush1.msra.mxu0 %v167
    %676 = vmatprep.subr.mxu0 0.0
    %677 = vmatpush1.msra.mxu0 %v170
    %678 = vmatprep.subr.mxu0 0.0
    %679 = vmatpush1.msra.mxu0 %v173
    %680 = vmatprep.subr.mxu0 0.0
    %681 = vmatpush1.msra.mxu0 %v176
    %682 = vmatprep.subr.mxu0 0.0
    %683 = vmatpush1.msra.mxu0 %v179
    %684 = vmatprep.subr.mxu0 0.0
    %685 = vmatpush1.msra.mxu0 %v182
    %686 = vmatprep.subr.mxu0 0.0
    %687 = vmatpush1.msra.mxu0 %v185
    %688 = vmatprep.subr.mxu0 0.0
    %689 = vmatpush1.msra.mxu0 %v188
    %690 = vmatprep.subr.mxu0 0.0
    %691 = vmatpush1.msra.mxu0 %v191
    %692 = vmatprep.subr.mxu0 0.0
    %693 = vmatpush1.msra.mxu0 %v194
    %694 = vmatprep.subr.mxu0 0.0
    %695 = vmatpush1.msra.mxu0 %v197
    %696 = vmatprep.subr.mxu0 0.0
    %697 = vmatpush1.msra.mxu0 %v200
    %698 = vmatprep.subr.mxu0 0.0
    %699 = vmatpush1.msra.mxu0 %v203
    %700 = vmatprep.subr.mxu0 0.0
    %701 = vmatpush1.msra.mxu0 %v206
    %702 = vmatprep.subr.mxu0 0.0
    %703 = vmatpush1.msra.mxu0 %v209
    %704 = vmatprep.subr.mxu0 0.0
    %705 = vmatpush1.msra.mxu0 %v212
    %706 = vmatprep.subr.mxu0 0.0
    %707 = vmatpush1.msra.mxu0 %v215
    %708 = vmatprep.subr.mxu0 0.0
    %709 = vmatpush1.msra.mxu0 %v218
    %710 = vmatprep.subr.mxu0 0.0
    %711 = vmatpush1.msra.mxu0 %v221
    %712 = vmatprep.subr.mxu0 0.0
    %713 = vmatpush1.msra.mxu0 %v224
    %714 = vmatprep.subr.mxu0 0.0
    %715 = vmatpush1.msra.mxu0 %v227
    %716 = vmatprep.subr.mxu0 0.0
    %717 = vmatpush1.msra.mxu0 %v230
    %718 = vmatprep.subr.mxu0 0.0
    %719 = vmatpush1.msra.mxu0 %v233
    %720 = vmatprep.subr.mxu0 0.0
    %721 = vmatpush1.msra.mxu0 %v236
    %722 = vmatprep.subr.mxu0 0.0
    %723 = vmatpush1.msra.mxu0 %v239
    %724 = vmatprep.subr.mxu0 0.0
    %725 = vmatpush1.msra.mxu0 %v242
    %726 = vmatprep.mubr.f32.mxu0 %v42
    %727 = vmatmul.mubr.f32.gmra.mrb[0].mxu0 %v41
    %v728 = vpop.f32.mrb[0].mxu0
    %v729 = vadd.f32 %v654, %v728
    %v730 = vpop.f32.mrb[0].mxu0
    %731 = vmatprep.mubr.f32.mxu0 %v48
    %732 = vmatmul.mubr.f32.gmra.mrb[0].mxu0 %v47
    %v733 = vpop.f32.mrb[0].mxu0
    %v734 = vadd.f32 %v659, %v733
    %v735 = vpop.f32.mrb[0].mxu0
    %736 = vdwg.mxu0
    %737 = vmatprep.subr.mxu0 0.0
    %738 = vmatpush1.msra.mxu0 %v245
    %739 = vmatprep.subr.mxu0 0.0
    %740 = vmatpush1.msra.mxu0 %v248
    %741 = vmatprep.subr.mxu0 0.0
    %742 = vmatpush1.msra.mxu0 %v251
    %743 = vmatprep.subr.mxu0 0.0
    %744 = vmatpush1.msra.mxu0 %v254
    %745 = vmatprep.subr.mxu0 0.0
    %746 = vmatpush1.msra.mxu0 %v257
    %747 = vmatprep.subr.mxu0 0.0
    %748 = vmatpush1.msra.mxu0 %v260
    %749 = vmatprep.subr.mxu0 0.0
    %750 = vmatpush1.msra.mxu0 %v263
    %751 = vmatprep.subr.mxu0 0.0
    %752 = vmatpush1.msra.mxu0 %v266
    %753 = vmatprep.subr.mxu0 0.0
    %754 = vmatpush1.msra.mxu0 %v269
    %755 = vmatprep.subr.mxu0 0.0
    %756 = vmatpush1.msra.mxu0 %v272
    %757 = vmatprep.subr.mxu0 0.0
    %758 = vmatpush1.msra.mxu0 %v275
    %759 = vmatprep.subr.mxu0 0.0
    %760 = vmatpush1.msra.mxu0 %v278
    %761 = vmatprep.subr.mxu0 0.0
    %762 = vmatpush1.msra.mxu0 %v281
    %763 = vmatprep.subr.mxu0 0.0
    %764 = vmatpush1.msra.mxu0 %v284
    %765 = vmatprep.subr.mxu0 0.0
    %766 = vmatpush1.msra.mxu0 %v287
    %767 = vmatprep.subr.mxu0 0.0
    %768 = vmatpush1.msra.mxu0 %v290
    %769 = vmatprep.subr.mxu0 0.0
    %770 = vmatpush1.msra.mxu0 %v293
    %771 = vmatprep.subr.mxu0 0.0
    %772 = vmatpush1.msra.mxu0 %v296
    %773 = vmatprep.subr.mxu0 0.0
    %774 = vmatpush1.msra.mxu0 %v299
    %775 = vmatprep.subr.mxu0 0.0
    %776 = vmatpush1.msra.mxu0 %v302
    %777 = vmatprep.subr.mxu0 0.0
    %778 = vmatpush1.msra.mxu0 %v305
    %779 = vmatprep.subr.mxu0 0.0
    %780 = vmatpush1.msra.mxu0 %v308
    %781 = vmatprep.subr.mxu0 0.0
    %782 = vmatpush1.msra.mxu0 %v311
    %783 = vmatprep.subr.mxu0 0.0
    %784 = vmatpush1.msra.mxu0 %v314
    %785 = vmatprep.subr.mxu0 0.0
    %786 = vmatpush1.msra.mxu0 %v317
    %787 = vmatprep.subr.mxu0 0.0
    %788 = vmatpush1.msra.mxu0 %v320
    %789 = vmatprep.subr.mxu0 0.0
    %790 = vmatpush1.msra.mxu0 %v323
    %791 = vmatprep.subr.mxu0 0.0
    %792 = vmatpush1.msra.mxu0 %v326
    %793 = vmatprep.subr.mxu0 0.0
    %794 = vmatpush1.msra.mxu0 %v329
    %795 = vmatprep.subr.mxu0 0.0
    %796 = vmatpush1.msra.mxu0 %v332
    %797 = vmatprep.subr.mxu0 0.0
    %798 = vmatpush1.msra.mxu0 %v335
    %799 = vmatprep.subr.mxu0 0.0
    %800 = vmatpush1.msra.mxu0 %v338
    %801 = vmatprep.mubr.f32.mxu0 %v44
    %802 = vmatmul.mubr.f32.gmra.mrb[0].mxu0 %v43
    %v803 = vpop.f32.mrb[0].mxu0
    %v804 = vadd.f32 %v729, %v803
    %v805 = vpop.f32.mrb[0].mxu0
    %806 = vmatprep.mubr.f32.mxu0 %v50
    %807 = vmatmul.mubr.f32.gmra.mrb[0].mxu0 %v49
    %v808 = vpop.f32.mrb[0].mxu0
    %v809 = vadd.f32 %v734, %v808
    %v810 = vpop.f32.mrb[0].mxu0
    %811 = vdwg.mxu0
    %812 = vst [vmem:[#allocation2] sm:$0xff] %v577
    %813 = vst [vmem:[#allocation2 + $0x8] sm:$0xff] %v579
    %814 = vst [vmem:[#allocation2 + $0x10] sm:$0xff] %v804
    %815 = vst [vmem:[#allocation2 + $0x18] sm:$0xff] %v583
    %816 = vst [vmem:[#allocation2 + $0x20] sm:$0xff] %v585
    %817 = vst [vmem:[#allocation2 + $0x28] sm:$0xff] %v809
    %v818 = vld [vmem:[%s3] sm:$0xff]
    %v819 = vld [vmem:[%s3 + $0x8] sm:$0xff]
    %v820 = vld [vmem:[%s3 + $0x10] sm:$0xff]
    %v821 = vld [vmem:[%s3 + $0x18] sm:$0xff]
    %v822 = vld [vmem:[%s3 + $0x20] sm:$0xff]
    %v823 = vld [vmem:[%s3 + $0x28] sm:$0xff]
    %v824 = vld [vmem:[%s3 + $0x30] sm:$0xff]
    %v825 = vld [vmem:[%s3 + $0x38] sm:$0xff]
    %v826 = vld [vmem:[%s3 + $0x40] sm:$0xff]
    %v827 = vld [vmem:[%s3 + $0x48] sm:$0xff]
    %v828 = vld [vmem:[%s3 + $0x50] sm:$0xff]
    %v829 = vld [vmem:[%s3 + $0x58] sm:$0xff]
    %v830 = vld [vmem:[%s3 + $0x60] sm:$0xff]
    %v831 = vld [vmem:[%s3 + $0x68] sm:$0xff]
    %v832 = vld [vmem:[%s3 + $0x70] sm:$0xff]
    %v833 = vld [vmem:[%s3 + $0x78] sm:$0xff]
    %v834 = vld [vmem:[%s3 + $0x80] sm:$0xff]
    %v835 = vld [vmem:[%s3 + $0x88] sm:$0xff]
    %v836 = vld [vmem:[%s3 + $0x90] sm:$0xff]
    %v837 = vld [vmem:[%s3 + $0x98] sm:$0xff]
    %v838 = vld [vmem:[%s3 + $0xa0] sm:$0xff]
    %v839 = vld [vmem:[%s3 + $0xa8] sm:$0xff]
    %v840 = vld [vmem:[%s3 + $0xb0] sm:$0xff]
    %v841 = vld [vmem:[%s3 + $0xb8] sm:$0xff]
    %v842 = vld [vmem:[%s3 + $0xc0] sm:$0xff]
    %v843 = vld [vmem:[%s3 + $0xc8] sm:$0xff]
    %v844 = vld [vmem:[%s3 + $0xd0] sm:$0xff]
    %v845 = vld [vmem:[%s3 + $0xd8] sm:$0xff]
    %v846 = vld [vmem:[%s3 + $0xe0] sm:$0xff]
    %v847 = vld [vmem:[%s3 + $0xe8] sm:$0xff]
    %v848 = vld [vmem:[%s3 + $0xf0] sm:$0xff]
    %v849 = vld [vmem:[%s3 + $0xf8] sm:$0xff]
    %v850 = vld [vmem:[%s3 + $0x100] sm:$0xff]
    %v851 = vld [vmem:[%s3 + $0x108] sm:$0xff]
    %v852 = vld [vmem:[%s3 + $0x110] sm:$0xff]
    %v853 = vld [vmem:[%s3 + $0x118] sm:$0xff]
    %v854 = vld [vmem:[%s3 + $0x120] sm:$0xff]
    %v855 = vld [vmem:[%s3 + $0x128] sm:$0xff]
    %v856 = vld [vmem:[%s3 + $0x130] sm:$0xff]
    %v857 = vld [vmem:[%s3 + $0x138] sm:$0xff]
    %v858 = vld [vmem:[%s3 + $0x140] sm:$0xff]
    %v859 = vld [vmem:[%s3 + $0x148] sm:$0xff]
    %v860 = vld [vmem:[%s3 + $0x150] sm:$0xff]
    %v861 = vld [vmem:[%s3 + $0x158] sm:$0xff]
    %v862 = vld [vmem:[%s3 + $0x160] sm:$0xff]
    %v863 = vld [vmem:[%s3 + $0x168] sm:$0xff]
    %v864 = vld [vmem:[%s3 + $0x170] sm:$0xff]
    %v865 = vld [vmem:[%s3 + $0x178] sm:$0xff]
    %v866 = vld [vmem:[%s4] sm:$0x7]
    %v868 = vlaneseq
    %v869 = vshrl.u32 %v868, 7
    %v870 = vsub.s32 0, %v869
    %v871 = vrot.slane %v866, %v870
    %v872 = vlaneseq
    %v873 = vshrl.u32 %v872, 7
    %v874 = vsub.s32 1, %v873
    %v875 = vrot.slane %v866, %v874
    %v876 = vlaneseq
    %v877 = vshrl.u32 %v876, 7
    %v878 = vsub.s32 2, %v877
    %v879 = vrot.slane %v866, %v878
    %883 = vmatprep.subr.mxu0 %v819
    %884 = vmatpush1.msra.mxu0 %v818
    %885 = vmatprep.subr.mxu0 %v822
    %886 = vmatpush1.msra.mxu0 %v821
    %887 = vmatprep.subr.mxu0 %v825
    %888 = vmatpush1.msra.mxu0 %v824
    %889 = vmatprep.subr.mxu0 %v828
    %890 = vmatpush1.msra.mxu0 %v827
    %891 = vmatprep.subr.mxu0 %v831
    %892 = vmatpush1.msra.mxu0 %v830
    %893 = vmatprep.subr.mxu0 %v834
    %894 = vmatpush1.msra.mxu0 %v833
    %895 = vmatprep.subr.mxu0 %v837
    %896 = vmatpush1.msra.mxu0 %v836
    %897 = vmatprep.subr.mxu0 %v840
    %898 = vmatpush1.msra.mxu0 %v839
    %899 = vmatprep.subr.mxu0 %v843
    %900 = vmatpush1.msra.mxu0 %v842
    %901 = vmatprep.subr.mxu0 %v846
    %902 = vmatpush1.msra.mxu0 %v845
    %903 = vmatprep.subr.mxu0 %v849
    %904 = vmatpush1.msra.mxu0 %v848
    %905 = vmatprep.subr.mxu0 %v852
    %906 = vmatpush1.msra.mxu0 %v851
    %907 = vmatprep.subr.mxu0 %v855
    %908 = vmatpush1.msra.mxu0 %v854
    %909 = vmatprep.subr.mxu0 %v858
    %910 = vmatpush1.msra.mxu0 %v857
    %911 = vmatprep.subr.mxu0 %v861
    %912 = vmatpush1.msra.mxu0 %v860
    %913 = vmatprep.subr.mxu0 %v864
    %914 = vmatpush1.msra.mxu0 %v863
    %915 = vmatprep.subr.mxu0 0.0
    %916 = vmatpush1.msra.mxu0 0.0
    %917 = vmatprep.subr.mxu0 0.0
    %918 = vmatpush1.msra.mxu0 0.0
    %919 = vmatprep.subr.mxu0 0.0
    %920 = vmatpush1.msra.mxu0 0.0
    %921 = vmatprep.subr.mxu0 0.0
    %922 = vmatpush1.msra.mxu0 0.0
    %923 = vmatprep.subr.mxu0 0.0
    %924 = vmatpush1.msra.mxu0 0.0
    %925 = vmatprep.subr.mxu0 0.0
    %926 = vmatpush1.msra.mxu0 0.0
    %927 = vmatprep.subr.mxu0 0.0
    %928 = vmatpush1.msra.mxu0 0.0
    %929 = vmatprep.subr.mxu0 0.0
    %930 = vmatpush1.msra.mxu0 0.0
    %931 = vmatprep.subr.mxu0 0.0
    %932 = vmatpush1.msra.mxu0 0.0
    %933 = vmatprep.subr.mxu0 0.0
    %934 = vmatpush1.msra.mxu0 0.0
    %935 = vmatprep.subr.mxu0 0.0
    %936 = vmatpush1.msra.mxu0 0.0
    %937 = vmatprep.subr.mxu0 0.0
    %938 = vmatpush1.msra.mxu0 0.0
    %939 = vmatprep.subr.mxu0 0.0
    %940 = vmatpush1.msra.mxu0 0.0
    %941 = vmatprep.subr.mxu0 0.0
    %942 = vmatpush1.msra.mxu0 0.0
    %943 = vmatprep.subr.mxu0 0.0
    %944 = vmatpush1.msra.mxu0 0.0
    %945 = vmatprep.subr.mxu0 0.0
    %946 = vmatpush1.msra.mxu0 0.0
    %947 = vmatprep.mubr.f32.mxu0 0.0
    %948 = vmatmul.mubr.f32.gmra.mrb[0].mxu0 0.0
    %v949 = vpop.f32.mrb[0].mxu0
    %v950 = vadd.f32 %v871, %v949
    %v951 = vpop.f32.mrb[0].mxu0
    %v952 = vadd.f32 %v875, %v951
    %953 = vdwg.mxu0
    %954 = vmatprep.subr.mxu0 0.0
    %955 = vmatpush1.msra.mxu0 %v820
    %956 = vmatprep.subr.mxu0 0.0
    %957 = vmatpush1.msra.mxu0 %v823
    %958 = vmatprep.subr.mxu0 0.0
    %959 = vmatpush1.msra.mxu0 %v826
    %960 = vmatprep.subr.mxu0 0.0
    %961 = vmatpush1.msra.mxu0 %v829
    %962 = vmatprep.subr.mxu0 0.0
    %963 = vmatpush1.msra.mxu0 %v832
    %964 = vmatprep.subr.mxu0 0.0
    %965 = vmatpush1.msra.mxu0 %v835
    %966 = vmatprep.subr.mxu0 0.0
    %967 = vmatpush1.msra.mxu0 %v838
    %968 = vmatprep.subr.mxu0 0.0
    %969 = vmatpush1.msra.mxu0 %v841
    %970 = vmatprep.subr.mxu0 0.0
    %971 = vmatpush1.msra.mxu0 %v844
    %972 = vmatprep.subr.mxu0 0.0
    %973 = vmatpush1.msra.mxu0 %v847
    %974 = vmatprep.subr.mxu0 0.0
    %975 = vmatpush1.msra.mxu0 %v850
    %976 = vmatprep.subr.mxu0 0.0
    %977 = vmatpush1.msra.mxu0 %v853
    %978 = vmatprep.subr.mxu0 0.0
    %979 = vmatpush1.msra.mxu0 %v856
    %980 = vmatprep.subr.mxu0 0.0
    %981 = vmatpush1.msra.mxu0 %v859
    %982 = vmatprep.subr.mxu0 0.0
    %983 = vmatpush1.msra.mxu0 %v862
    %984 = vmatprep.subr.mxu0 0.0
    %985 = vmatpush1.msra.mxu0 %v865
    %986 = vmatprep.subr.mxu0 0.0
    %987 = vmatpush1.msra.mxu0 0.0
    %988 = vmatprep.subr.mxu0 0.0
    %989 = vmatpush1.msra.mxu0 0.0
    %990 = vmatprep.subr.mxu0 0.0
    %991 = vmatpush1.msra.mxu0 0.0
    %992 = vmatprep.subr.mxu0 0.0
    %993 = vmatpush1.msra.mxu0 0.0
    %994 = vmatprep.subr.mxu0 0.0
    %995 = vmatpush1.msra.mxu0 0.0
    %996 = vmatprep.subr.mxu0 0.0
    %997 = vmatpush1.msra.mxu0 0.0
    %998 = vmatprep.subr.mxu0 0.0
    %999 = vmatpush1.msra.mxu0 0.0
    %1000 = vmatprep.subr.mxu0 0.0
    %1001 = vmatpush1.msra.mxu0 0.0
    %1002 = vmatprep.subr.mxu0 0.0
    %1003 = vmatpush1.msra.mxu0 0.0
    %1004 = vmatprep.subr.mxu0 0.0
    %1005 = vmatpush1.msra.mxu0 0.0
    %1006 = vmatprep.subr.mxu0 0.0
    %1007 = vmatpush1.msra.mxu0 0.0
    %1008 = vmatprep.subr.mxu0 0.0
    %1009 = vmatpush1.msra.mxu0 0.0
    %1010 = vmatprep.subr.mxu0 0.0
    %1011 = vmatpush1.msra.mxu0 0.0
    %1012 = vmatprep.subr.mxu0 0.0
    %1013 = vmatpush1.msra.mxu0 0.0
    %1014 = vmatprep.subr.mxu0 0.0
    %1015 = vmatpush1.msra.mxu0 0.0
    %1016 = vmatprep.subr.mxu0 0.0
    %1017 = vmatpush1.msra.mxu0 0.0
    %1018 = vmatprep.mubr.f32.mxu0 0.0
    %1019 = vmatmul.mubr.f32.gmra.mrb[0].mxu0 0.0
    %v1020 = vpop.f32.mrb[0].mxu0
    %v1021 = vadd.f32 %v879, %v1020
    %v1022 = vpop.f32.mrb[0].mxu0
    %1023 = vdwg.mxu0
    %v1024 = vld [vmem:[#allocation2] sm:$0x3]
    %v1025 = vld [vmem:[#allocation2 + $0x8] sm:$0x3]
    %v1026 = vld [vmem:[#allocation2 + $0x20] sm:$0xc0]
    %v1027 = vld [vmem:[#allocation2 + $0x28] sm:$0xc0]
    %v1028 = vadd.f32 %v1024, %v950
    %v1029 = vxor.u32 %v1028, 2147483648
    %v1030 = vmul.f32 %v1029, 1.442695
    %v1031 = vpow.pop %v1030
    %v1032 = vadd.f32 %v1031, 1.0
    %v1033 = vrcp.pop %v1032
    %v1034 = vmul.f32 1.0, %v1033
    %v1035 = vmul.f32 %v1034, %v952
    %v1036 = vadd.f32 %v1025, %v1035
    %v1037 = vtanh.pop %v1036
    %v1038 = vsub.f32 1.0, %v1034
    %1040 = vrot.lane.b32.xlu0 %v1037, 64
    %v1041 = vpop.permute.xlu0 %1040
    %v1043 = vmul.f32 %v1038, %v1041
    %v1044 = vmul.f32 %v1034, 0.0
    %v1045 = vadd.f32 %v1043, %v1044
    %v1047 = vrot.slane %v952, 2
    %v1049 = vadd.f32 %v1026, %v1047
    %v1050 = vxor.u32 %v1049, 2147483648
    %v1051 = vmul.f32 %v1050, 1.442695
    %v1052 = vpow.pop %v1051
    %v1053 = vadd.f32 %v1052, 1.0
    %v1054 = vrcp.pop %v1053
    %v1055 = vmul.f32 1.0, %v1054
    %v1057 = vrot.slane %v1021, 2
    %v1059 = vadd.f32 %v1027, %v1057
    %v1060 = vxor.u32 %v1059, 2147483648
    %v1061 = vmul.f32 %v1060, 1.442695
    %v1062 = vpow.pop %v1061
    %v1063 = vadd.f32 %v1062, 1.0
    %v1064 = vrcp.pop %v1063
    %v1065 = vmul.f32 1.0, %v1064
    %v1066 = vmul.f32 %v1055, %v1057
    %v1067 = vadd.f32 %v1027, %v1066
    %v1068 = vtanh.pop %v1067
    %v1069 = vsub.f32 1.0, %v1065
    %1071 = vrot.lane.b32.xlu0 %v1068, 64
    %v1072 = vpop.permute.xlu0 %1071
    %v1074 = vmul.f32 %v1069, %v1072
    %v1075 = vmul.f32 %v1065, 0.0
    %v1076 = vadd.f32 %v1074, %v1075
    %1078 = vrot.lane.b32.xlu0 %v1045, 64
    %v1079 = vpop.permute.xlu0 %1078
    %v1082 = vrot.slane %v1076, 6
    %1083 = vrot.lane.b32.xlu0 %v1082, 64
    %v1084 = vpop.permute.xlu0 %1083
    %vm1086 = vcmask 523264
    %v1087 = vsel %vm1086, %v1079, %v1084
    %vm1088 = vcmask 517120
    %1089 = vst.msk [vmem:[#allocation3] sm:$0x3] %vm1088, %v1079
    %1090 = vrot.lane.b32.xlu0 %v1076, 64
    %v1091 = vpop.permute.xlu0 %1090
    %vm1093 = vcmask 1048070
    %1094 = vst.msk [vmem:[#allocation3 + $0x8] sm:$0xc0] %vm1093, %v1091
    %v1095 = vld [vmem:[%s3] sm:$0xff]
    %v1096 = vld [vmem:[%s3 + $0x8] sm:$0xff]
    %v1097 = vld [vmem:[%s3 + $0x10] sm:$0xff]
    %v1098 = vld [vmem:[%s3 + $0x18] sm:$0xff]
    %v1099 = vld [vmem:[%s3 + $0x20] sm:$0xff]
    %v1100 = vld [vmem:[%s3 + $0x28] sm:$0xff]
    %v1101 = vld [vmem:[%s3 + $0x30] sm:$0xff]
    %v1102 = vld [vmem:[%s3 + $0x38] sm:$0xff]
    %v1103 = vld [vmem:[%s3 + $0x40] sm:$0xff]
    %v1104 = vld [vmem:[%s3 + $0x48] sm:$0xff]
    %v1105 = vld [vmem:[%s3 + $0x50] sm:$0xff]
    %v1106 = vld [vmem:[%s3 + $0x58] sm:$0xff]
    %v1107 = vld [vmem:[%s3 + $0x60] sm:$0xff]
    %v1108 = vld [vmem:[%s3 + $0x68] sm:$0xff]
    %v1109 = vld [vmem:[%s3 + $0x70] sm:$0xff]
    %v1110 = vld [vmem:[%s3 + $0x78] sm:$0xff]
    %v1111 = vld [vmem:[%s3 + $0x80] sm:$0xff]
    %v1112 = vld [vmem:[%s3 + $0x88] sm:$0xff]
    %v1113 = vld [vmem:[%s3 + $0x90] sm:$0xff]
    %v1114 = vld [vmem:[%s3 + $0x98] sm:$0xff]
    %v1115 = vld [vmem:[%s3 + $0xa0] sm:$0xff]
    %v1116 = vld [vmem:[%s3 + $0xa8] sm:$0xff]
    %v1117 = vld [vmem:[%s3 + $0xb0] sm:$0xff]
    %v1118 = vld [vmem:[%s3 + $0xb8] sm:$0xff]
    %v1119 = vld [vmem:[%s3 + $0xc0] sm:$0xff]
    %v1120 = vld [vmem:[%s3 + $0xc8] sm:$0xff]
    %v1121 = vld [vmem:[%s3 + $0xd0] sm:$0xff]
    %v1122 = vld [vmem:[%s3 + $0xd8] sm:$0xff]
    %v1123 = vld [vmem:[%s3 + $0xe0] sm:$0xff]
    %v1124 = vld [vmem:[%s3 + $0xe8] sm:$0xff]
    %v1125 = vld [vmem:[%s3 + $0xf0] sm:$0xff]
    %v1126 = vld [vmem:[%s3 + $0xf8] sm:$0xff]
    %v1127 = vld [vmem:[%s3 + $0x100] sm:$0xff]
    %v1128 = vld [vmem:[%s3 + $0x108] sm:$0xff]
    %v1129 = vld [vmem:[%s3 + $0x110] sm:$0xff]
    %v1130 = vld [vmem:[%s3 + $0x118] sm:$0xff]
    %v1131 = vld [vmem:[%s3 + $0x120] sm:$0xff]
    %v1132 = vld [vmem:[%s3 + $0x128] sm:$0xff]
    %v1133 = vld [vmem:[%s3 + $0x130] sm:$0xff]
    %v1134 = vld [vmem:[%s3 + $0x138] sm:$0xff]
    %v1135 = vld [vmem:[%s3 + $0x140] sm:$0xff]
    %v1136 = vld [vmem:[%s3 + $0x148] sm:$0xff]
    %v1137 = vld [vmem:[%s3 + $0x150] sm:$0xff]
    %v1138 = vld [vmem:[%s3 + $0x158] sm:$0xff]
    %v1139 = vld [vmem:[%s3 + $0x160] sm:$0xff]
    %v1140 = vld [vmem:[%s3 + $0x168] sm:$0xff]
    %v1141 = vld [vmem:[%s3 + $0x170] sm:$0xff]
    %v1142 = vld [vmem:[%s3 + $0x178] sm:$0xff]
    %v1143 = vld [vmem:[%s4] sm:$0x7]
    %v1145 = vlaneseq
    %v1146 = vshrl.u32 %v1145, 7
    %v1147 = vsub.s32 0, %v1146
    %v1148 = vrot.slane %v1143, %v1147
    %v1149 = vlaneseq
    %v1150 = vshrl.u32 %v1149, 7
    %v1151 = vsub.s32 1, %v1150
    %v1152 = vrot.slane %v1143, %v1151
    %v1153 = vlaneseq
    %v1154 = vshrl.u32 %v1153, 7
    %v1155 = vsub.s32 2, %v1154
    %v1156 = vrot.slane %v1143, %v1155
    %1160 = vmatprep.subr.mxu0 %v1096
    %1161 = vmatpush1.msra.mxu0 %v1095
    %1162 = vmatprep.subr.mxu0 %v1099
    %1163 = vmatpush1.msra.mxu0 %v1098
    %1164 = vmatprep.subr.mxu0 %v1102
    %1165 = vmatpush1.msra.mxu0 %v1101
    %1166 = vmatprep.subr.mxu0 %v1105
    %1167 = vmatpush1.msra.mxu0 %v1104
    %1168 = vmatprep.subr.mxu0 %v1108
    %1169 = vmatpush1.msra.mxu0 %v1107
    %1170 = vmatprep.subr.mxu0 %v1111
    %1171 = vmatpush1.msra.mxu0 %v1110
    %1172 = vmatprep.subr.mxu0 %v1114
    %1173 = vmatpush1.msra.mxu0 %v1113
    %1174 = vmatprep.subr.mxu0 %v1117
    %1175 = vmatpush1.msra.mxu0 %v1116
    %1176 = vmatprep.subr.mxu0 %v1120
    %1177 = vmatpush1.msra.mxu0 %v1119
    %1178 = vmatprep.subr.mxu0 %v1123
    %1179 = vmatpush1.msra.mxu0 %v1122
    %1180 = vmatprep.subr.mxu0 %v1126
    %1181 = vmatpush1.msra.mxu0 %v1125
    %1182 = vmatprep.subr.mxu0 %v1129
    %1183 = vmatpush1.msra.mxu0 %v1128
    %1184 = vmatprep.subr.mxu0 %v1132
    %1185 = vmatpush1.msra.mxu0 %v1131
    %1186 = vmatprep.subr.mxu0 %v1135
    %1187 = vmatpush1.msra.mxu0 %v1134
    %1188 = vmatprep.subr.mxu0 %v1138
    %1189 = vmatpush1.msra.mxu0 %v1137
    %1190 = vmatprep.subr.mxu0 %v1141
    %1191 = vmatpush1.msra.mxu0 %v1140
    %1192 = vmatprep.subr.mxu0 0.0
    %1193 = vmatpush1.msra.mxu0 0.0
    %1194 = vmatprep.subr.mxu0 0.0
    %1195 = vmatpush1.msra.mxu0 0.0
    %1196 = vmatprep.subr.mxu0 0.0
    %1197 = vmatpush1.msra.mxu0 0.0
    %1198 = vmatprep.subr.mxu0 0.0
    %1199 = vmatpush1.msra.mxu0 0.0
    %1200 = vmatprep.subr.mxu0 0.0
    %1201 = vmatpush1.msra.mxu0 0.0
    %1202 = vmatprep.subr.mxu0 0.0
    %1203 = vmatpush1.msra.mxu0 0.0
    %1204 = vmatprep.subr.mxu0 0.0
    %1205 = vmatpush1.msra.mxu0 0.0
    %1206 = vmatprep.subr.mxu0 0.0
    %1207 = vmatpush1.msra.mxu0 0.0
    %1208 = vmatprep.subr.mxu0 0.0
    %1209 = vmatpush1.msra.mxu0 0.0
    %1210 = vmatprep.subr.mxu0 0.0
    %1211 = vmatpush1.msra.mxu0 0.0
    %1212 = vmatprep.subr.mxu0 0.0
    %1213 = vmatpush1.msra.mxu0 0.0
    %1214 = vmatprep.subr.mxu0 0.0
    %1215 = vmatpush1.msra.mxu0 0.0
    %1216 = vmatprep.subr.mxu0 0.0
    %1217 = vmatpush1.msra.mxu0 0.0
    %1218 = vmatprep.subr.mxu0 0.0
    %1219 = vmatpush1.msra.mxu0 0.0
    %1220 = vmatprep.subr.mxu0 0.0
    %1221 = vmatpush1.msra.mxu0 0.0
    %1222 = vmatprep.subr.mxu0 0.0
    %1223 = vmatpush1.msra.mxu0 0.0
    %1224 = vmatprep.mubr.f32.mxu0 0.0
    %1225 = vmatmul.mubr.f32.gmra.mrb[0].mxu0 %v1087
    %v1226 = vpop.f32.mrb[0].mxu0
    %v1227 = vadd.f32 %v1148, %v1226
    %v1228 = vpop.f32.mrb[0].mxu0
    %v1229 = vadd.f32 %v1152, %v1228
    %1230 = vdwg.mxu0
    %1231 = vmatprep.subr.mxu0 0.0
    %1232 = vmatpush1.msra.mxu0 %v1097
    %1233 = vmatprep.subr.mxu0 0.0
    %1234 = vmatpush1.msra.mxu0 %v1100
    %1235 = vmatprep.subr.mxu0 0.0
    %1236 = vmatpush1.msra.mxu0 %v1103
    %1237 = vmatprep.subr.mxu0 0.0
    %1238 = vmatpush1.msra.mxu0 %v1106
    %1239 = vmatprep.subr.mxu0 0.0
    %1240 = vmatpush1.msra.mxu0 %v1109
    %1241 = vmatprep.subr.mxu0 0.0
    %1242 = vmatpush1.msra.mxu0 %v1112
    %1243 = vmatprep.subr.mxu0 0.0
    %1244 = vmatpush1.msra.mxu0 %v1115
    %1245 = vmatprep.subr.mxu0 0.0
    %1246 = vmatpush1.msra.mxu0 %v1118
    %1247 = vmatprep.subr.mxu0 0.0
    %1248 = vmatpush1.msra.mxu0 %v1121
    %1249 = vmatprep.subr.mxu0 0.0
    %1250 = vmatpush1.msra.mxu0 %v1124
    %1251 = vmatprep.subr.mxu0 0.0
    %1252 = vmatpush1.msra.mxu0 %v1127
    %1253 = vmatprep.subr.mxu0 0.0
    %1254 = vmatpush1.msra.mxu0 %v1130
    %1255 = vmatprep.subr.mxu0 0.0
    %1256 = vmatpush1.msra.mxu0 %v1133
    %1257 = vmatprep.subr.mxu0 0.0
    %1258 = vmatpush1.msra.mxu0 %v1136
    %1259 = vmatprep.subr.mxu0 0.0
    %1260 = vmatpush1.msra.mxu0 %v1139
    %1261 = vmatprep.subr.mxu0 0.0
    %1262 = vmatpush1.msra.mxu0 %v1142
    %1263 = vmatprep.subr.mxu0 0.0
    %1264 = vmatpush1.msra.mxu0 0.0
    %1265 = vmatprep.subr.mxu0 0.0
    %1266 = vmatpush1.msra.mxu0 0.0
    %1267 = vmatprep.subr.mxu0 0.0
    %1268 = vmatpush1.msra.mxu0 0.0
    %1269 = vmatprep.subr.mxu0 0.0
    %1270 = vmatpush1.msra.mxu0 0.0
    %1271 = vmatprep.subr.mxu0 0.0
    %1272 = vmatpush1.msra.mxu0 0.0
    %1273 = vmatprep.subr.mxu0 0.0
    %1274 = vmatpush1.msra.mxu0 0.0
    %1275 = vmatprep.subr.mxu0 0.0
    %1276 = vmatpush1.msra.mxu0 0.0
    %1277 = vmatprep.subr.mxu0 0.0
    %1278 = vmatpush1.msra.mxu0 0.0
    %1279 = vmatprep.subr.mxu0 0.0
    %1280 = vmatpush1.msra.mxu0 0.0
    %1281 = vmatprep.subr.mxu0 0.0
    %1282 = vmatpush1.msra.mxu0 0.0
    %1283 = vmatprep.subr.mxu0 0.0
    %1284 = vmatpush1.msra.mxu0 0.0
    %1285 = vmatprep.subr.mxu0 0.0
    %1286 = vmatpush1.msra.mxu0 0.0
    %1287 = vmatprep.subr.mxu0 0.0
    %1288 = vmatpush1.msra.mxu0 0.0
    %1289 = vmatprep.subr.mxu0 0.0
    %1290 = vmatpush1.msra.mxu0 0.0
    %1291 = vmatprep.subr.mxu0 0.0
    %1292 = vmatpush1.msra.mxu0 0.0
    %1293 = vmatprep.subr.mxu0 0.0
    %1294 = vmatpush1.msra.mxu0 0.0
    %1295 = vmatprep.mubr.f32.mxu0 0.0
    %1296 = vmatmul.mubr.f32.gmra.mrb[0].mxu0 %v1087
    %v1297 = vpop.f32.mrb[0].mxu0
    %v1298 = vadd.f32 %v1156, %v1297
    %v1299 = vpop.f32.mrb[0].mxu0
    %1300 = vdwg.mxu0
    %v1301 = vld [vmem:[#allocation2] sm:$0xc]
    %v1302 = vld [vmem:[#allocation2 + $0x8] sm:$0xc]
    %v1303 = vld [vmem:[#allocation2 + $0x20] sm:$0x30]
    %v1304 = vld [vmem:[#allocation2 + $0x28] sm:$0x30]
    %v1306 = vrot.slane %v1227, 6
    %v1308 = vadd.f32 %v1301, %v1306
    %v1309 = vxor.u32 %v1308, 2147483648
    %v1310 = vmul.f32 %v1309, 1.442695
    %v1311 = vpow.pop %v1310
    %v1312 = vadd.f32 %v1311, 1.0
    %v1313 = vrcp.pop %v1312
    %v1314 = vmul.f32 1.0, %v1313
    %v1316 = vrot.slane %v1229, 6
    %v1318 = vmul.f32 %v1314, %v1316
    %v1319 = vadd.f32 %v1302, %v1318
    %v1320 = vtanh.pop %v1319
    %v1321 = vsub.f32 1.0, %v1314
    %1323 = vrot.lane.b32.xlu0 %v1320, 64
    %v1324 = vpop.permute.xlu0 %1323
    %v1326 = vmul.f32 %v1321, %v1324
    %v1328 = vrot.slane %v1087, 6
    %1329 = vrot.lane.b32.xlu0 %v1328, 64
    %v1330 = vpop.permute.xlu0 %1329
    %v1332 = vmul.f32 %v1314, %v1330
    %v1333 = vadd.f32 %v1326, %v1332
    %v1334 = vrot.slane %v1229, 4
    %v1336 = vadd.f32 %v1303, %v1334
    %v1337 = vxor.u32 %v1336, 2147483648
    %v1338 = vmul.f32 %v1337, 1.442695
    %v1339 = vpow.pop %v1338
    %v1340 = vadd.f32 %v1339, 1.0
    %v1341 = vrcp.pop %v1340
    %v1342 = vmul.f32 1.0, %v1341
    %v1344 = vrot.slane %v1298, 4
    %v1346 = vadd.f32 %v1304, %v1344
    %v1347 = vxor.u32 %v1346, 2147483648
    %v1348 = vmul.f32 %v1347, 1.442695
    %v1349 = vpow.pop %v1348
    %v1350 = vadd.f32 %v1349, 1.0
    %v1351 = vrcp.pop %v1350
    %v1352 = vmul.f32 1.0, %v1351
    %v1353 = vmul.f32 %v1342, %v1344
    %v1354 = vadd.f32 %v1304, %v1353
    %v1355 = vtanh.pop %v1354
    %v1356 = vsub.f32 1.0, %v1352
    %1358 = vrot.lane.b32.xlu0 %v1355, 64
    %v1359 = vpop.permute.xlu0 %1358
    %v1361 = vmul.f32 %v1356, %v1359
    %v1362 = vrot.slane %v1087, 4
    %1363 = vrot.lane.b32.xlu0 %v1362, 64
    %v1364 = vpop.permute.xlu0 %1363
    %v1366 = vmul.f32 %v1352, %v1364
    %v1367 = vadd.f32 %v1361, %v1366
    %1369 = vrot.lane.b32.xlu0 %v1333, 64
    %v1370 = vpop.permute.xlu0 %1369
    %v1373 = vrot.slane %v1367, 2
    %1374 = vrot.lane.b32.xlu0 %v1373, 64
    %v1375 = vpop.permute.xlu0 %1374
    %v1377 = vsel %vm1086, %v1370, %v1375
    %vm1378 = vcmask 519170
    %1379 = vst.msk [vmem:[#allocation3] sm:$0xc] %vm1378, %v1370
    %1380 = vrot.lane.b32.xlu0 %v1367, 64
    %v1381 = vpop.permute.xlu0 %1380
    %vm1383 = vcmask 1046020
    %1384 = vst.msk [vmem:[#allocation3 + $0x8] sm:$0x30] %vm1383, %v1381
    %v1385 = vld [vmem:[%s3] sm:$0xff]
    %v1386 = vld [vmem:[%s3 + $0x8] sm:$0xff]
    %v1387 = vld [vmem:[%s3 + $0x10] sm:$0xff]
    %v1388 = vld [vmem:[%s3 + $0x18] sm:$0xff]
    %v1389 = vld [vmem:[%s3 + $0x20] sm:$0xff]
    %v1390 = vld [vmem:[%s3 + $0x28] sm:$0xff]
    %v1391 = vld [vmem:[%s3 + $0x30] sm:$0xff]
    %v1392 = vld [vmem:[%s3 + $0x38] sm:$0xff]
    %v1393 = vld [vmem:[%s3 + $0x40] sm:$0xff]
    %v1394 = vld [vmem:[%s3 + $0x48] sm:$0xff]
    %v1395 = vld [vmem:[%s3 + $0x50] sm:$0xff]
    %v1396 = vld [vmem:[%s3 + $0x58] sm:$0xff]
    %v1397 = vld [vmem:[%s3 + $0x60] sm:$0xff]
    %v1398 = vld [vmem:[%s3 + $0x68] sm:$0xff]
    %v1399 = vld [vmem:[%s3 + $0x70] sm:$0xff]
    %v1400 = vld [vmem:[%s3 + $0x78] sm:$0xff]
    %v1401 = vld [vmem:[%s3 + $0x80] sm:$0xff]
    %v1402 = vld [vmem:[%s3 + $0x88] sm:$0xff]
    %v1403 = vld [vmem:[%s3 + $0x90] sm:$0xff]
    %v1404 = vld [vmem:[%s3 + $0x98] sm:$0xff]
    %v1405 = vld [vmem:[%s3 + $0xa0] sm:$0xff]
    %v1406 = vld [vmem:[%s3 + $0xa8] sm:$0xff]
    %v1407 = vld [vmem:[%s3 + $0xb0] sm:$0xff]
    %v1408 = vld [vmem:[%s3 + $0xb8] sm:$0xff]
    %v1409 = vld [vmem:[%s3 + $0xc0] sm:$0xff]
    %v1410 = vld [vmem:[%s3 + $0xc8] sm:$0xff]
    %v1411 = vld [vmem:[%s3 + $0xd0] sm:$0xff]
    %v1412 = vld [vmem:[%s3 + $0xd8] sm:$0xff]
    %v1413 = vld [vmem:[%s3 + $0xe0] sm:$0xff]
    %v1414 = vld [vmem:[%s3 + $0xe8] sm:$0xff]
    %v1415 = vld [vmem:[%s3 + $0xf0] sm:$0xff]
    %v1416 = vld [vmem:[%s3 + $0xf8] sm:$0xff]
    %v1417 = vld [vmem:[%s3 + $0x100] sm:$0xff]
    %v1418 = vld [vmem:[%s3 + $0x108] sm:$0xff]
    %v1419 = vld [vmem:[%s3 + $0x110] sm:$0xff]
    %v1420 = vld [vmem:[%s3 + $0x118] sm:$0xff]
    %v1421 = vld [vmem:[%s3 + $0x120] sm:$0xff]
    %v1422 = vld [vmem:[%s3 + $0x128] sm:$0xff]
    %v1423 = vld [vmem:[%s3 + $0x130] sm:$0xff]
    %v1424 = vld [vmem:[%s3 + $0x138] sm:$0xff]
    %v1425 = vld [vmem:[%s3 + $0x140] sm:$0xff]
    %v1426 = vld [vmem:[%s3 + $0x148] sm:$0xff]
    %v1427 = vld [vmem:[%s3 + $0x150] sm:$0xff]
    %v1428 = vld [vmem:[%s3 + $0x158] sm:$0xff]
    %v1429 = vld [vmem:[%s3 + $0x160] sm:$0xff]
    %v1430 = vld [vmem:[%s3 + $0x168] sm:$0xff]
    %v1431 = vld [vmem:[%s3 + $0x170] sm:$0xff]
    %v1432 = vld [vmem:[%s3 + $0x178] sm:$0xff]
    %v1433 = vld [vmem:[%s4] sm:$0x7]
    %v1435 = vlaneseq
    %v1436 = vshrl.u32 %v1435, 7
    %v1437 = vsub.s32 0, %v1436
    %v1438 = vrot.slane %v1433, %v1437
    %v1439 = vlaneseq
    %v1440 = vshrl.u32 %v1439, 7
    %v1441 = vsub.s32 1, %v1440
    %v1442 = vrot.slane %v1433, %v1441
    %v1443 = vlaneseq
    %v1444 = vshrl.u32 %v1443, 7
    %v1445 = vsub.s32 2, %v1444
    %v1446 = vrot.slane %v1433, %v1445
    %v1451 = vrot.slane %v1377, 2
    %1453 = vmatprep.subr.mxu0 %v1386
    %1454 = vmatpush1.msra.mxu0 %v1385
    %1455 = vmatprep.subr.mxu0 %v1389
    %1456 = vmatpush1.msra.mxu0 %v1388
    %1457 = vmatprep.subr.mxu0 %v1392
    %1458 = vmatpush1.msra.mxu0 %v1391
    %1459 = vmatprep.subr.mxu0 %v1395
    %1460 = vmatpush1.msra.mxu0 %v1394
    %1461 = vmatprep.subr.mxu0 %v1398
    %1462 = vmatpush1.msra.mxu0 %v1397
    %1463 = vmatprep.subr.mxu0 %v1401
    %1464 = vmatpush1.msra.mxu0 %v1400
    %1465 = vmatprep.subr.mxu0 %v1404
    %1466 = vmatpush1.msra.mxu0 %v1403
    %1467 = vmatprep.subr.mxu0 %v1407
    %1468 = vmatpush1.msra.mxu0 %v1406
    %1469 = vmatprep.subr.mxu0 %v1410
    %1470 = vmatpush1.msra.mxu0 %v1409
    %1471 = vmatprep.subr.mxu0 %v1413
    %1472 = vmatpush1.msra.mxu0 %v1412
    %1473 = vmatprep.subr.mxu0 %v1416
    %1474 = vmatpush1.msra.mxu0 %v1415
    %1475 = vmatprep.subr.mxu0 %v1419
    %1476 = vmatpush1.msra.mxu0 %v1418
    %1477 = vmatprep.subr.mxu0 %v1422
    %1478 = vmatpush1.msra.mxu0 %v1421
    %1479 = vmatprep.subr.mxu0 %v1425
    %1480 = vmatpush1.msra.mxu0 %v1424
    %1481 = vmatprep.subr.mxu0 %v1428
    %1482 = vmatpush1.msra.mxu0 %v1427
    %1483 = vmatprep.subr.mxu0 %v1431
    %1484 = vmatpush1.msra.mxu0 %v1430
    %1485 = vmatprep.subr.mxu0 0.0
    %1486 = vmatpush1.msra.mxu0 0.0
    %1487 = vmatprep.subr.mxu0 0.0
    %1488 = vmatpush1.msra.mxu0 0.0
    %1489 = vmatprep.subr.mxu0 0.0
    %1490 = vmatpush1.msra.mxu0 0.0
    %1491 = vmatprep.subr.mxu0 0.0
    %1492 = vmatpush1.msra.mxu0 0.0
    %1493 = vmatprep.subr.mxu0 0.0
    %1494 = vmatpush1.msra.mxu0 0.0
    %1495 = vmatprep.subr.mxu0 0.0
    %1496 = vmatpush1.msra.mxu0 0.0
    %1497 = vmatprep.subr.mxu0 0.0
    %1498 = vmatpush1.msra.mxu0 0.0
    %1499 = vmatprep.subr.mxu0 0.0
    %1500 = vmatpush1.msra.mxu0 0.0
    %1501 = vmatprep.subr.mxu0 0.0
    %1502 = vmatpush1.msra.mxu0 0.0
    %1503 = vmatprep.subr.mxu0 0.0
    %1504 = vmatpush1.msra.mxu0 0.0
    %1505 = vmatprep.subr.mxu0 0.0
    %1506 = vmatpush1.msra.mxu0 0.0
    %1507 = vmatprep.subr.mxu0 0.0
    %1508 = vmatpush1.msra.mxu0 0.0
    %1509 = vmatprep.subr.mxu0 0.0
    %1510 = vmatpush1.msra.mxu0 0.0
    %1511 = vmatprep.subr.mxu0 0.0
    %1512 = vmatpush1.msra.mxu0 0.0
    %1513 = vmatprep.subr.mxu0 0.0
    %1514 = vmatpush1.msra.mxu0 0.0
    %1515 = vmatprep.subr.mxu0 0.0
    %1516 = vmatpush1.msra.mxu0 0.0
    %1517 = vmatprep.mubr.f32.mxu0 0.0
    %1518 = vmatmul.mubr.f32.gmra.mrb[0].mxu0 %v1451
    %v1519 = vpop.f32.mrb[0].mxu0
    %v1520 = vadd.f32 %v1438, %v1519
    %v1521 = vpop.f32.mrb[0].mxu0
    %v1522 = vadd.f32 %v1442, %v1521
    %1523 = vdwg.mxu0
    %1524 = vmatprep.subr.mxu0 0.0
    %1525 = vmatpush1.msra.mxu0 %v1387
    %1526 = vmatprep.subr.mxu0 0.0
    %1527 = vmatpush1.msra.mxu0 %v1390
    %1528 = vmatprep.subr.mxu0 0.0
    %1529 = vmatpush1.msra.mxu0 %v1393
    %1530 = vmatprep.subr.mxu0 0.0
    %1531 = vmatpush1.msra.mxu0 %v1396
    %1532 = vmatprep.subr.mxu0 0.0
    %1533 = vmatpush1.msra.mxu0 %v1399
    %1534 = vmatprep.subr.mxu0 0.0
    %1535 = vmatpush1.msra.mxu0 %v1402
    %1536 = vmatprep.subr.mxu0 0.0
    %1537 = vmatpush1.msra.mxu0 %v1405
    %1538 = vmatprep.subr.mxu0 0.0
    %1539 = vmatpush1.msra.mxu0 %v1408
    %1540 = vmatprep.subr.mxu0 0.0
    %1541 = vmatpush1.msra.mxu0 %v1411
    %1542 = vmatprep.subr.mxu0 0.0
    %1543 = vmatpush1.msra.mxu0 %v1414
    %1544 = vmatprep.subr.mxu0 0.0
    %1545 = vmatpush1.msra.mxu0 %v1417
    %1546 = vmatprep.subr.mxu0 0.0
    %1547 = vmatpush1.msra.mxu0 %v1420
    %1548 = vmatprep.subr.mxu0 0.0
    %1549 = vmatpush1.msra.mxu0 %v1423
    %1550 = vmatprep.subr.mxu0 0.0
    %1551 = vmatpush1.msra.mxu0 %v1426
    %1552 = vmatprep.subr.mxu0 0.0
    %1553 = vmatpush1.msra.mxu0 %v1429
    %1554 = vmatprep.subr.mxu0 0.0
    %1555 = vmatpush1.msra.mxu0 %v1432
    %1556 = vmatprep.subr.mxu0 0.0
    %1557 = vmatpush1.msra.mxu0 0.0
    %1558 = vmatprep.subr.mxu0 0.0
    %1559 = vmatpush1.msra.mxu0 0.0
    %1560 = vmatprep.subr.mxu0 0.0
    %1561 = vmatpush1.msra.mxu0 0.0
    %1562 = vmatprep.subr.mxu0 0.0
    %1563 = vmatpush1.msra.mxu0 0.0
    %1564 = vmatprep.subr.mxu0 0.0
    %1565 = vmatpush1.msra.mxu0 0.0
    %1566 = vmatprep.subr.mxu0 0.0
    %1567 = vmatpush1.msra.mxu0 0.0
    %1568 = vmatprep.subr.mxu0 0.0
    %1569 = vmatpush1.msra.mxu0 0.0
    %1570 = vmatprep.subr.mxu0 0.0
    %1571 = vmatpush1.msra.mxu0 0.0
    %1572 = vmatprep.subr.mxu0 0.0
    %1573 = vmatpush1.msra.mxu0 0.0
    %1574 = vmatprep.subr.mxu0 0.0
    %1575 = vmatpush1.msra.mxu0 0.0
    %1576 = vmatprep.subr.mxu0 0.0
    %1577 = vmatpush1.msra.mxu0 0.0
    %1578 = vmatprep.subr.mxu0 0.0
    %1579 = vmatpush1.msra.mxu0 0.0
    %1580 = vmatprep.subr.mxu0 0.0
    %1581 = vmatpush1.msra.mxu0 0.0
    %1582 = vmatprep.subr.mxu0 0.0
    %1583 = vmatpush1.msra.mxu0 0.0
    %1584 = vmatprep.subr.mxu0 0.0
    %1585 = vmatpush1.msra.mxu0 0.0
    %1586 = vmatprep.subr.mxu0 0.0
    %1587 = vmatpush1.msra.mxu0 0.0
    %1588 = vmatprep.mubr.f32.mxu0 0.0
    %1589 = vmatmul.mubr.f32.gmra.mrb[0].mxu0 %v1451
    %v1590 = vpop.f32.mrb[0].mxu0
    %v1591 = vadd.f32 %v1446, %v1590
    %v1592 = vpop.f32.mrb[0].mxu0
    %1593 = vdwg.mxu0
    %v1594 = vld [vmem:[#allocation2] sm:$0x30]
    %v1595 = vld [vmem:[#allocation2 + $0x8] sm:$0x30]
    %v1596 = vld [vmem:[#allocation2 + $0x20] sm:$0xc]
    %v1597 = vld [vmem:[#allocation2 + $0x28] sm:$0xc]
    %v1599 = vrot.slane %v1520, 4
    %v1601 = vadd.f32 %v1594, %v1599
    %v1602 = vxor.u32 %v1601, 2147483648
    %v1603 = vmul.f32 %v1602, 1.442695
    %v1604 = vpow.pop %v1603
    %v1605 = vadd.f32 %v1604, 1.0
    %v1606 = vrcp.pop %v1605
    %v1607 = vmul.f32 1.0, %v1606
    %v1609 = vrot.slane %v1522, 4
    %v1611 = vmul.f32 %v1607, %v1609
    %v1612 = vadd.f32 %v1595, %v1611
    %v1613 = vtanh.pop %v1612
    %v1614 = vsub.f32 1.0, %v1607
    %1616 = vrot.lane.b32.xlu0 %v1613, 64
    %v1617 = vpop.permute.xlu0 %1616
    %v1619 = vmul.f32 %v1614, %v1617
    %v1620 = vrot.slane %v1377, 6
    %1621 = vrot.lane.b32.xlu0 %v1620, 64
    %v1622 = vpop.permute.xlu0 %1621
    %v1624 = vmul.f32 %v1607, %v1622
    %v1625 = vadd.f32 %v1619, %v1624
    %v1626 = vrot.slane %v1522, 6
    %v1628 = vadd.f32 %v1596, %v1626
    %v1629 = vxor.u32 %v1628, 2147483648
    %v1630 = vmul.f32 %v1629, 1.442695
    %v1631 = vpow.pop %v1630
    %v1632 = vadd.f32 %v1631, 1.0
    %v1633 = vrcp.pop %v1632
    %v1634 = vmul.f32 1.0, %v1633
    %v1636 = vrot.slane %v1591, 6
    %v1638 = vadd.f32 %v1597, %v1636
    %v1639 = vxor.u32 %v1638, 2147483648
    %v1640 = vmul.f32 %v1639, 1.442695
    %v1641 = vpow.pop %v1640
    %v1642 = vadd.f32 %v1641, 1.0
    %v1643 = vrcp.pop %v1642
    %v1644 = vmul.f32 1.0, %v1643
    %v1645 = vmul.f32 %v1634, %v1636
    %v1646 = vadd.f32 %v1597, %v1645
    %v1647 = vtanh.pop %v1646
    %v1648 = vsub.f32 1.0, %v1644
    %1650 = vrot.lane.b32.xlu0 %v1647, 64
    %v1651 = vpop.permute.xlu0 %1650
    %v1653 = vmul.f32 %v1648, %v1651
    %1654 = vrot.lane.b32.xlu0 %v1377, 64
    %v1655 = vpop.permute.xlu0 %1654
    %v1657 = vmul.f32 %v1644, %v1655
    %v1658 = vadd.f32 %v1653, %v1657
    %1660 = vrot.lane.b32.xlu0 %v1625, 64
    %v1661 = vpop.permute.xlu0 %1660
    %v1664 = vrot.slane %v1658, 6
    %1665 = vrot.lane.b32.xlu0 %v1664, 64
    %v1666 = vpop.permute.xlu0 %1665
    %v1668 = vsel %vm1086, %v1661, %v1666
    %vm1669 = vcmask 521220
    %1670 = vst.msk [vmem:[#allocation3] sm:$0x30] %vm1669, %v1661
    %1671 = vrot.lane.b32.xlu0 %v1658, 64
    %v1672 = vpop.permute.xlu0 %1671
    %vm1674 = vcmask 1043970
    %1675 = vst.msk [vmem:[#allocation3 + $0x8] sm:$0xc] %vm1674, %v1672
    %v1676 = vld [vmem:[%s3] sm:$0xff]
    %v1677 = vld [vmem:[%s3 + $0x8] sm:$0xff]
    %v1678 = vld [vmem:[%s3 + $0x10] sm:$0xff]
    %v1679 = vld [vmem:[%s3 + $0x18] sm:$0xff]
    %v1680 = vld [vmem:[%s3 + $0x20] sm:$0xff]
    %v1681 = vld [vmem:[%s3 + $0x28] sm:$0xff]
    %v1682 = vld [vmem:[%s3 + $0x30] sm:$0xff]
    %v1683 = vld [vmem:[%s3 + $0x38] sm:$0xff]
    %v1684 = vld [vmem:[%s3 + $0x40] sm:$0xff]
    %v1685 = vld [vmem:[%s3 + $0x48] sm:$0xff]
    %v1686 = vld [vmem:[%s3 + $0x50] sm:$0xff]
    %v1687 = vld [vmem:[%s3 + $0x58] sm:$0xff]
    %v1688 = vld [vmem:[%s3 + $0x60] sm:$0xff]
    %v1689 = vld [vmem:[%s3 + $0x68] sm:$0xff]
    %v1690 = vld [vmem:[%s3 + $0x70] sm:$0xff]
    %v1691 = vld [vmem:[%s3 + $0x78] sm:$0xff]
    %v1692 = vld [vmem:[%s3 + $0x80] sm:$0xff]
    %v1693 = vld [vmem:[%s3 + $0x88] sm:$0xff]
    %v1694 = vld [vmem:[%s3 + $0x90] sm:$0xff]
    %v1695 = vld [vmem:[%s3 + $0x98] sm:$0xff]
    %v1696 = vld [vmem:[%s3 + $0xa0] sm:$0xff]
    %v1697 = vld [vmem:[%s3 + $0xa8] sm:$0xff]
    %v1698 = vld [vmem:[%s3 + $0xb0] sm:$0xff]
    %v1699 = vld [vmem:[%s3 + $0xb8] sm:$0xff]
    %v1700 = vld [vmem:[%s3 + $0xc0] sm:$0xff]
    %v1701 = vld [vmem:[%s3 + $0xc8] sm:$0xff]
    %v1702 = vld [vmem:[%s3 + $0xd0] sm:$0xff]
    %v1703 = vld [vmem:[%s3 + $0xd8] sm:$0xff]
    %v1704 = vld [vmem:[%s3 + $0xe0] sm:$0xff]
    %v1705 = vld [vmem:[%s3 + $0xe8] sm:$0xff]
    %v1706 = vld [vmem:[%s3 + $0xf0] sm:$0xff]
    %v1707 = vld [vmem:[%s3 + $0xf8] sm:$0xff]
    %v1708 = vld [vmem:[%s3 + $0x100] sm:$0xff]
    %v1709 = vld [vmem:[%s3 + $0x108] sm:$0xff]
    %v1710 = vld [vmem:[%s3 + $0x110] sm:$0xff]
    %v1711 = vld [vmem:[%s3 + $0x118] sm:$0xff]
    %v1712 = vld [vmem:[%s3 + $0x120] sm:$0xff]
    %v1713 = vld [vmem:[%s3 + $0x128] sm:$0xff]
    %v1714 = vld [vmem:[%s3 + $0x130] sm:$0xff]
    %v1715 = vld [vmem:[%s3 + $0x138] sm:$0xff]
    %v1716 = vld [vmem:[%s3 + $0x140] sm:$0xff]
    %v1717 = vld [vmem:[%s3 + $0x148] sm:$0xff]
    %v1718 = vld [vmem:[%s3 + $0x150] sm:$0xff]
    %v1719 = vld [vmem:[%s3 + $0x158] sm:$0xff]
    %v1720 = vld [vmem:[%s3 + $0x160] sm:$0xff]
    %v1721 = vld [vmem:[%s3 + $0x168] sm:$0xff]
    %v1722 = vld [vmem:[%s3 + $0x170] sm:$0xff]
    %v1723 = vld [vmem:[%s3 + $0x178] sm:$0xff]
    %v1724 = vld [vmem:[%s4] sm:$0x7]
    %v1726 = vlaneseq
    %v1727 = vshrl.u32 %v1726, 7
    %v1728 = vsub.s32 0, %v1727
    %v1729 = vrot.slane %v1724, %v1728
    %v1730 = vlaneseq
    %v1731 = vshrl.u32 %v1730, 7
    %v1732 = vsub.s32 1, %v1731
    %v1733 = vrot.slane %v1724, %v1732
    %v1734 = vlaneseq
    %v1735 = vshrl.u32 %v1734, 7
    %v1736 = vsub.s32 2, %v1735
    %v1737 = vrot.slane %v1724, %v1736
    %v1742 = vrot.slane %v1668, 4
    %1744 = vmatprep.subr.mxu0 %v1677
    %1745 = vmatpush1.msra.mxu0 %v1676
    %1746 = vmatprep.subr.mxu0 %v1680
    %1747 = vmatpush1.msra.mxu0 %v1679
    %1748 = vmatprep.subr.mxu0 %v1683
    %1749 = vmatpush1.msra.mxu0 %v1682
    %1750 = vmatprep.subr.mxu0 %v1686
    %1751 = vmatpush1.msra.mxu0 %v1685
    %1752 = vmatprep.subr.mxu0 %v1689
    %1753 = vmatpush1.msra.mxu0 %v1688
    %1754 = vmatprep.subr.mxu0 %v1692
    %1755 = vmatpush1.msra.mxu0 %v1691
    %1756 = vmatprep.subr.mxu0 %v1695
    %1757 = vmatpush1.msra.mxu0 %v1694
    %1758 = vmatprep.subr.mxu0 %v1698
    %1759 = vmatpush1.msra.mxu0 %v1697
    %1760 = vmatprep.subr.mxu0 %v1701
    %1761 = vmatpush1.msra.mxu0 %v1700
    %1762 = vmatprep.subr.mxu0 %v1704
    %1763 = vmatpush1.msra.mxu0 %v1703
    %1764 = vmatprep.subr.mxu0 %v1707
    %1765 = vmatpush1.msra.mxu0 %v1706
    %1766 = vmatprep.subr.mxu0 %v1710
    %1767 = vmatpush1.msra.mxu0 %v1709
    %1768 = vmatprep.subr.mxu0 %v1713
    %1769 = vmatpush1.msra.mxu0 %v1712
    %1770 = vmatprep.subr.mxu0 %v1716
    %1771 = vmatpush1.msra.mxu0 %v1715
    %1772 = vmatprep.subr.mxu0 %v1719
    %1773 = vmatpush1.msra.mxu0 %v1718
    %1774 = vmatprep.subr.mxu0 %v1722
    %1775 = vmatpush1.msra.mxu0 %v1721
    %1776 = vmatprep.subr.mxu0 0.0
    %1777 = vmatpush1.msra.mxu0 0.0
    %1778 = vmatprep.subr.mxu0 0.0
    %1779 = vmatpush1.msra.mxu0 0.0
    %1780 = vmatprep.subr.mxu0 0.0
    %1781 = vmatpush1.msra.mxu0 0.0
    %1782 = vmatprep.subr.mxu0 0.0
    %1783 = vmatpush1.msra.mxu0 0.0
    %1784 = vmatprep.subr.mxu0 0.0
    %1785 = vmatpush1.msra.mxu0 0.0
    %1786 = vmatprep.subr.mxu0 0.0
    %1787 = vmatpush1.msra.mxu0 0.0
    %1788 = vmatprep.subr.mxu0 0.0
    %1789 = vmatpush1.msra.mxu0 0.0
    %1790 = vmatprep.subr.mxu0 0.0
    %1791 = vmatpush1.msra.mxu0 0.0
    %1792 = vmatprep.subr.mxu0 0.0
    %1793 = vmatpush1.msra.mxu0 0.0
    %1794 = vmatprep.subr.mxu0 0.0
    %1795 = vmatpush1.msra.mxu0 0.0
    %1796 = vmatprep.subr.mxu0 0.0
    %1797 = vmatpush1.msra.mxu0 0.0
    %1798 = vmatprep.subr.mxu0 0.0
    %1799 = vmatpush1.msra.mxu0 0.0
    %1800 = vmatprep.subr.mxu0 0.0
    %1801 = vmatpush1.msra.mxu0 0.0
    %1802 = vmatprep.subr.mxu0 0.0
    %1803 = vmatpush1.msra.mxu0 0.0
    %1804 = vmatprep.subr.mxu0 0.0
    %1805 = vmatpush1.msra.mxu0 0.0
    %1806 = vmatprep.subr.mxu0 0.0
    %1807 = vmatpush1.msra.mxu0 0.0
    %1808 = vmatprep.mubr.f32.mxu0 0.0
    %1809 = vmatmul.mubr.f32.gmra.mrb[0].mxu0 %v1742
    %v1810 = vpop.f32.mrb[0].mxu0
    %v1811 = vadd.f32 %v1729, %v1810
    %v1812 = vpop.f32.mrb[0].mxu0
    %v1813 = vadd.f32 %v1733, %v1812
    %1814 = vdwg.mxu0
    %1815 = vmatprep.subr.mxu0 0.0
    %1816 = vmatpush1.msra.mxu0 %v1678
    %1817 = vmatprep.subr.mxu0 0.0
    %1818 = vmatpush1.msra.mxu0 %v1681
    %1819 = vmatprep.subr.mxu0 0.0
    %1820 = vmatpush1.msra.mxu0 %v1684
    %1821 = vmatprep.subr.mxu0 0.0
    %1822 = vmatpush1.msra.mxu0 %v1687
    %1823 = vmatprep.subr.mxu0 0.0
    %1824 = vmatpush1.msra.mxu0 %v1690
    %1825 = vmatprep.subr.mxu0 0.0
    %1826 = vmatpush1.msra.mxu0 %v1693
    %1827 = vmatprep.subr.mxu0 0.0
    %1828 = vmatpush1.msra.mxu0 %v1696
    %1829 = vmatprep.subr.mxu0 0.0
    %1830 = vmatpush1.msra.mxu0 %v1699
    %1831 = vmatprep.subr.mxu0 0.0
    %1832 = vmatpush1.msra.mxu0 %v1702
    %1833 = vmatprep.subr.mxu0 0.0
    %1834 = vmatpush1.msra.mxu0 %v1705
    %1835 = vmatprep.subr.mxu0 0.0
    %1836 = vmatpush1.msra.mxu0 %v1708
    %1837 = vmatprep.subr.mxu0 0.0
    %1838 = vmatpush1.msra.mxu0 %v1711
    %1839 = vmatprep.subr.mxu0 0.0
    %1840 = vmatpush1.msra.mxu0 %v1714
    %1841 = vmatprep.subr.mxu0 0.0
    %1842 = vmatpush1.msra.mxu0 %v1717
    %1843 = vmatprep.subr.mxu0 0.0
    %1844 = vmatpush1.msra.mxu0 %v1720
    %1845 = vmatprep.subr.mxu0 0.0
    %1846 = vmatpush1.msra.mxu0 %v1723
    %1847 = vmatprep.subr.mxu0 0.0
    %1848 = vmatpush1.msra.mxu0 0.0
    %1849 = vmatprep.subr.mxu0 0.0
    %1850 = vmatpush1.msra.mxu0 0.0
    %1851 = vmatprep.subr.mxu0 0.0
    %1852 = vmatpush1.msra.mxu0 0.0
    %1853 = vmatprep.subr.mxu0 0.0
    %1854 = vmatpush1.msra.mxu0 0.0
    %1855 = vmatprep.subr.mxu0 0.0
    %1856 = vmatpush1.msra.mxu0 0.0
    %1857 = vmatprep.subr.mxu0 0.0
    %1858 = vmatpush1.msra.mxu0 0.0
    %1859 = vmatprep.subr.mxu0 0.0
    %1860 = vmatpush1.msra.mxu0 0.0
    %1861 = vmatprep.subr.mxu0 0.0
    %1862 = vmatpush1.msra.mxu0 0.0
    %1863 = vmatprep.subr.mxu0 0.0
    %1864 = vmatpush1.msra.mxu0 0.0
    %1865 = vmatprep.subr.mxu0 0.0
    %1866 = vmatpush1.msra.mxu0 0.0
    %1867 = vmatprep.subr.mxu0 0.0
    %1868 = vmatpush1.msra.mxu0 0.0
    %1869 = vmatprep.subr.mxu0 0.0
    %1870 = vmatpush1.msra.mxu0 0.0
    %1871 = vmatprep.subr.mxu0 0.0
    %1872 = vmatpush1.msra.mxu0 0.0
    %1873 = vmatprep.subr.mxu0 0.0
    %1874 = vmatpush1.msra.mxu0 0.0
    %1875 = vmatprep.subr.mxu0 0.0
    %1876 = vmatpush1.msra.mxu0 0.0
    %1877 = vmatprep.subr.mxu0 0.0
    %1878 = vmatpush1.msra.mxu0 0.0
    %1879 = vmatprep.mubr.f32.mxu0 0.0
    %1880 = vmatmul.mubr.f32.gmra.mrb[0].mxu0 %v1742
    %v1881 = vpop.f32.mrb[0].mxu0
    %v1882 = vadd.f32 %v1737, %v1881
    %v1883 = vpop.f32.mrb[0].mxu0
    %1884 = vdwg.mxu0
    %v1885 = vld [vmem:[#allocation2] sm:$0xc0]
    %v1886 = vld [vmem:[#allocation2 + $0x8] sm:$0xc0]
    %v1887 = vld [vmem:[#allocation2 + $0x20] sm:$0x3]
    %v1888 = vld [vmem:[#allocation2 + $0x28] sm:$0x3]
    %v1890 = vrot.slane %v1811, 2
    %v1892 = vadd.f32 %v1885, %v1890
    %v1893 = vxor.u32 %v1892, 2147483648
    %v1894 = vmul.f32 %v1893, 1.442695
    %v1895 = vpow.pop %v1894
    %v1896 = vadd.f32 %v1895, 1.0
    %v1897 = vrcp.pop %v1896
    %v1898 = vmul.f32 1.0, %v1897
    %v1900 = vrot.slane %v1813, 2
    %v1902 = vmul.f32 %v1898, %v1900
    %v1903 = vadd.f32 %v1886, %v1902
    %v1904 = vtanh.pop %v1903
    %v1905 = vsub.f32 1.0, %v1898
    %1907 = vrot.lane.b32.xlu0 %v1904, 64
    %v1908 = vpop.permute.xlu0 %1907
    %v1910 = vmul.f32 %v1905, %v1908
    %v1911 = vrot.slane %v1668, 6
    %1912 = vrot.lane.b32.xlu0 %v1911, 64
    %v1913 = vpop.permute.xlu0 %1912
    %v1915 = vmul.f32 %v1898, %v1913
    %v1916 = vadd.f32 %v1910, %v1915
    %v1917 = vadd.f32 %v1887, %v1813
    %v1918 = vxor.u32 %v1917, 2147483648
    %v1919 = vmul.f32 %v1918, 1.442695
    %v1920 = vpow.pop %v1919
    %v1921 = vadd.f32 %v1920, 1.0
    %v1922 = vrcp.pop %v1921
    %v1923 = vmul.f32 1.0, %v1922
    %v1924 = vadd.f32 %v1888, %v1882
    %v1925 = vxor.u32 %v1924, 2147483648
    %v1926 = vmul.f32 %v1925, 1.442695
    %v1927 = vpow.pop %v1926
    %v1928 = vadd.f32 %v1927, 1.0
    %v1929 = vrcp.pop %v1928
    %v1930 = vmul.f32 1.0, %v1929
    %v1931 = vmul.f32 %v1923, %v1882
    %v1932 = vadd.f32 %v1888, %v1931
    %v1933 = vtanh.pop %v1932
    %v1934 = vsub.f32 1.0, %v1930
    %1936 = vrot.lane.b32.xlu0 %v1933, 64
    %v1937 = vpop.permute.xlu0 %1936
    %v1939 = vmul.f32 %v1934, %v1937
    %1940 = vrot.lane.b32.xlu0 %v1742, 64
    %v1941 = vpop.permute.xlu0 %1940
    %v1943 = vmul.f32 %v1930, %v1941
    %v1944 = vadd.f32 %v1939, %v1943
    %1946 = vrot.lane.b32.xlu0 %v1916, 64
    %v1947 = vpop.permute.xlu0 %1946
    %v1950 = vrot.slane %v1944, 2
    %1951 = vrot.lane.b32.xlu0 %v1950, 64
    %v1952 = vpop.permute.xlu0 %1951
    %v1954 = vsel %vm1086, %v1947, %v1952
    %vm1955 = vcmask 523270
    %1956 = vst.msk [vmem:[#allocation3] sm:$0xc0] %vm1955, %v1947
    %1957 = vrot.lane.b32.xlu0 %v1944, 64
    %v1958 = vpop.permute.xlu0 %1957
    %vm1960 = vcmask 1041920
    %1961 = vst.msk [vmem:[#allocation3 + $0x8] sm:$0x3] %vm1960, %v1958
    %v1962 = vld [vmem:[%s3] sm:$0xff]
    %v1963 = vld [vmem:[%s3 + $0x8] sm:$0xff]
    %v1964 = vld [vmem:[%s3 + $0x10] sm:$0xff]
    %v1965 = vld [vmem:[%s3 + $0x18] sm:$0xff]
    %v1966 = vld [vmem:[%s3 + $0x20] sm:$0xff]
    %v1967 = vld [vmem:[%s3 + $0x28] sm:$0xff]
    %v1968 = vld [vmem:[%s3 + $0x30] sm:$0xff]
    %v1969 = vld [vmem:[%s3 + $0x38] sm:$0xff]
    %v1970 = vld [vmem:[%s3 + $0x40] sm:$0xff]
    %v1971 = vld [vmem:[%s3 + $0x48] sm:$0xff]
    %v1972 = vld [vmem:[%s3 + $0x50] sm:$0xff]
    %v1973 = vld [vmem:[%s3 + $0x58] sm:$0xff]
    %v1974 = vld [vmem:[%s3 + $0x60] sm:$0xff]
    %v1975 = vld [vmem:[%s3 + $0x68] sm:$0xff]
    %v1976 = vld [vmem:[%s3 + $0x70] sm:$0xff]
    %v1977 = vld [vmem:[%s3 + $0x78] sm:$0xff]
    %v1978 = vld [vmem:[%s3 + $0x80] sm:$0xff]
    %v1979 = vld [vmem:[%s3 + $0x88] sm:$0xff]
    %v1980 = vld [vmem:[%s3 + $0x90] sm:$0xff]
    %v1981 = vld [vmem:[%s3 + $0x98] sm:$0xff]
    %v1982 = vld [vmem:[%s3 + $0xa0] sm:$0xff]
    %v1983 = vld [vmem:[%s3 + $0xa8] sm:$0xff]
    %v1984 = vld [vmem:[%s3 + $0xb0] sm:$0xff]
    %v1985 = vld [vmem:[%s3 + $0xb8] sm:$0xff]
    %v1986 = vld [vmem:[%s3 + $0xc0] sm:$0xff]
    %v1987 = vld [vmem:[%s3 + $0xc8] sm:$0xff]
    %v1988 = vld [vmem:[%s3 + $0xd0] sm:$0xff]
    %v1989 = vld [vmem:[%s3 + $0xd8] sm:$0xff]
    %v1990 = vld [vmem:[%s3 + $0xe0] sm:$0xff]
    %v1991 = vld [vmem:[%s3 + $0xe8] sm:$0xff]
    %v1992 = vld [vmem:[%s3 + $0xf0] sm:$0xff]
    %v1993 = vld [vmem:[%s3 + $0xf8] sm:$0xff]
    %v1994 = vld [vmem:[%s3 + $0x100] sm:$0xff]
    %v1995 = vld [vmem:[%s3 + $0x108] sm:$0xff]
    %v1996 = vld [vmem:[%s3 + $0x110] sm:$0xff]
    %v1997 = vld [vmem:[%s3 + $0x118] sm:$0xff]
    %v1998 = vld [vmem:[%s3 + $0x120] sm:$0xff]
    %v1999 = vld [vmem:[%s3 + $0x128] sm:$0xff]
    %v2000 = vld [vmem:[%s3 + $0x130] sm:$0xff]
    %v2001 = vld [vmem:[%s3 + $0x138] sm:$0xff]
    %v2002 = vld [vmem:[%s3 + $0x140] sm:$0xff]
    %v2003 = vld [vmem:[%s3 + $0x148] sm:$0xff]
    %v2004 = vld [vmem:[%s3 + $0x150] sm:$0xff]
    %v2005 = vld [vmem:[%s3 + $0x158] sm:$0xff]
    %v2006 = vld [vmem:[%s3 + $0x160] sm:$0xff]
    %v2007 = vld [vmem:[%s3 + $0x168] sm:$0xff]
    %v2008 = vld [vmem:[%s3 + $0x170] sm:$0xff]
    %v2009 = vld [vmem:[%s3 + $0x178] sm:$0xff]
    %v2010 = vld [vmem:[%s4] sm:$0x7]
    %v2012 = vlaneseq
    %v2013 = vshrl.u32 %v2012, 7
    %v2014 = vsub.s32 0, %v2013
    %v2015 = vrot.slane %v2010, %v2014
    %v2016 = vlaneseq
    %v2017 = vshrl.u32 %v2016, 7
    %v2018 = vsub.s32 1, %v2017
    %v2019 = vrot.slane %v2010, %v2018
    %v2020 = vlaneseq
    %v2021 = vshrl.u32 %v2020, 7
    %v2022 = vsub.s32 2, %v2021
    %v2023 = vrot.slane %v2010, %v2022
    %v2028 = vrot.slane %v1954, 6
    %2030 = vmatprep.subr.mxu0 %v1963
    %2031 = vmatpush1.msra.mxu0 %v1962
    %2032 = vmatprep.subr.mxu0 %v1966
    %2033 = vmatpush1.msra.mxu0 %v1965
    %2034 = vmatprep.subr.mxu0 %v1969
    %2035 = vmatpush1.msra.mxu0 %v1968
    %2036 = vmatprep.subr.mxu0 %v1972
    %2037 = vmatpush1.msra.mxu0 %v1971
    %2038 = vmatprep.subr.mxu0 %v1975
    %2039 = vmatpush1.msra.mxu0 %v1974
    %2040 = vmatprep.subr.mxu0 %v1978
    %2041 = vmatpush1.msra.mxu0 %v1977
    %2042 = vmatprep.subr.mxu0 %v1981
    %2043 = vmatpush1.msra.mxu0 %v1980
    %2044 = vmatprep.subr.mxu0 %v1984
    %2045 = vmatpush1.msra.mxu0 %v1983
    %2046 = vmatprep.subr.mxu0 %v1987
    %2047 = vmatpush1.msra.mxu0 %v1986
    %2048 = vmatprep.subr.mxu0 %v1990
    %2049 = vmatpush1.msra.mxu0 %v1989
    %2050 = vmatprep.subr.mxu0 %v1993
    %2051 = vmatpush1.msra.mxu0 %v1992
    %2052 = vmatprep.subr.mxu0 %v1996
    %2053 = vmatpush1.msra.mxu0 %v1995
    %2054 = vmatprep.subr.mxu0 %v1999
    %2055 = vmatpush1.msra.mxu0 %v1998
    %2056 = vmatprep.subr.mxu0 %v2002
    %2057 = vmatpush1.msra.mxu0 %v2001
    %2058 = vmatprep.subr.mxu0 %v2005
    %2059 = vmatpush1.msra.mxu0 %v2004
    %2060 = vmatprep.subr.mxu0 %v2008
    %2061 = vmatpush1.msra.mxu0 %v2007
    %2062 = vmatprep.subr.mxu0 0.0
    %2063 = vmatpush1.msra.mxu0 0.0
    %2064 = vmatprep.subr.mxu0 0.0
    %2065 = vmatpush1.msra.mxu0 0.0
    %2066 = vmatprep.subr.mxu0 0.0
    %2067 = vmatpush1.msra.mxu0 0.0
    %2068 = vmatprep.subr.mxu0 0.0
    %2069 = vmatpush1.msra.mxu0 0.0
    %2070 = vmatprep.subr.mxu0 0.0
    %2071 = vmatpush1.msra.mxu0 0.0
    %2072 = vmatprep.subr.mxu0 0.0
    %2073 = vmatpush1.msra.mxu0 0.0
    %2074 = vmatprep.subr.mxu0 0.0
    %2075 = vmatpush1.msra.mxu0 0.0
    %2076 = vmatprep.subr.mxu0 0.0
    %2077 = vmatpush1.msra.mxu0 0.0
    %2078 = vmatprep.subr.mxu0 0.0
    %2079 = vmatpush1.msra.mxu0 0.0
    %2080 = vmatprep.subr.mxu0 0.0
    %2081 = vmatpush1.msra.mxu0 0.0
    %2082 = vmatprep.subr.mxu0 0.0
    %2083 = vmatpush1.msra.mxu0 0.0
    %2084 = vmatprep.subr.mxu0 0.0
    %2085 = vmatpush1.msra.mxu0 0.0
    %2086 = vmatprep.subr.mxu0 0.0
    %2087 = vmatpush1.msra.mxu0 0.0
    %2088 = vmatprep.subr.mxu0 0.0
    %2089 = vmatpush1.msra.mxu0 0.0
    %2090 = vmatprep.subr.mxu0 0.0
    %2091 = vmatpush1.msra.mxu0 0.0
    %2092 = vmatprep.subr.mxu0 0.0
    %2093 = vmatpush1.msra.mxu0 0.0
    %2094 = vmatprep.mubr.f32.mxu0 0.0
    %2095 = vmatmul.mubr.f32.gmra.mrb[0].mxu0 %v2028
    %v2096 = vpop.f32.mrb[0].mxu0
    %v2097 = vadd.f32 %v2015, %v2096
    %v2098 = vpop.f32.mrb[0].mxu0
    %v2099 = vadd.f32 %v2019, %v2098
    %2100 = vdwg.mxu0
    %2101 = vmatprep.subr.mxu0 0.0
    %2102 = vmatpush1.msra.mxu0 %v1964
    %2103 = vmatprep.subr.mxu0 0.0
    %2104 = vmatpush1.msra.mxu0 %v1967
    %2105 = vmatprep.subr.mxu0 0.0
    %2106 = vmatpush1.msra.mxu0 %v1970
    %2107 = vmatprep.subr.mxu0 0.0
    %2108 = vmatpush1.msra.mxu0 %v1973
    %2109 = vmatprep.subr.mxu0 0.0
    %2110 = vmatpush1.msra.mxu0 %v1976
    %2111 = vmatprep.subr.mxu0 0.0
    %2112 = vmatpush1.msra.mxu0 %v1979
    %2113 = vmatprep.subr.mxu0 0.0
    %2114 = vmatpush1.msra.mxu0 %v1982
    %2115 = vmatprep.subr.mxu0 0.0
    %2116 = vmatpush1.msra.mxu0 %v1985
    %2117 = vmatprep.subr.mxu0 0.0
    %2118 = vmatpush1.msra.mxu0 %v1988
    %2119 = vmatprep.subr.mxu0 0.0
    %2120 = vmatpush1.msra.mxu0 %v1991
    %2121 = vmatprep.subr.mxu0 0.0
    %2122 = vmatpush1.msra.mxu0 %v1994
    %2123 = vmatprep.subr.mxu0 0.0
    %2124 = vmatpush1.msra.mxu0 %v1997
    %2125 = vmatprep.subr.mxu0 0.0
    %2126 = vmatpush1.msra.mxu0 %v2000
    %2127 = vmatprep.subr.mxu0 0.0
    %2128 = vmatpush1.msra.mxu0 %v2003
    %2129 = vmatprep.subr.mxu0 0.0
    %2130 = vmatpush1.msra.mxu0 %v2006
    %2131 = vmatprep.subr.mxu0 0.0
    %2132 = vmatpush1.msra.mxu0 %v2009
    %2133 = vmatprep.subr.mxu0 0.0
    %2134 = vmatpush1.msra.mxu0 0.0
    %2135 = vmatprep.subr.mxu0 0.0
    %2136 = vmatpush1.msra.mxu0 0.0
    %2137 = vmatprep.subr.mxu0 0.0
    %2138 = vmatpush1.msra.mxu0 0.0
    %2139 = vmatprep.subr.mxu0 0.0
    %2140 = vmatpush1.msra.mxu0 0.0
    %2141 = vmatprep.subr.mxu0 0.0
    %2142 = vmatpush1.msra.mxu0 0.0
    %2143 = vmatprep.subr.mxu0 0.0
    %2144 = vmatpush1.msra.mxu0 0.0
    %2145 = vmatprep.subr.mxu0 0.0
    %2146 = vmatpush1.msra.mxu0 0.0
    %2147 = vmatprep.subr.mxu0 0.0
    %2148 = vmatpush1.msra.mxu0 0.0
    %2149 = vmatprep.subr.mxu0 0.0
    %2150 = vmatpush1.msra.mxu0 0.0
    %2151 = vmatprep.subr.mxu0 0.0
    %2152 = vmatpush1.msra.mxu0 0.0
    %2153 = vmatprep.subr.mxu0 0.0
    %2154 = vmatpush1.msra.mxu0 0.0
    %2155 = vmatprep.subr.mxu0 0.0
    %2156 = vmatpush1.msra.mxu0 0.0
    %2157 = vmatprep.subr.mxu0 0.0
    %2158 = vmatpush1.msra.mxu0 0.0
    %2159 = vmatprep.subr.mxu0 0.0
    %2160 = vmatpush1.msra.mxu0 0.0
    %2161 = vmatprep.subr.mxu0 0.0
    %2162 = vmatpush1.msra.mxu0 0.0
    %2163 = vmatprep.subr.mxu0 0.0
    %2164 = vmatpush1.msra.mxu0 0.0
    %2165 = vmatprep.mubr.f32.mxu0 0.0
    %2166 = vmatmul.mubr.f32.gmra.mrb[0].mxu0 %v2028
    %v2167 = vpop.f32.mrb[0].mxu0
    %v2168 = vadd.f32 %v2023, %v2167
    %v2169 = vpop.f32.mrb[0].mxu0
    %2170 = vdwg.mxu0
    %v2171 = vld [vmem:[#allocation2 + $0x18] sm:$0x3]
    %v2172 = vld [vmem:[#allocation2 + $0x20] sm:$0x3]
    %v2173 = vld [vmem:[#allocation2 + $0x8] sm:$0xc0]
    %v2174 = vld [vmem:[#allocation2 + $0x10] sm:$0xc0]
    %v2175 = vadd.f32 %v2171, %v2097
    %v2176 = vxor.u32 %v2175, 2147483648
    %v2177 = vmul.f32 %v2176, 1.442695
    %v2178 = vpow.pop %v2177
    %v2179 = vadd.f32 %v2178, 1.0
    %v2180 = vrcp.pop %v2179
    %v2181 = vmul.f32 1.0, %v2180
    %v2182 = vmul.f32 %v2181, %v2099
    %v2183 = vadd.f32 %v2172, %v2182
    %v2184 = vtanh.pop %v2183
    %v2185 = vsub.f32 1.0, %v2181
    %2187 = vrot.lane.b32.xlu0 %v2184, 64
    %v2188 = vpop.permute.xlu0 %2187
    %v2190 = vmul.f32 %v2185, %v2188
    %2191 = vrot.lane.b32.xlu0 %v2028, 64
    %v2192 = vpop.permute.xlu0 %2191
    %v2194 = vmul.f32 %v2181, %v2192
    %v2195 = vadd.f32 %v2190, %v2194
    %v2197 = vrot.slane %v2099, 2
    %v2199 = vadd.f32 %v2173, %v2197
    %v2200 = vxor.u32 %v2199, 2147483648
    %v2201 = vmul.f32 %v2200, 1.442695
    %v2202 = vpow.pop %v2201
    %v2203 = vadd.f32 %v2202, 1.0
    %v2204 = vrcp.pop %v2203
    %v2205 = vmul.f32 1.0, %v2204
    %v2207 = vrot.slane %v2168, 2
    %v2209 = vadd.f32 %v2174, %v2207
    %v2210 = vxor.u32 %v2209, 2147483648
    %v2211 = vmul.f32 %v2210, 1.442695
    %v2212 = vpow.pop %v2211
    %v2213 = vadd.f32 %v2212, 1.0
    %v2214 = vrcp.pop %v2213
    %v2215 = vmul.f32 1.0, %v2214
    %v2216 = vmul.f32 %v2205, %v2207
    %v2217 = vadd.f32 %v2174, %v2216
    %v2218 = vtanh.pop %v2217
    %v2219 = vsub.f32 1.0, %v2215
    %2221 = vrot.lane.b32.xlu0 %v2218, 64
    %v2222 = vpop.permute.xlu0 %2221
    %v2224 = vmul.f32 %v2219, %v2222
    %2225 = vrot.lane.b32.xlu0 %v1954, 64
    %v2226 = vpop.permute.xlu0 %2225
    %v2228 = vmul.f32 %v2215, %v2226
    %v2229 = vadd.f32 %v2224, %v2228
    %2231 = vrot.lane.b32.xlu0 %v2195, 64
    %v2232 = vpop.permute.xlu0 %2231
    %v2235 = vrot.slane %v2229, 6
    %2236 = vrot.lane.b32.xlu0 %v2235, 64
    %v2237 = vpop.permute.xlu0 %2236
    %v2239 = vsel %vm1086, %v2232, %v2237
    %2240 = vst.msk [vmem:[#allocation3 + $0x8] sm:$0x3] %vm1088, %v2232
    %2241 = vrot.lane.b32.xlu0 %v2229, 64
    %v2242 = vpop.permute.xlu0 %2241
    %2244 = vst.msk [vmem:[#allocation3] sm:$0xc0] %vm1093, %v2242
    %v2245 = vld [vmem:[%s3] sm:$0xff]
    %v2246 = vld [vmem:[%s3 + $0x8] sm:$0xff]
    %v2247 = vld [vmem:[%s3 + $0x10] sm:$0xff]
    %v2248 = vld [vmem:[%s3 + $0x18] sm:$0xff]
    %v2249 = vld [vmem:[%s3 + $0x20] sm:$0xff]
    %v2250 = vld [vmem:[%s3 + $0x28] sm:$0xff]
    %v2251 = vld [vmem:[%s3 + $0x30] sm:$0xff]
    %v2252 = vld [vmem:[%s3 + $0x38] sm:$0xff]
    %v2253 = vld [vmem:[%s3 + $0x40] sm:$0xff]
    %v2254 = vld [vmem:[%s3 + $0x48] sm:$0xff]
    %v2255 = vld [vmem:[%s3 + $0x50] sm:$0xff]
    %v2256 = vld [vmem:[%s3 + $0x58] sm:$0xff]
    %v2257 = vld [vmem:[%s3 + $0x60] sm:$0xff]
    %v2258 = vld [vmem:[%s3 + $0x68] sm:$0xff]
    %v2259 = vld [vmem:[%s3 + $0x70] sm:$0xff]
    %v2260 = vld [vmem:[%s3 + $0x78] sm:$0xff]
    %v2261 = vld [vmem:[%s3 + $0x80] sm:$0xff]
    %v2262 = vld [vmem:[%s3 + $0x88] sm:$0xff]
    %v2263 = vld [vmem:[%s3 + $0x90] sm:$0xff]
    %v2264 = vld [vmem:[%s3 + $0x98] sm:$0xff]
    %v2265 = vld [vmem:[%s3 + $0xa0] sm:$0xff]
    %v2266 = vld [vmem:[%s3 + $0xa8] sm:$0xff]
    %v2267 = vld [vmem:[%s3 + $0xb0] sm:$0xff]
    %v2268 = vld [vmem:[%s3 + $0xb8] sm:$0xff]
    %v2269 = vld [vmem:[%s3 + $0xc0] sm:$0xff]
    %v2270 = vld [vmem:[%s3 + $0xc8] sm:$0xff]
    %v2271 = vld [vmem:[%s3 + $0xd0] sm:$0xff]
    %v2272 = vld [vmem:[%s3 + $0xd8] sm:$0xff]
    %v2273 = vld [vmem:[%s3 + $0xe0] sm:$0xff]
    %v2274 = vld [vmem:[%s3 + $0xe8] sm:$0xff]
    %v2275 = vld [vmem:[%s3 + $0xf0] sm:$0xff]
    %v2276 = vld [vmem:[%s3 + $0xf8] sm:$0xff]
    %v2277 = vld [vmem:[%s3 + $0x100] sm:$0xff]
    %v2278 = vld [vmem:[%s3 + $0x108] sm:$0xff]
    %v2279 = vld [vmem:[%s3 + $0x110] sm:$0xff]
    %v2280 = vld [vmem:[%s3 + $0x118] sm:$0xff]
    %v2281 = vld [vmem:[%s3 + $0x120] sm:$0xff]
    %v2282 = vld [vmem:[%s3 + $0x128] sm:$0xff]
    %v2283 = vld [vmem:[%s3 + $0x130] sm:$0xff]
    %v2284 = vld [vmem:[%s3 + $0x138] sm:$0xff]
    %v2285 = vld [vmem:[%s3 + $0x140] sm:$0xff]
    %v2286 = vld [vmem:[%s3 + $0x148] sm:$0xff]
    %v2287 = vld [vmem:[%s3 + $0x150] sm:$0xff]
    %v2288 = vld [vmem:[%s3 + $0x158] sm:$0xff]
    %v2289 = vld [vmem:[%s3 + $0x160] sm:$0xff]
    %v2290 = vld [vmem:[%s3 + $0x168] sm:$0xff]
    %v2291 = vld [vmem:[%s3 + $0x170] sm:$0xff]
    %v2292 = vld [vmem:[%s3 + $0x178] sm:$0xff]
    %v2293 = vld [vmem:[%s4] sm:$0x7]
    %v2295 = vlaneseq
    %v2296 = vshrl.u32 %v2295, 7
    %v2297 = vsub.s32 0, %v2296
    %v2298 = vrot.slane %v2293, %v2297
    %v2299 = vlaneseq
    %v2300 = vshrl.u32 %v2299, 7
    %v2301 = vsub.s32 1, %v2300
    %v2302 = vrot.slane %v2293, %v2301
    %v2303 = vlaneseq
    %v2304 = vshrl.u32 %v2303, 7
    %v2305 = vsub.s32 2, %v2304
    %v2306 = vrot.slane %v2293, %v2305
    %2310 = vmatprep.subr.mxu0 %v2246
    %2311 = vmatpush1.msra.mxu0 %v2245
    %2312 = vmatprep.subr.mxu0 %v2249
    %2313 = vmatpush1.msra.mxu0 %v2248
    %2314 = vmatprep.subr.mxu0 %v2252
    %2315 = vmatpush1.msra.mxu0 %v2251
    %2316 = vmatprep.subr.mxu0 %v2255
    %2317 = vmatpush1.msra.mxu0 %v2254
    %2318 = vmatprep.subr.mxu0 %v2258
    %2319 = vmatpush1.msra.mxu0 %v2257
    %2320 = vmatprep.subr.mxu0 %v2261
    %2321 = vmatpush1.msra.mxu0 %v2260
    %2322 = vmatprep.subr.mxu0 %v2264
    %2323 = vmatpush1.msra.mxu0 %v2263
    %2324 = vmatprep.subr.mxu0 %v2267
    %2325 = vmatpush1.msra.mxu0 %v2266
    %2326 = vmatprep.subr.mxu0 %v2270
    %2327 = vmatpush1.msra.mxu0 %v2269
    %2328 = vmatprep.subr.mxu0 %v2273
    %2329 = vmatpush1.msra.mxu0 %v2272
    %2330 = vmatprep.subr.mxu0 %v2276
    %2331 = vmatpush1.msra.mxu0 %v2275
    %2332 = vmatprep.subr.mxu0 %v2279
    %2333 = vmatpush1.msra.mxu0 %v2278
    %2334 = vmatprep.subr.mxu0 %v2282
    %2335 = vmatpush1.msra.mxu0 %v2281
    %2336 = vmatprep.subr.mxu0 %v2285
    %2337 = vmatpush1.msra.mxu0 %v2284
    %2338 = vmatprep.subr.mxu0 %v2288
    %2339 = vmatpush1.msra.mxu0 %v2287
    %2340 = vmatprep.subr.mxu0 %v2291
    %2341 = vmatpush1.msra.mxu0 %v2290
    %2342 = vmatprep.subr.mxu0 0.0
    %2343 = vmatpush1.msra.mxu0 0.0
    %2344 = vmatprep.subr.mxu0 0.0
    %2345 = vmatpush1.msra.mxu0 0.0
    %2346 = vmatprep.subr.mxu0 0.0
    %2347 = vmatpush1.msra.mxu0 0.0
    %2348 = vmatprep.subr.mxu0 0.0
    %2349 = vmatpush1.msra.mxu0 0.0
    %2350 = vmatprep.subr.mxu0 0.0
    %2351 = vmatpush1.msra.mxu0 0.0
    %2352 = vmatprep.subr.mxu0 0.0
    %2353 = vmatpush1.msra.mxu0 0.0
    %2354 = vmatprep.subr.mxu0 0.0
    %2355 = vmatpush1.msra.mxu0 0.0
    %2356 = vmatprep.subr.mxu0 0.0
    %2357 = vmatpush1.msra.mxu0 0.0
    %2358 = vmatprep.subr.mxu0 0.0
    %2359 = vmatpush1.msra.mxu0 0.0
    %2360 = vmatprep.subr.mxu0 0.0
    %2361 = vmatpush1.msra.mxu0 0.0
    %2362 = vmatprep.subr.mxu0 0.0
    %2363 = vmatpush1.msra.mxu0 0.0
    %2364 = vmatprep.subr.mxu0 0.0
    %2365 = vmatpush1.msra.mxu0 0.0
    %2366 = vmatprep.subr.mxu0 0.0
    %2367 = vmatpush1.msra.mxu0 0.0
    %2368 = vmatprep.subr.mxu0 0.0
    %2369 = vmatpush1.msra.mxu0 0.0
    %2370 = vmatprep.subr.mxu0 0.0
    %2371 = vmatpush1.msra.mxu0 0.0
    %2372 = vmatprep.subr.mxu0 0.0
    %2373 = vmatpush1.msra.mxu0 0.0
    %2374 = vmatprep.mubr.f32.mxu0 0.0
    %2375 = vmatmul.mubr.f32.gmra.mrb[0].mxu0 %v2239
    %v2376 = vpop.f32.mrb[0].mxu0
    %v2377 = vadd.f32 %v2298, %v2376
    %v2378 = vpop.f32.mrb[0].mxu0
    %v2379 = vadd.f32 %v2302, %v2378
    %2380 = vdwg.mxu0
    %2381 = vmatprep.subr.mxu0 0.0
    %2382 = vmatpush1.msra.mxu0 %v2247
    %2383 = vmatprep.subr.mxu0 0.0
    %2384 = vmatpush1.msra.mxu0 %v2250
    %2385 = vmatprep.subr.mxu0 0.0
    %2386 = vmatpush1.msra.mxu0 %v2253
    %2387 = vmatprep.subr.mxu0 0.0
    %2388 = vmatpush1.msra.mxu0 %v2256
    %2389 = vmatprep.subr.mxu0 0.0
    %2390 = vmatpush1.msra.mxu0 %v2259
    %2391 = vmatprep.subr.mxu0 0.0
    %2392 = vmatpush1.msra.mxu0 %v2262
    %2393 = vmatprep.subr.mxu0 0.0
    %2394 = vmatpush1.msra.mxu0 %v2265
    %2395 = vmatprep.subr.mxu0 0.0
    %2396 = vmatpush1.msra.mxu0 %v2268
    %2397 = vmatprep.subr.mxu0 0.0
    %2398 = vmatpush1.msra.mxu0 %v2271
    %2399 = vmatprep.subr.mxu0 0.0
    %2400 = vmatpush1.msra.mxu0 %v2274
    %2401 = vmatprep.subr.mxu0 0.0
    %2402 = vmatpush1.msra.mxu0 %v2277
    %2403 = vmatprep.subr.mxu0 0.0
    %2404 = vmatpush1.msra.mxu0 %v2280
    %2405 = vmatprep.subr.mxu0 0.0
    %2406 = vmatpush1.msra.mxu0 %v2283
    %2407 = vmatprep.subr.mxu0 0.0
    %2408 = vmatpush1.msra.mxu0 %v2286
    %2409 = vmatprep.subr.mxu0 0.0
    %2410 = vmatpush1.msra.mxu0 %v2289
    %2411 = vmatprep.subr.mxu0 0.0
    %2412 = vmatpush1.msra.mxu0 %v2292
    %2413 = vmatprep.subr.mxu0 0.0
    %2414 = vmatpush1.msra.mxu0 0.0
    %2415 = vmatprep.subr.mxu0 0.0
    %2416 = vmatpush1.msra.mxu0 0.0
    %2417 = vmatprep.subr.mxu0 0.0
    %2418 = vmatpush1.msra.mxu0 0.0
    %2419 = vmatprep.subr.mxu0 0.0
    %2420 = vmatpush1.msra.mxu0 0.0
    %2421 = vmatprep.subr.mxu0 0.0
    %2422 = vmatpush1.msra.mxu0 0.0
    %2423 = vmatprep.subr.mxu0 0.0
    %2424 = vmatpush1.msra.mxu0 0.0
    %2425 = vmatprep.subr.mxu0 0.0
    %2426 = vmatpush1.msra.mxu0 0.0
    %2427 = vmatprep.subr.mxu0 0.0
    %2428 = vmatpush1.msra.mxu0 0.0
    %2429 = vmatprep.subr.mxu0 0.0
    %2430 = vmatpush1.msra.mxu0 0.0
    %2431 = vmatprep.subr.mxu0 0.0
    %2432 = vmatpush1.msra.mxu0 0.0
    %2433 = vmatprep.subr.mxu0 0.0
    %2434 = vmatpush1.msra.mxu0 0.0
    %2435 = vmatprep.subr.mxu0 0.0
    %2436 = vmatpush1.msra.mxu0 0.0
    %2437 = vmatprep.subr.mxu0 0.0
    %2438 = vmatpush1.msra.mxu0 0.0
    %2439 = vmatprep.subr.mxu0 0.0
    %2440 = vmatpush1.msra.mxu0 0.0
    %2441 = vmatprep.subr.mxu0 0.0
    %2442 = vmatpush1.msra.mxu0 0.0
    %2443 = vmatprep.subr.mxu0 0.0
    %2444 = vmatpush1.msra.mxu0 0.0
    %2445 = vmatprep.mubr.f32.mxu0 0.0
    %2446 = vmatmul.mubr.f32.gmra.mrb[0].mxu0 %v2239
    %v2447 = vpop.f32.mrb[0].mxu0
    %v2448 = vadd.f32 %v2306, %v2447
    %v2449 = vpop.f32.mrb[0].mxu0
    %2450 = vdwg.mxu0
    %v2451 = vld [vmem:[#allocation2 + $0x18] sm:$0xc]
    %v2452 = vld [vmem:[#allocation2 + $0x20] sm:$0xc]
    %v2453 = vld [vmem:[#allocation2 + $0x8] sm:$0x30]
    %v2454 = vld [vmem:[#allocation2 + $0x10] sm:$0x30]
    %v2456 = vrot.slane %v2377, 6
    %v2458 = vadd.f32 %v2451, %v2456
    %v2459 = vxor.u32 %v2458, 2147483648
    %v2460 = vmul.f32 %v2459, 1.442695
    %v2461 = vpow.pop %v2460
    %v2462 = vadd.f32 %v2461, 1.0
    %v2463 = vrcp.pop %v2462
    %v2464 = vmul.f32 1.0, %v2463
    %v2466 = vrot.slane %v2379, 6
    %v2468 = vmul.f32 %v2464, %v2466
    %v2469 = vadd.f32 %v2452, %v2468
    %v2470 = vtanh.pop %v2469
    %v2471 = vsub.f32 1.0, %v2464
    %2473 = vrot.lane.b32.xlu0 %v2470, 64
    %v2474 = vpop.permute.xlu0 %2473
    %v2476 = vmul.f32 %v2471, %v2474
    %v2478 = vrot.slane %v2239, 6
    %2479 = vrot.lane.b32.xlu0 %v2478, 64
    %v2480 = vpop.permute.xlu0 %2479
    %v2482 = vmul.f32 %v2464, %v2480
    %v2483 = vadd.f32 %v2476, %v2482
    %v2484 = vrot.slane %v2379, 4
    %v2486 = vadd.f32 %v2453, %v2484
    %v2487 = vxor.u32 %v2486, 2147483648
    %v2488 = vmul.f32 %v2487, 1.442695
    %v2489 = vpow.pop %v2488
    %v2490 = vadd.f32 %v2489, 1.0
    %v2491 = vrcp.pop %v2490
    %v2492 = vmul.f32 1.0, %v2491
    %v2494 = vrot.slane %v2448, 4
    %v2496 = vadd.f32 %v2454, %v2494
    %v2497 = vxor.u32 %v2496, 2147483648
    %v2498 = vmul.f32 %v2497, 1.442695
    %v2499 = vpow.pop %v2498
    %v2500 = vadd.f32 %v2499, 1.0
    %v2501 = vrcp.pop %v2500
    %v2502 = vmul.f32 1.0, %v2501
    %v2503 = vmul.f32 %v2492, %v2494
    %v2504 = vadd.f32 %v2454, %v2503
    %v2505 = vtanh.pop %v2504
    %v2506 = vsub.f32 1.0, %v2502
    %2508 = vrot.lane.b32.xlu0 %v2505, 64
    %v2509 = vpop.permute.xlu0 %2508
    %v2511 = vmul.f32 %v2506, %v2509
    %v2512 = vrot.slane %v2239, 4
    %2513 = vrot.lane.b32.xlu0 %v2512, 64
    %v2514 = vpop.permute.xlu0 %2513
    %v2516 = vmul.f32 %v2502, %v2514
    %v2517 = vadd.f32 %v2511, %v2516
    %2519 = vrot.lane.b32.xlu0 %v2483, 64
    %v2520 = vpop.permute.xlu0 %2519
    %v2523 = vrot.slane %v2517, 2
    %2524 = vrot.lane.b32.xlu0 %v2523, 64
    %v2525 = vpop.permute.xlu0 %2524
    %v2527 = vsel %vm1086, %v2520, %v2525
    %2528 = vst.msk [vmem:[#allocation3 + $0x8] sm:$0xc] %vm1378, %v2520
    %2529 = vrot.lane.b32.xlu0 %v2517, 64
    %v2530 = vpop.permute.xlu0 %2529
    %2532 = vst.msk [vmem:[#allocation3] sm:$0x30] %vm1383, %v2530
    %v2533 = vld [vmem:[%s3] sm:$0xff]
    %v2534 = vld [vmem:[%s3 + $0x8] sm:$0xff]
    %v2535 = vld [vmem:[%s3 + $0x10] sm:$0xff]
    %v2536 = vld [vmem:[%s3 + $0x18] sm:$0xff]
    %v2537 = vld [vmem:[%s3 + $0x20] sm:$0xff]
    %v2538 = vld [vmem:[%s3 + $0x28] sm:$0xff]
    %v2539 = vld [vmem:[%s3 + $0x30] sm:$0xff]
    %v2540 = vld [vmem:[%s3 + $0x38] sm:$0xff]
    %v2541 = vld [vmem:[%s3 + $0x40] sm:$0xff]
    %v2542 = vld [vmem:[%s3 + $0x48] sm:$0xff]
    %v2543 = vld [vmem:[%s3 + $0x50] sm:$0xff]
    %v2544 = vld [vmem:[%s3 + $0x58] sm:$0xff]
    %v2545 = vld [vmem:[%s3 + $0x60] sm:$0xff]
    %v2546 = vld [vmem:[%s3 + $0x68] sm:$0xff]
    %v2547 = vld [vmem:[%s3 + $0x70] sm:$0xff]
    %v2548 = vld [vmem:[%s3 + $0x78] sm:$0xff]
    %v2549 = vld [vmem:[%s3 + $0x80] sm:$0xff]
    %v2550 = vld [vmem:[%s3 + $0x88] sm:$0xff]
    %v2551 = vld [vmem:[%s3 + $0x90] sm:$0xff]
    %v2552 = vld [vmem:[%s3 + $0x98] sm:$0xff]
    %v2553 = vld [vmem:[%s3 + $0xa0] sm:$0xff]
    %v2554 = vld [vmem:[%s3 + $0xa8] sm:$0xff]
    %v2555 = vld [vmem:[%s3 + $0xb0] sm:$0xff]
    %v2556 = vld [vmem:[%s3 + $0xb8] sm:$0xff]
    %v2557 = vld [vmem:[%s3 + $0xc0] sm:$0xff]
    %v2558 = vld [vmem:[%s3 + $0xc8] sm:$0xff]
    %v2559 = vld [vmem:[%s3 + $0xd0] sm:$0xff]
    %v2560 = vld [vmem:[%s3 + $0xd8] sm:$0xff]
    %v2561 = vld [vmem:[%s3 + $0xe0] sm:$0xff]
    %v2562 = vld [vmem:[%s3 + $0xe8] sm:$0xff]
    %v2563 = vld [vmem:[%s3 + $0xf0] sm:$0xff]
    %v2564 = vld [vmem:[%s3 + $0xf8] sm:$0xff]
    %v2565 = vld [vmem:[%s3 + $0x100] sm:$0xff]
    %v2566 = vld [vmem:[%s3 + $0x108] sm:$0xff]
    %v2567 = vld [vmem:[%s3 + $0x110] sm:$0xff]
    %v2568 = vld [vmem:[%s3 + $0x118] sm:$0xff]
    %v2569 = vld [vmem:[%s3 + $0x120] sm:$0xff]
    %v2570 = vld [vmem:[%s3 + $0x128] sm:$0xff]
    %v2571 = vld [vmem:[%s3 + $0x130] sm:$0xff]
    %v2572 = vld [vmem:[%s3 + $0x138] sm:$0xff]
    %v2573 = vld [vmem:[%s3 + $0x140] sm:$0xff]
    %v2574 = vld [vmem:[%s3 + $0x148] sm:$0xff]
    %v2575 = vld [vmem:[%s3 + $0x150] sm:$0xff]
    %v2576 = vld [vmem:[%s3 + $0x158] sm:$0xff]
    %v2577 = vld [vmem:[%s3 + $0x160] sm:$0xff]
    %v2578 = vld [vmem:[%s3 + $0x168] sm:$0xff]
    %v2579 = vld [vmem:[%s3 + $0x170] sm:$0xff]
    %v2580 = vld [vmem:[%s3 + $0x178] sm:$0xff]
    %v2581 = vld [vmem:[%s4] sm:$0x7]
    %v2583 = vlaneseq
    %v2584 = vshrl.u32 %v2583, 7
    %v2585 = vsub.s32 0, %v2584
    %v2586 = vrot.slane %v2581, %v2585
    %v2587 = vlaneseq
    %v2588 = vshrl.u32 %v2587, 7
    %v2589 = vsub.s32 1, %v2588
    %v2590 = vrot.slane %v2581, %v2589
    %v2591 = vlaneseq
    %v2592 = vshrl.u32 %v2591, 7
    %v2593 = vsub.s32 2, %v2592
    %v2594 = vrot.slane %v2581, %v2593
    %v2599 = vrot.slane %v2527, 2
    %2601 = vmatprep.subr.mxu0 %v2534
    %2602 = vmatpush1.msra.mxu0 %v2533
    %2603 = vmatprep.subr.mxu0 %v2537
    %2604 = vmatpush1.msra.mxu0 %v2536
    %2605 = vmatprep.subr.mxu0 %v2540
    %2606 = vmatpush1.msra.mxu0 %v2539
    %2607 = vmatprep.subr.mxu0 %v2543
    %2608 = vmatpush1.msra.mxu0 %v2542
    %2609 = vmatprep.subr.mxu0 %v2546
    %2610 = vmatpush1.msra.mxu0 %v2545
    %2611 = vmatprep.subr.mxu0 %v2549
    %2612 = vmatpush1.msra.mxu0 %v2548
    %2613 = vmatprep.subr.mxu0 %v2552
    %2614 = vmatpush1.msra.mxu0 %v2551
    %2615 = vmatprep.subr.mxu0 %v2555
    %2616 = vmatpush1.msra.mxu0 %v2554
    %2617 = vmatprep.subr.mxu0 %v2558
    %2618 = vmatpush1.msra.mxu0 %v2557
    %2619 = vmatprep.subr.mxu0 %v2561
    %2620 = vmatpush1.msra.mxu0 %v2560
    %2621 = vmatprep.subr.mxu0 %v2564
    %2622 = vmatpush1.msra.mxu0 %v2563
    %2623 = vmatprep.subr.mxu0 %v2567
    %2624 = vmatpush1.msra.mxu0 %v2566
    %2625 = vmatprep.subr.mxu0 %v2570
    %2626 = vmatpush1.msra.mxu0 %v2569
    %2627 = vmatprep.subr.mxu0 %v2573
    %2628 = vmatpush1.msra.mxu0 %v2572
    %2629 = vmatprep.subr.mxu0 %v2576
    %2630 = vmatpush1.msra.mxu0 %v2575
    %2631 = vmatprep.subr.mxu0 %v2579
    %2632 = vmatpush1.msra.mxu0 %v2578
    %2633 = vmatprep.subr.mxu0 0.0
    %2634 = vmatpush1.msra.mxu0 0.0
    %2635 = vmatprep.subr.mxu0 0.0
    %2636 = vmatpush1.msra.mxu0 0.0
    %2637 = vmatprep.subr.mxu0 0.0
    %2638 = vmatpush1.msra.mxu0 0.0
    %2639 = vmatprep.subr.mxu0 0.0
    %2640 = vmatpush1.msra.mxu0 0.0
    %2641 = vmatprep.subr.mxu0 0.0
    %2642 = vmatpush1.msra.mxu0 0.0
    %2643 = vmatprep.subr.mxu0 0.0
    %2644 = vmatpush1.msra.mxu0 0.0
    %2645 = vmatprep.subr.mxu0 0.0
    %2646 = vmatpush1.msra.mxu0 0.0
    %2647 = vmatprep.subr.mxu0 0.0
    %2648 = vmatpush1.msra.mxu0 0.0
    %2649 = vmatprep.subr.mxu0 0.0
    %2650 = vmatpush1.msra.mxu0 0.0
    %2651 = vmatprep.subr.mxu0 0.0
    %2652 = vmatpush1.msra.mxu0 0.0
    %2653 = vmatprep.subr.mxu0 0.0
    %2654 = vmatpush1.msra.mxu0 0.0
    %2655 = vmatprep.subr.mxu0 0.0
    %2656 = vmatpush1.msra.mxu0 0.0
    %2657 = vmatprep.subr.mxu0 0.0
    %2658 = vmatpush1.msra.mxu0 0.0
    %2659 = vmatprep.subr.mxu0 0.0
    %2660 = vmatpush1.msra.mxu0 0.0
    %2661 = vmatprep.subr.mxu0 0.0
    %2662 = vmatpush1.msra.mxu0 0.0
    %2663 = vmatprep.subr.mxu0 0.0
    %2664 = vmatpush1.msra.mxu0 0.0
    %2665 = vmatprep.mubr.f32.mxu0 0.0
    %2666 = vmatmul.mubr.f32.gmra.mrb[0].mxu0 %v2599
    %v2667 = vpop.f32.mrb[0].mxu0
    %v2668 = vadd.f32 %v2586, %v2667
    %v2669 = vpop.f32.mrb[0].mxu0
    %v2670 = vadd.f32 %v2590, %v2669
    %2671 = vdwg.mxu0
    %2672 = vmatprep.subr.mxu0 0.0
    %2673 = vmatpush1.msra.mxu0 %v2535
    %2674 = vmatprep.subr.mxu0 0.0
    %2675 = vmatpush1.msra.mxu0 %v2538
    %2676 = vmatprep.subr.mxu0 0.0
    %2677 = vmatpush1.msra.mxu0 %v2541
    %2678 = vmatprep.subr.mxu0 0.0
    %2679 = vmatpush1.msra.mxu0 %v2544
    %2680 = vmatprep.subr.mxu0 0.0
    %2681 = vmatpush1.msra.mxu0 %v2547
    %2682 = vmatprep.subr.mxu0 0.0
    %2683 = vmatpush1.msra.mxu0 %v2550
    %2684 = vmatprep.subr.mxu0 0.0
    %2685 = vmatpush1.msra.mxu0 %v2553
    %2686 = vmatprep.subr.mxu0 0.0
    %2687 = vmatpush1.msra.mxu0 %v2556
    %2688 = vmatprep.subr.mxu0 0.0
    %2689 = vmatpush1.msra.mxu0 %v2559
    %2690 = vmatprep.subr.mxu0 0.0
    %2691 = vmatpush1.msra.mxu0 %v2562
    %2692 = vmatprep.subr.mxu0 0.0
    %2693 = vmatpush1.msra.mxu0 %v2565
    %2694 = vmatprep.subr.mxu0 0.0
    %2695 = vmatpush1.msra.mxu0 %v2568
    %2696 = vmatprep.subr.mxu0 0.0
    %2697 = vmatpush1.msra.mxu0 %v2571
    %2698 = vmatprep.subr.mxu0 0.0
    %2699 = vmatpush1.msra.mxu0 %v2574
    %2700 = vmatprep.subr.mxu0 0.0
    %2701 = vmatpush1.msra.mxu0 %v2577
    %2702 = vmatprep.subr.mxu0 0.0
    %2703 = vmatpush1.msra.mxu0 %v2580
    %2704 = vmatprep.subr.mxu0 0.0
    %2705 = vmatpush1.msra.mxu0 0.0
    %2706 = vmatprep.subr.mxu0 0.0
    %2707 = vmatpush1.msra.mxu0 0.0
    %2708 = vmatprep.subr.mxu0 0.0
    %2709 = vmatpush1.msra.mxu0 0.0
    %2710 = vmatprep.subr.mxu0 0.0
    %2711 = vmatpush1.msra.mxu0 0.0
    %2712 = vmatprep.subr.mxu0 0.0
    %2713 = vmatpush1.msra.mxu0 0.0
    %2714 = vmatprep.subr.mxu0 0.0
    %2715 = vmatpush1.msra.mxu0 0.0
    %2716 = vmatprep.subr.mxu0 0.0
    %2717 = vmatpush1.msra.mxu0 0.0
    %2718 = vmatprep.subr.mxu0 0.0
    %2719 = vmatpush1.msra.mxu0 0.0
    %2720 = vmatprep.subr.mxu0 0.0
    %2721 = vmatpush1.msra.mxu0 0.0
    %2722 = vmatprep.subr.mxu0 0.0
    %2723 = vmatpush1.msra.mxu0 0.0
    %2724 = vmatprep.subr.mxu0 0.0
    %2725 = vmatpush1.msra.mxu0 0.0
    %2726 = vmatprep.subr.mxu0 0.0
    %2727 = vmatpush1.msra.mxu0 0.0
    %2728 = vmatprep.subr.mxu0 0.0
    %2729 = vmatpush1.msra.mxu0 0.0
    %2730 = vmatprep.subr.mxu0 0.0
    %2731 = vmatpush1.msra.mxu0 0.0
    %2732 = vmatprep.subr.mxu0 0.0
    %2733 = vmatpush1.msra.mxu0 0.0
    %2734 = vmatprep.subr.mxu0 0.0
    %2735 = vmatpush1.msra.mxu0 0.0
    %2736 = vmatprep.mubr.f32.mxu0 0.0
    %2737 = vmatmul.mubr.f32.gmra.mrb[0].mxu0 %v2599
    %v2738 = vpop.f32.mrb[0].mxu0
    %v2739 = vadd.f32 %v2594, %v2738
    %v2740 = vpop.f32.mrb[0].mxu0
    %2741 = vdwg.mxu0
    %v2742 = vld [vmem:[#allocation2 + $0x18] sm:$0x30]
    %v2743 = vld [vmem:[#allocation2 + $0x20] sm:$0x30]
    %v2744 = vld [vmem:[#allocation2 + $0x8] sm:$0xc]
    %v2745 = vld [vmem:[#allocation2 + $0x10] sm:$0xc]
    %v2747 = vrot.slane %v2668, 4
    %v2749 = vadd.f32 %v2742, %v2747
    %v2750 = vxor.u32 %v2749, 2147483648
    %v2751 = vmul.f32 %v2750, 1.442695
    %v2752 = vpow.pop %v2751
    %v2753 = vadd.f32 %v2752, 1.0
    %v2754 = vrcp.pop %v2753
    %v2755 = vmul.f32 1.0, %v2754
    %v2757 = vrot.slane %v2670, 4
    %v2759 = vmul.f32 %v2755, %v2757
    %v2760 = vadd.f32 %v2743, %v2759
    %v2761 = vtanh.pop %v2760
    %v2762 = vsub.f32 1.0, %v2755
    %2764 = vrot.lane.b32.xlu0 %v2761, 64
    %v2765 = vpop.permute.xlu0 %2764
    %v2767 = vmul.f32 %v2762, %v2765
    %v2768 = vrot.slane %v2527, 6
    %2769 = vrot.lane.b32.xlu0 %v2768, 64
    %v2770 = vpop.permute.xlu0 %2769
    %v2772 = vmul.f32 %v2755, %v2770
    %v2773 = vadd.f32 %v2767, %v2772
    %v2774 = vrot.slane %v2670, 6
    %v2776 = vadd.f32 %v2744, %v2774
    %v2777 = vxor.u32 %v2776, 2147483648
    %v2778 = vmul.f32 %v2777, 1.442695
    %v2779 = vpow.pop %v2778
    %v2780 = vadd.f32 %v2779, 1.0
    %v2781 = vrcp.pop %v2780
    %v2782 = vmul.f32 1.0, %v2781
    %v2784 = vrot.slane %v2739, 6
    %v2786 = vadd.f32 %v2745, %v2784
    %v2787 = vxor.u32 %v2786, 2147483648
    %v2788 = vmul.f32 %v2787, 1.442695
    %v2789 = vpow.pop %v2788
    %v2790 = vadd.f32 %v2789, 1.0
    %v2791 = vrcp.pop %v2790
    %v2792 = vmul.f32 1.0, %v2791
    %v2793 = vmul.f32 %v2782, %v2784
    %v2794 = vadd.f32 %v2745, %v2793
    %v2795 = vtanh.pop %v2794
    %v2796 = vsub.f32 1.0, %v2792
    %2798 = vrot.lane.b32.xlu0 %v2795, 64
    %v2799 = vpop.permute.xlu0 %2798
    %v2801 = vmul.f32 %v2796, %v2799
    %2802 = vrot.lane.b32.xlu0 %v2527, 64
    %v2803 = vpop.permute.xlu0 %2802
    %v2805 = vmul.f32 %v2792, %v2803
    %v2806 = vadd.f32 %v2801, %v2805
    %2808 = vrot.lane.b32.xlu0 %v2773, 64
    %v2809 = vpop.permute.xlu0 %2808
    %v2812 = vrot.slane %v2806, 6
    %2813 = vrot.lane.b32.xlu0 %v2812, 64
    %v2814 = vpop.permute.xlu0 %2813
    %v2816 = vsel %vm1086, %v2809, %v2814
    %2817 = vst.msk [vmem:[#allocation3 + $0x8] sm:$0x30] %vm1669, %v2809
    %2818 = vrot.lane.b32.xlu0 %v2806, 64
    %v2819 = vpop.permute.xlu0 %2818
    %2821 = vst.msk [vmem:[#allocation3] sm:$0xc] %vm1674, %v2819
    %v2822 = vld [vmem:[%s3] sm:$0xff]
    %v2823 = vld [vmem:[%s3 + $0x8] sm:$0xff]
    %v2824 = vld [vmem:[%s3 + $0x10] sm:$0xff]
    %v2825 = vld [vmem:[%s3 + $0x18] sm:$0xff]
    %v2826 = vld [vmem:[%s3 + $0x20] sm:$0xff]
    %v2827 = vld [vmem:[%s3 + $0x28] sm:$0xff]
    %v2828 = vld [vmem:[%s3 + $0x30] sm:$0xff]
    %v2829 = vld [vmem:[%s3 + $0x38] sm:$0xff]
    %v2830 = vld [vmem:[%s3 + $0x40] sm:$0xff]
    %v2831 = vld [vmem:[%s3 + $0x48] sm:$0xff]
    %v2832 = vld [vmem:[%s3 + $0x50] sm:$0xff]
    %v2833 = vld [vmem:[%s3 + $0x58] sm:$0xff]
    %v2834 = vld [vmem:[%s3 + $0x60] sm:$0xff]
    %v2835 = vld [vmem:[%s3 + $0x68] sm:$0xff]
    %v2836 = vld [vmem:[%s3 + $0x70] sm:$0xff]
    %v2837 = vld [vmem:[%s3 + $0x78] sm:$0xff]
    %v2838 = vld [vmem:[%s3 + $0x80] sm:$0xff]
    %v2839 = vld [vmem:[%s3 + $0x88] sm:$0xff]
    %v2840 = vld [vmem:[%s3 + $0x90] sm:$0xff]
    %v2841 = vld [vmem:[%s3 + $0x98] sm:$0xff]
    %v2842 = vld [vmem:[%s3 + $0xa0] sm:$0xff]
    %v2843 = vld [vmem:[%s3 + $0xa8] sm:$0xff]
    %v2844 = vld [vmem:[%s3 + $0xb0] sm:$0xff]
    %v2845 = vld [vmem:[%s3 + $0xb8] sm:$0xff]
    %v2846 = vld [vmem:[%s3 + $0xc0] sm:$0xff]
    %v2847 = vld [vmem:[%s3 + $0xc8] sm:$0xff]
    %v2848 = vld [vmem:[%s3 + $0xd0] sm:$0xff]
    %v2849 = vld [vmem:[%s3 + $0xd8] sm:$0xff]
    %v2850 = vld [vmem:[%s3 + $0xe0] sm:$0xff]
    %v2851 = vld [vmem:[%s3 + $0xe8] sm:$0xff]
    %v2852 = vld [vmem:[%s3 + $0xf0] sm:$0xff]
    %v2853 = vld [vmem:[%s3 + $0xf8] sm:$0xff]
    %v2854 = vld [vmem:[%s3 + $0x100] sm:$0xff]
    %v2855 = vld [vmem:[%s3 + $0x108] sm:$0xff]
    %v2856 = vld [vmem:[%s3 + $0x110] sm:$0xff]
    %v2857 = vld [vmem:[%s3 + $0x118] sm:$0xff]
    %v2858 = vld [vmem:[%s3 + $0x120] sm:$0xff]
    %v2859 = vld [vmem:[%s3 + $0x128] sm:$0xff]
    %v2860 = vld [vmem:[%s3 + $0x130] sm:$0xff]
    %v2861 = vld [vmem:[%s3 + $0x138] sm:$0xff]
    %v2862 = vld [vmem:[%s3 + $0x140] sm:$0xff]
    %v2863 = vld [vmem:[%s3 + $0x148] sm:$0xff]
    %v2864 = vld [vmem:[%s3 + $0x150] sm:$0xff]
    %v2865 = vld [vmem:[%s3 + $0x158] sm:$0xff]
    %v2866 = vld [vmem:[%s3 + $0x160] sm:$0xff]
    %v2867 = vld [vmem:[%s3 + $0x168] sm:$0xff]
    %v2868 = vld [vmem:[%s3 + $0x170] sm:$0xff]
    %v2869 = vld [vmem:[%s3 + $0x178] sm:$0xff]
    %v2870 = vld [vmem:[%s4] sm:$0x7]
    %v2872 = vlaneseq
    %v2873 = vshrl.u32 %v2872, 7
    %v2874 = vsub.s32 0, %v2873
    %v2875 = vrot.slane %v2870, %v2874
    %v2876 = vlaneseq
    %v2877 = vshrl.u32 %v2876, 7
    %v2878 = vsub.s32 1, %v2877
    %v2879 = vrot.slane %v2870, %v2878
    %v2880 = vlaneseq
    %v2881 = vshrl.u32 %v2880, 7
    %v2882 = vsub.s32 2, %v2881
    %v2883 = vrot.slane %v2870, %v2882
    %v2888 = vrot.slane %v2816, 4
    %2890 = vmatprep.subr.mxu0 %v2823
    %2891 = vmatpush1.msra.mxu0 %v2822
    %2892 = vmatprep.subr.mxu0 %v2826
    %2893 = vmatpush1.msra.mxu0 %v2825
    %2894 = vmatprep.subr.mxu0 %v2829
    %2895 = vmatpush1.msra.mxu0 %v2828
    %2896 = vmatprep.subr.mxu0 %v2832
    %2897 = vmatpush1.msra.mxu0 %v2831
    %2898 = vmatprep.subr.mxu0 %v2835
    %2899 = vmatpush1.msra.mxu0 %v2834
    %2900 = vmatprep.subr.mxu0 %v2838
    %2901 = vmatpush1.msra.mxu0 %v2837
    %2902 = vmatprep.subr.mxu0 %v2841
    %2903 = vmatpush1.msra.mxu0 %v2840
    %2904 = vmatprep.subr.mxu0 %v2844
    %2905 = vmatpush1.msra.mxu0 %v2843
    %2906 = vmatprep.subr.mxu0 %v2847
    %2907 = vmatpush1.msra.mxu0 %v2846
    %2908 = vmatprep.subr.mxu0 %v2850
    %2909 = vmatpush1.msra.mxu0 %v2849
    %2910 = vmatprep.subr.mxu0 %v2853
    %2911 = vmatpush1.msra.mxu0 %v2852
    %2912 = vmatprep.subr.mxu0 %v2856
    %2913 = vmatpush1.msra.mxu0 %v2855
    %2914 = vmatprep.subr.mxu0 %v2859
    %2915 = vmatpush1.msra.mxu0 %v2858
    %2916 = vmatprep.subr.mxu0 %v2862
    %2917 = vmatpush1.msra.mxu0 %v2861
    %2918 = vmatprep.subr.mxu0 %v2865
    %2919 = vmatpush1.msra.mxu0 %v2864
    %2920 = vmatprep.subr.mxu0 %v2868
    %2921 = vmatpush1.msra.mxu0 %v2867
    %2922 = vmatprep.subr.mxu0 0.0
    %2923 = vmatpush1.msra.mxu0 0.0
    %2924 = vmatprep.subr.mxu0 0.0
    %2925 = vmatpush1.msra.mxu0 0.0
    %2926 = vmatprep.subr.mxu0 0.0
    %2927 = vmatpush1.msra.mxu0 0.0
    %2928 = vmatprep.subr.mxu0 0.0
    %2929 = vmatpush1.msra.mxu0 0.0
    %2930 = vmatprep.subr.mxu0 0.0
    %2931 = vmatpush1.msra.mxu0 0.0
    %2932 = vmatprep.subr.mxu0 0.0
    %2933 = vmatpush1.msra.mxu0 0.0
    %2934 = vmatprep.subr.mxu0 0.0
    %2935 = vmatpush1.msra.mxu0 0.0
    %2936 = vmatprep.subr.mxu0 0.0
    %2937 = vmatpush1.msra.mxu0 0.0
    %2938 = vmatprep.subr.mxu0 0.0
    %2939 = vmatpush1.msra.mxu0 0.0
    %2940 = vmatprep.subr.mxu0 0.0
    %2941 = vmatpush1.msra.mxu0 0.0
    %2942 = vmatprep.subr.mxu0 0.0
    %2943 = vmatpush1.msra.mxu0 0.0
    %2944 = vmatprep.subr.mxu0 0.0
    %2945 = vmatpush1.msra.mxu0 0.0
    %2946 = vmatprep.subr.mxu0 0.0
    %2947 = vmatpush1.msra.mxu0 0.0
    %2948 = vmatprep.subr.mxu0 0.0
    %2949 = vmatpush1.msra.mxu0 0.0
    %2950 = vmatprep.subr.mxu0 0.0
    %2951 = vmatpush1.msra.mxu0 0.0
    %2952 = vmatprep.subr.mxu0 0.0
    %2953 = vmatpush1.msra.mxu0 0.0
    %2954 = vmatprep.mubr.f32.mxu0 0.0
    %2955 = vmatmul.mubr.f32.gmra.mrb[0].mxu0 %v2888
    %v2956 = vpop.f32.mrb[0].mxu0
    %v2957 = vadd.f32 %v2875, %v2956
    %v2958 = vpop.f32.mrb[0].mxu0
    %v2959 = vadd.f32 %v2879, %v2958
    %2960 = vdwg.mxu0
    %2961 = vmatprep.subr.mxu0 0.0
    %2962 = vmatpush1.msra.mxu0 %v2824
    %2963 = vmatprep.subr.mxu0 0.0
    %2964 = vmatpush1.msra.mxu0 %v2827
    %2965 = vmatprep.subr.mxu0 0.0
    %2966 = vmatpush1.msra.mxu0 %v2830
    %2967 = vmatprep.subr.mxu0 0.0
    %2968 = vmatpush1.msra.mxu0 %v2833
    %2969 = vmatprep.subr.mxu0 0.0
    %2970 = vmatpush1.msra.mxu0 %v2836
    %2971 = vmatprep.subr.mxu0 0.0
    %2972 = vmatpush1.msra.mxu0 %v2839
    %2973 = vmatprep.subr.mxu0 0.0
    %2974 = vmatpush1.msra.mxu0 %v2842
    %2975 = vmatprep.subr.mxu0 0.0
    %2976 = vmatpush1.msra.mxu0 %v2845
    %2977 = vmatprep.subr.mxu0 0.0
    %2978 = vmatpush1.msra.mxu0 %v2848
    %2979 = vmatprep.subr.mxu0 0.0
    %2980 = vmatpush1.msra.mxu0 %v2851
    %2981 = vmatprep.subr.mxu0 0.0
    %2982 = vmatpush1.msra.mxu0 %v2854
    %2983 = vmatprep.subr.mxu0 0.0
    %2984 = vmatpush1.msra.mxu0 %v2857
    %2985 = vmatprep.subr.mxu0 0.0
    %2986 = vmatpush1.msra.mxu0 %v2860
    %2987 = vmatprep.subr.mxu0 0.0
    %2988 = vmatpush1.msra.mxu0 %v2863
    %2989 = vmatprep.subr.mxu0 0.0
    %2990 = vmatpush1.msra.mxu0 %v2866
    %2991 = vmatprep.subr.mxu0 0.0
    %2992 = vmatpush1.msra.mxu0 %v2869
    %2993 = vmatprep.subr.mxu0 0.0
    %2994 = vmatpush1.msra.mxu0 0.0
    %2995 = vmatprep.subr.mxu0 0.0
    %2996 = vmatpush1.msra.mxu0 0.0
    %2997 = vmatprep.subr.mxu0 0.0
    %2998 = vmatpush1.msra.mxu0 0.0
    %2999 = vmatprep.subr.mxu0 0.0
    %3000 = vmatpush1.msra.mxu0 0.0
    %3001 = vmatprep.subr.mxu0 0.0
    %3002 = vmatpush1.msra.mxu0 0.0
    %3003 = vmatprep.subr.mxu0 0.0
    %3004 = vmatpush1.msra.mxu0 0.0
    %3005 = vmatprep.subr.mxu0 0.0
    %3006 = vmatpush1.msra.mxu0 0.0
    %3007 = vmatprep.subr.mxu0 0.0
    %3008 = vmatpush1.msra.mxu0 0.0
    %3009 = vmatprep.subr.mxu0 0.0
    %3010 = vmatpush1.msra.mxu0 0.0
    %3011 = vmatprep.subr.mxu0 0.0
    %3012 = vmatpush1.msra.mxu0 0.0
    %3013 = vmatprep.subr.mxu0 0.0
    %3014 = vmatpush1.msra.mxu0 0.0
    %3015 = vmatprep.subr.mxu0 0.0
    %3016 = vmatpush1.msra.mxu0 0.0
    %3017 = vmatprep.subr.mxu0 0.0
    %3018 = vmatpush1.msra.mxu0 0.0
    %3019 = vmatprep.subr.mxu0 0.0
    %3020 = vmatpush1.msra.mxu0 0.0
    %3021 = vmatprep.subr.mxu0 0.0
    %3022 = vmatpush1.msra.mxu0 0.0
    %3023 = vmatprep.subr.mxu0 0.0
    %3024 = vmatpush1.msra.mxu0 0.0
    %3025 = vmatprep.mubr.f32.mxu0 0.0
    %3026 = vmatmul.mubr.f32.gmra.mrb[0].mxu0 %v2888
    %v3027 = vpop.f32.mrb[0].mxu0
    %v3028 = vadd.f32 %v2883, %v3027
    %v3029 = vpop.f32.mrb[0].mxu0
    %3030 = vdwg.mxu0
    %v3031 = vld [vmem:[#allocation2 + $0x18] sm:$0xc0]
    %v3032 = vld [vmem:[#allocation2 + $0x20] sm:$0xc0]
    %v3033 = vld [vmem:[#allocation2 + $0x8] sm:$0x3]
    %v3034 = vld [vmem:[#allocation2 + $0x10] sm:$0x3]
    %v3036 = vrot.slane %v2957, 2
    %v3038 = vadd.f32 %v3031, %v3036
    %v3039 = vxor.u32 %v3038, 2147483648
    %v3040 = vmul.f32 %v3039, 1.442695
    %v3041 = vpow.pop %v3040
    %v3042 = vadd.f32 %v3041, 1.0
    %v3043 = vrcp.pop %v3042
    %v3044 = vmul.f32 1.0, %v3043
    %v3046 = vrot.slane %v2959, 2
    %v3048 = vmul.f32 %v3044, %v3046
    %v3049 = vadd.f32 %v3032, %v3048
    %v3050 = vtanh.pop %v3049
    %v3051 = vsub.f32 1.0, %v3044
    %3053 = vrot.lane.b32.xlu0 %v3050, 64
    %v3054 = vpop.permute.xlu0 %3053
    %v3056 = vmul.f32 %v3051, %v3054
    %v3057 = vrot.slane %v2816, 6
    %3058 = vrot.lane.b32.xlu0 %v3057, 64
    %v3059 = vpop.permute.xlu0 %3058
    %v3061 = vmul.f32 %v3044, %v3059
    %v3062 = vadd.f32 %v3056, %v3061
    %v3063 = vadd.f32 %v3033, %v2959
    %v3064 = vxor.u32 %v3063, 2147483648
    %v3065 = vmul.f32 %v3064, 1.442695
    %v3066 = vpow.pop %v3065
    %v3067 = vadd.f32 %v3066, 1.0
    %v3068 = vrcp.pop %v3067
    %v3069 = vmul.f32 1.0, %v3068
    %v3070 = vadd.f32 %v3034, %v3028
    %v3071 = vxor.u32 %v3070, 2147483648
    %v3072 = vmul.f32 %v3071, 1.442695
    %v3073 = vpow.pop %v3072
    %v3074 = vadd.f32 %v3073, 1.0
    %v3075 = vrcp.pop %v3074
    %v3076 = vmul.f32 1.0, %v3075
    %v3077 = vmul.f32 %v3069, %v3028
    %v3078 = vadd.f32 %v3034, %v3077
    %v3079 = vtanh.pop %v3078
    %v3080 = vsub.f32 1.0, %v3076
    %3082 = vrot.lane.b32.xlu0 %v3079, 64
    %v3083 = vpop.permute.xlu0 %3082
    %v3085 = vmul.f32 %v3080, %v3083
    %3086 = vrot.lane.b32.xlu0 %v2888, 64
    %v3087 = vpop.permute.xlu0 %3086
    %v3089 = vmul.f32 %v3076, %v3087
    %v3090 = vadd.f32 %v3085, %v3089
    %3092 = vrot.lane.b32.xlu0 %v3062, 64
    %v3093 = vpop.permute.xlu0 %3092
    %3095 = vst.msk [vmem:[#allocation3 + $0x8] sm:$0xc0] %vm1955, %v3093
    %3097 = vrot.lane.b32.xlu0 %v3090, 64
    %v3098 = vpop.permute.xlu0 %3097
    %3100 = vst.msk [vmem:[#allocation3] sm:$0x3] %vm1960, %v3098
    %v3101 = vld [vmem:[#allocation3] sm:$0xff]
    %v3102 = vld [vmem:[#allocation3 + $0x8] sm:$0xff]
    %v3103 = vld [vmem:[%s5] sm:$0xff]
    %v3104 = vld [vmem:[%s5 + $0x8] sm:$0xff]
    %v3105 = vld [vmem:[%s5 + $0x10] sm:$0xff]
    %v3106 = vld [vmem:[%s5 + $0x18] sm:$0xff]
    %v3107 = vld [vmem:[%s5 + $0x20] sm:$0xff]
    %v3108 = vld [vmem:[%s5 + $0x28] sm:$0xff]
    %v3109 = vld [vmem:[%s5 + $0x30] sm:$0xff]
    %v3110 = vld [vmem:[%s5 + $0x38] sm:$0xff]
    %v3111 = vld [vmem:[%s5 + $0x40] sm:$0xff]
    %v3112 = vld [vmem:[%s5 + $0x48] sm:$0xff]
    %v3113 = vld [vmem:[%s5 + $0x50] sm:$0xff]
    %v3114 = vld [vmem:[%s5 + $0x58] sm:$0xff]
    %v3115 = vld [vmem:[%s5 + $0x60] sm:$0xff]
    %v3116 = vld [vmem:[%s5 + $0x68] sm:$0xff]
    %v3117 = vld [vmem:[%s5 + $0x70] sm:$0xff]
    %v3118 = vld [vmem:[%s5 + $0x78] sm:$0xff]
    %v3119 = vld [vmem:[%s6] sm:$0x1]
    %v3121 = vlaneseq
    %v3122 = vshrl.u32 %v3121, 7
    %v3123 = vsub.s32 0, %v3122
    %v3124 = vrot.slane %v3119, %v3123
    %3126 = vmatprep.subr.mxu0 0.0
    %3127 = vmatpush1.msra.mxu0 %v3103
    %3128 = vmatprep.subr.mxu0 0.0
    %3129 = vmatpush1.msra.mxu0 %v3104
    %3130 = vmatprep.subr.mxu0 0.0
    %3131 = vmatpush1.msra.mxu0 %v3105
    %3132 = vmatprep.subr.mxu0 0.0
    %3133 = vmatpush1.msra.mxu0 %v3106
    %3134 = vmatprep.subr.mxu0 0.0
    %3135 = vmatpush1.msra.mxu0 %v3107
    %3136 = vmatprep.subr.mxu0 0.0
    %3137 = vmatpush1.msra.mxu0 %v3108
    %3138 = vmatprep.subr.mxu0 0.0
    %3139 = vmatpush1.msra.mxu0 %v3109
    %3140 = vmatprep.subr.mxu0 0.0
    %3141 = vmatpush1.msra.mxu0 %v3110
    %3142 = vmatprep.subr.mxu0 0.0
    %3143 = vmatpush1.msra.mxu0 %v3111
    %3144 = vmatprep.subr.mxu0 0.0
    %3145 = vmatpush1.msra.mxu0 %v3112
    %3146 = vmatprep.subr.mxu0 0.0
    %3147 = vmatpush1.msra.mxu0 %v3113
    %3148 = vmatprep.subr.mxu0 0.0
    %3149 = vmatpush1.msra.mxu0 %v3114
    %3150 = vmatprep.subr.mxu0 0.0
    %3151 = vmatpush1.msra.mxu0 %v3115
    %3152 = vmatprep.subr.mxu0 0.0
    %3153 = vmatpush1.msra.mxu0 %v3116
    %3154 = vmatprep.subr.mxu0 0.0
    %3155 = vmatpush1.msra.mxu0 %v3117
    %3156 = vmatprep.subr.mxu0 0.0
    %3157 = vmatpush1.msra.mxu0 %v3118
    %3158 = vmatprep.subr.mxu0 0.0
    %3159 = vmatpush1.msra.mxu0 0.0
    %3160 = vmatprep.subr.mxu0 0.0
    %3161 = vmatpush1.msra.mxu0 0.0
    %3162 = vmatprep.subr.mxu0 0.0
    %3163 = vmatpush1.msra.mxu0 0.0
    %3164 = vmatprep.subr.mxu0 0.0
    %3165 = vmatpush1.msra.mxu0 0.0
    %3166 = vmatprep.subr.mxu0 0.0
    %3167 = vmatpush1.msra.mxu0 0.0
    %3168 = vmatprep.subr.mxu0 0.0
    %3169 = vmatpush1.msra.mxu0 0.0
    %3170 = vmatprep.subr.mxu0 0.0
    %3171 = vmatpush1.msra.mxu0 0.0
    %3172 = vmatprep.subr.mxu0 0.0
    %3173 = vmatpush1.msra.mxu0 0.0
    %3174 = vmatprep.subr.mxu0 0.0
    %3175 = vmatpush1.msra.mxu0 0.0
    %3176 = vmatprep.subr.mxu0 0.0
    %3177 = vmatpush1.msra.mxu0 0.0
    %3178 = vmatprep.subr.mxu0 0.0
    %3179 = vmatpush1.msra.mxu0 0.0
    %3180 = vmatprep.subr.mxu0 0.0
    %3181 = vmatpush1.msra.mxu0 0.0
    %3182 = vmatprep.subr.mxu0 0.0
    %3183 = vmatpush1.msra.mxu0 0.0
    %3184 = vmatprep.subr.mxu0 0.0
    %3185 = vmatpush1.msra.mxu0 0.0
    %3186 = vmatprep.subr.mxu0 0.0
    %3187 = vmatpush1.msra.mxu0 0.0
    %3188 = vmatprep.subr.mxu0 0.0
    %3189 = vmatpush1.msra.mxu0 0.0
    %3190 = vmatprep.mubr.f32.mxu0 0.0
    %3191 = vmatmul.mubr.f32.gmra.mrb[0].mxu0 %v3101
    %v3192 = vpop.f32.mrb[0].mxu0
    %v3193 = vadd.f32 %v3124, %v3192
    %v3194 = vpop.f32.mrb[0].mxu0
    %3195 = vmatprep.mubr.f32.mxu0 0.0
    %3196 = vmatmul.mubr.f32.gmra.mrb[0].mxu0 %v3102
    %v3197 = vpop.f32.mrb[0].mxu0
    %v3198 = vadd.f32 %v3124, %v3197
    %v3199 = vpop.f32.mrb[0].mxu0
    %3200 = vdwg.mxu0
    %v3201 = vld [vmem:[%s8] sm:$0xff]
    %v3202 = vld [vmem:[%s8 + $0x8] sm:$0x7]
    %v3203 = vld [vmem:[%s7] sm:$0xff]
    %v3204 = vld [vmem:[%s7 + $0x8] sm:$0xff]
    %v3205 = vld [vmem:[%s7 + $0x10] sm:$0xff]
    %v3206 = vld [vmem:[%s7 + $0x18] sm:$0xff]
    %v3207 = vld [vmem:[%s7 + $0x20] sm:$0xff]
    %v3208 = vld [vmem:[%s7 + $0x28] sm:$0xff]
    %v3209 = vld [vmem:[%s7 + $0x30] sm:$0xff]
    %v3210 = vld [vmem:[%s7 + $0x38] sm:$0xff]
    %v3211 = vlaneseq
    %v3212 = vshrl.u32 %v3211, 7
    %v3213 = vsub.s32 0, %v3212
    %v3214 = vrot.slane %v3201, %v3213
    %v3216 = vsel %vm1086, %v3193, 0
    %v3219 = vsel %vm1086, %v3198, 0
    %3221 = vmatprep.subr.mxu0 0.0
    %3222 = vmatpush1.msra.mxu0 %v3203
    %3223 = vmatprep.subr.mxu0 0.0
    %3224 = vmatpush1.msra.mxu0 %v3204
    %3225 = vmatprep.subr.mxu0 0.0
    %3226 = vmatpush1.msra.mxu0 %v3205
    %3227 = vmatprep.subr.mxu0 0.0
    %3228 = vmatpush1.msra.mxu0 %v3206
    %3229 = vmatprep.subr.mxu0 0.0
    %3230 = vmatpush1.msra.mxu0 %v3207
    %3231 = vmatprep.subr.mxu0 0.0
    %3232 = vmatpush1.msra.mxu0 %v3208
    %3233 = vmatprep.subr.mxu0 0.0
    %3234 = vmatpush1.msra.mxu0 %v3209
    %3235 = vmatprep.subr.mxu0 0.0
    %3236 = vmatpush1.msra.mxu0 %v3210
    %3237 = vmatprep.subr.mxu0 0.0
    %3238 = vmatpush1.msra.mxu0 0.0
    %3239 = vmatprep.subr.mxu0 0.0
    %3240 = vmatpush1.msra.mxu0 0.0
    %3241 = vmatprep.subr.mxu0 0.0
    %3242 = vmatpush1.msra.mxu0 0.0
    %3243 = vmatprep.subr.mxu0 0.0
    %3244 = vmatpush1.msra.mxu0 0.0
    %3245 = vmatprep.subr.mxu0 0.0
    %3246 = vmatpush1.msra.mxu0 0.0
    %3247 = vmatprep.subr.mxu0 0.0
    %3248 = vmatpush1.msra.mxu0 0.0
    %3249 = vmatprep.subr.mxu0 0.0
    %3250 = vmatpush1.msra.mxu0 0.0
    %3251 = vmatprep.subr.mxu0 0.0
    %3252 = vmatpush1.msra.mxu0 0.0
    %3253 = vmatprep.subr.mxu0 0.0
    %3254 = vmatpush1.msra.mxu0 0.0
    %3255 = vmatprep.subr.mxu0 0.0
    %3256 = vmatpush1.msra.mxu0 0.0
    %3257 = vmatprep.subr.mxu0 0.0
    %3258 = vmatpush1.msra.mxu0 0.0
    %3259 = vmatprep.subr.mxu0 0.0
    %3260 = vmatpush1.msra.mxu0 0.0
    %3261 = vmatprep.subr.mxu0 0.0
    %3262 = vmatpush1.msra.mxu0 0.0
    %3263 = vmatprep.subr.mxu0 0.0
    %3264 = vmatpush1.msra.mxu0 0.0
    %3265 = vmatprep.subr.mxu0 0.0
    %3266 = vmatpush1.msra.mxu0 0.0
    %3267 = vmatprep.subr.mxu0 0.0
    %3268 = vmatpush1.msra.mxu0 0.0
    %3269 = vmatprep.subr.mxu0 0.0
    %3270 = vmatpush1.msra.mxu0 0.0
    %3271 = vmatprep.subr.mxu0 0.0
    %3272 = vmatpush1.msra.mxu0 0.0
    %3273 = vmatprep.subr.mxu0 0.0
    %3274 = vmatpush1.msra.mxu0 0.0
    %3275 = vmatprep.subr.mxu0 0.0
    %3276 = vmatpush1.msra.mxu0 0.0
    %3277 = vmatprep.subr.mxu0 0.0
    %3278 = vmatpush1.msra.mxu0 0.0
    %3279 = vmatprep.subr.mxu0 0.0
    %3280 = vmatpush1.msra.mxu0 0.0
    %3281 = vmatprep.subr.mxu0 0.0
    %3282 = vmatpush1.msra.mxu0 0.0
    %3283 = vmatprep.subr.mxu0 0.0
    %3284 = vmatpush1.msra.mxu0 0.0
    %3285 = vmatprep.mubr.f32.mxu0 0.0
    %3286 = vmatmul.mubr.f32.gmra.mrb[0].mxu0 %v3216
    %v3287 = vpop.f32.mrb[0].mxu0
    %v3288 = vadd.f32 %v3214, %v3287
    %v3289 = vpop.f32.mrb[0].mxu0
    %3290 = vmatprep.mubr.f32.mxu0 0.0
    %3291 = vmatmul.mubr.f32.gmra.mrb[0].mxu0 %v3219
    %v3292 = vpop.f32.mrb[0].mxu0
    %v3293 = vadd.f32 %v3214, %v3292
    %v3294 = vpop.f32.mrb[0].mxu0
    %3295 = vdwg.mxu0
    %vm3296 = vcmask 31744
    %v3297 = vsel %vm3296, %v3288, -inf
    %3298 = vmax.xlane.f32.xlu0 %v3297
    %v3299 = vpop.xlane.xlu0 %3298
    %v3300 = vsel %vm3296, %v3293, -inf
    %3301 = vmax.xlane.f32.xlu0 %v3300
    %v3302 = vpop.xlane.xlu0 %3301
    %v3303 = vsub.f32 %v3288, %v3299
    %v3304 = vsub.f32 %v3293, %v3302
    %v3305 = vmul.f32 %v3303, 1.442695
    %v3306 = vpow.pop %v3305
    %v3307 = vmul.f32 %v3304, 1.442695
    %v3308 = vpow.pop %v3307
    %v3309 = vsel %vm3296, %v3306, 0.0
    %3310 = vadd.xlane.f32.xlu0 %v3309
    %v3311 = vpop.xlane.xlu0 %3310
    %v3312 = vsel %vm3296, %v3308, 0.0
    %3313 = vadd.xlane.f32.xlu0 %v3312
    %v3314 = vpop.xlane.xlu0 %3313
    %v3315 = vlog2.pop %v3311
    %v3316 = vmul.f32 %v3315, 0.6931472
    %v3317 = vlog2.pop %v3314
    %v3318 = vmul.f32 %v3317, 0.6931472
    %v3319 = vadd.f32 %v3299, %v3316
    %v3320 = vadd.f32 %v3302, %v3318
    %v3321 = vsub.f32 %v3288, %v3319
    %v3322 = vsub.f32 %v3293, %v3320
    %v3323 = vld [vmem:[%s9] sm:$0xff]
    %v3324 = vld [vmem:[%s9 + $0x8] sm:$0xff]
    %v3325 = vld [vmem:[%s10] sm:$0xff]
    %v3326 = vld [vmem:[%s10 + $0x8] sm:$0xff]
    %v3327 = vlaneseq
    %v3328 = vand.u32 %v3327, 127
    %3329 = vset.pattern.permute.xlu0 0
    %3330 = vperm.xlu0 %3329, %v3325
    %v3331 = vpop.permute.xlu0 %3330
    %3332 = vset.pattern.permute.xlu0 0
    %3333 = vperm.xlu0 %3332, %v3326
    %v3334 = vpop.permute.xlu0 %3333
    %vm3335 = vcmp.eq.s32.totalorder %v3331, %v3328
    %vm3336 = vcmp.eq.s32.totalorder %v3334, %v3328
    %v3337 = vsel %vm3335, 1, 0
    %v3338 = vsel %vm3336, 1, 0
    %v3339 = vcvt.s32.f32 %v3337
    %v3340 = vcvt.s32.f32 %v3338
    %v3341 = vlaneseq
    %v3342 = vshrl.u32 %v3341, 7
    %v3343 = vsub.s32 1, %v3342
    %v3344 = vrot.slane %v3201, %v3343
    %v3345 = vadd.f32 %v3344, %v3321
    %v3346 = vmul.f32 %v3339, %v3345
    %vm3347 = vcmask 25600
    %v3348 = vsel %vm3347, %v3346, 0.0
    %3349 = vadd.xlane.f32.xlu0 %v3348
    %v3350 = vpop.xlane.xlu0 %3349
    %vm3351 = vcmask 1041408
    %v3352 = vsel %vm3351, %v3350, 0.0
    %v3353 = vrot.slane %v3352, 4
    %v3354 = vadd.f32 %v3352, %v3353
    %v3355 = vrot.slane %v3354, 2
    %v3356 = vadd.f32 %v3354, %v3355
    %v3357 = vrot.slane %v3356, 1
    %v3358 = vadd.f32 %v3356, %v3357
    %v3359 = vmul.f32 %v3339, %v3321
    %v3360 = vmul.f32 %v3340, %v3322
    %vm3361 = vcmask 31746
    %v3362 = vsel %vm3361, %v3359, 0.0
    %3363 = vadd.xlane.f32.xlu0 %v3362
    %v3364 = vpop.xlane.xlu0 %3363
    %v3365 = vsel %vm3296, %v3360, 0.0
    %3366 = vadd.xlane.f32.xlu0 %v3365
    %v3367 = vpop.xlane.xlu0 %3366
    %v3368 = vlaneseq
    %v3369 = vshrl.u32 %v3368, 7
    %v3370 = vsub.s32 3, %v3369
    %v3371 = vrot.slane %v3201, %v3370
    %v3372 = vmul.f32 %v3339, %v3371
    %v3373 = vmul.f32 %v3340, %v3371
    %v3374 = vsel %vm3361, %v3372, 0.0
    %3375 = vadd.xlane.f32.xlu0 %v3374
    %v3376 = vpop.xlane.xlu0 %3375
    %v3377 = vsel %vm3296, %v3373, 0.0
    %3378 = vadd.xlane.f32.xlu0 %v3377
    %v3379 = vpop.xlane.xlu0 %3378
    %vm3382 = vcmask 1045504
    %v3383 = vrot.slane %v3376, 2
    %v3384 = vrot.slane %v3379, 2
    %v3385 = vsel %vm3382, %v3383, %v3384
    %v3388 = vmul.f32 %v3339, %v3385
    %v3389 = vmul.f32 %v3340, %v3384
    %v3390 = vadd.f32 %v3388, 0.0
    %v3391 = vadd.f32 %v3389, 0.0
    %v3392 = vlaneseq
    %v3393 = vshrl.u32 %v3392, 7
    %v3394 = vsub.s32 4, %v3393
    %v3395 = vrot.slane %v3201, %v3394
    %v3396 = vmul.f32 %v3339, %v3395
    %v3397 = vmul.f32 %v3340, %v3395
    %v3398 = vsel %vm3361, %v3396, 0.0
    %3399 = vadd.xlane.f32.xlu0 %v3398
    %v3400 = vpop.xlane.xlu0 %3399
    %v3401 = vsel %vm3296, %v3397, 0.0
    %3402 = vadd.xlane.f32.xlu0 %v3401
    %v3403 = vpop.xlane.xlu0 %3402
    %v3406 = vrot.slane %v3400, 2
    %v3407 = vrot.slane %v3403, 2
    %v3408 = vsel %vm3382, %v3406, %v3407
    %v3411 = vmul.f32 %v3339, %v3408
    %v3412 = vmul.f32 %v3340, %v3407
    %3415 = vrot.lane.b32.xlu0 %v3411, 127
    %v3416 = vpop.permute.xlu0 %3415
    %3417 = vrot.lane.b32.xlu0 %v3412, 127
    %v3418 = vpop.permute.xlu0 %3417
    %v3421 = vadd.f32 %v3390, %v3416
    %v3422 = vadd.f32 %v3391, %v3418
    %v3423 = vlaneseq
    %v3424 = vshrl.u32 %v3423, 7
    %v3425 = vsub.s32 5, %v3424
    %v3426 = vrot.slane %v3201, %v3425
    %v3427 = vmul.f32 %v3339, %v3426
    %v3428 = vmul.f32 %v3340, %v3426
    %v3429 = vsel %vm3361, %v3427, 0.0
    %3430 = vadd.xlane.f32.xlu0 %v3429
    %v3431 = vpop.xlane.xlu0 %3430
    %v3432 = vsel %vm3296, %v3428, 0.0
    %3433 = vadd.xlane.f32.xlu0 %v3432
    %v3434 = vpop.xlane.xlu0 %3433
    %v3437 = vrot.slane %v3431, 2
    %v3438 = vrot.slane %v3434, 2
    %v3439 = vsel %vm3382, %v3437, %v3438
    %v3442 = vmul.f32 %v3339, %v3439
    %v3443 = vmul.f32 %v3340, %v3438
    %3446 = vrot.lane.b32.xlu0 %v3442, 126
    %v3447 = vpop.permute.xlu0 %3446
    %3448 = vrot.lane.b32.xlu0 %v3443, 126
    %v3449 = vpop.permute.xlu0 %3448
    %v3452 = vadd.f32 %v3421, %v3447
    %v3453 = vadd.f32 %v3422, %v3449
    %v3454 = vlaneseq
    %v3455 = vshrl.u32 %v3454, 7
    %v3456 = vsub.s32 6, %v3455
    %v3457 = vrot.slane %v3201, %v3456
    %v3458 = vmul.f32 %v3339, %v3457
    %v3459 = vmul.f32 %v3340, %v3457
    %v3460 = vsel %vm3361, %v3458, 0.0
    %3461 = vadd.xlane.f32.xlu0 %v3460
    %v3462 = vpop.xlane.xlu0 %3461
    %v3463 = vsel %vm3296, %v3459, 0.0
    %3464 = vadd.xlane.f32.xlu0 %v3463
    %v3465 = vpop.xlane.xlu0 %3464
    %v3468 = vrot.slane %v3462, 2
    %v3469 = vrot.slane %v3465, 2
    %v3470 = vsel %vm3382, %v3468, %v3469
    %v3473 = vmul.f32 %v3339, %v3470
    %v3474 = vmul.f32 %v3340, %v3469
    %3477 = vrot.lane.b32.xlu0 %v3473, 125
    %v3478 = vpop.permute.xlu0 %3477
    %3479 = vrot.lane.b32.xlu0 %v3474, 125
    %v3480 = vpop.permute.xlu0 %3479
    %v3483 = vadd.f32 %v3452, %v3478
    %v3484 = vadd.f32 %v3453, %v3480
    %v3487 = vrot.slane %v3483, 6
    %v3488 = vrot.slane %v3484, 6
    %v3489 = vsel %vm3351, %v3487, %v3488
    %v3492 = vadd.f32 %v3364, %v3487
    %v3493 = vadd.f32 %v3367, %v3489
    %v3494 = vmul.f32 %v3323, %v3492
    %v3495 = vmul.f32 %v3324, %v3493
    %v3498 = vrot.slane %v3494, 2
    %v3499 = vrot.slane %v3495, 2
    %v3500 = vsel %vm3382, %v3498, %v3499
    %vm3503 = vcmask 7168
    %v3504 = vsel %vm3503, %v3500, 0.0
    %vm3505 = vcmask 5120
    %v3506 = vsel %vm3505, %v3499, 0.0
    %v3507 = vadd.f32 %v3504, %v3506
    %v3508 = vrot.slane %v3507, 4
    %v3509 = vadd.f32 %v3507, %v3508
    %v3510 = vrot.slane %v3509, 2
    %v3511 = vadd.f32 %v3509, %v3510
    %v3512 = vrot.slane %v3511, 1
    %v3513 = vadd.f32 %v3511, %v3512
    %v3514 = vlaneseq
    %v3515 = vshrl.u32 %v3514, 7
    %v3516 = vsub.s32 2, %v3515
    %v3517 = vrot.slane %v3201, %v3516
    %v3518 = vmul.f32 %v3339, %v3517
    %v3519 = vmul.f32 %v3340, %v3517
    %v3520 = vsel %vm3296, %v3518, 0.0
    %3521 = vadd.xlane.f32.xlu0 %v3520
    %v3522 = vpop.xlane.xlu0 %3521
    %v3523 = vsel %vm3296, %v3519, 0.0
    %3524 = vadd.xlane.f32.xlu0 %v3523
    %v3525 = vpop.xlane.xlu0 %3524
    %v3528 = vrot.slane %v3323, 2
    %v3529 = vrot.slane %v3324, 2
    %v3530 = vsel %vm3382, %v3528, %v3529
    %v3533 = vsub.f32 %v3323, %v3530
    %v3534 = vsub.f32 %v3324, %v3529
    %v3535 = vmul.f32 %v3533, %v3522
    %v3536 = vmul.f32 %v3534, %v3525
    %v3537 = vsel %vm3503, %v3535, 0.0
    %v3538 = vsel %vm3505, %v3536, 0.0
    %v3539 = vadd.f32 %v3537, %v3538
    %v3540 = vrot.slane %v3539, 4
    %v3541 = vadd.f32 %v3539, %v3540
    %v3542 = vrot.slane %v3541, 2
    %v3543 = vadd.f32 %v3541, %v3542
    %v3544 = vrot.slane %v3543, 1
    %v3545 = vadd.f32 %v3543, %v3544
    %v3546 = vmul.f32 %v3324, %v3525
    %v3548 = vrot.slane %v3546, 6
    %vm3550 = vcmask 1024
    %v3551 = vsel %vm3550, %v3548, 0.0
    %v3552 = vrot.slane %v3551, 4
    %v3553 = vadd.f32 %v3551, %v3552
    %v3554 = vrot.slane %v3553, 2
    %v3555 = vadd.f32 %v3553, %v3554
    %v3556 = vrot.slane %v3555, 1
    %v3557 = vadd.f32 %v3555, %v3556
    %v3558 = vadd.f32 %v3545, %v3557
    %v3559 = vadd.f32 %v3358, %v3513
    %v3560 = vadd.f32 %v3559, %v3558
    %v3561 = vlaneseq
    %v3562 = vshrl.u32 %v3561, 7
    %v3563 = vsub.s32 7, %v3562
    %v3564 = vrot.slane %v3201, %v3563
    %v3565 = vadd.f32 %v3345, %v3564
    %v3566 = vsel %vm3347, %v3565, -inf
    %3567 = vmax.xlane.f32.xlu0 %v3566
    %v3568 = vpop.xlane.xlu0 %3567
    %v3569 = vsub.f32 %v3565, %v3568
    %v3570 = vmul.f32 %v3569, 1.442695
    %v3571 = vpow.pop %v3570
    %v3572 = vsel %vm3347, %v3571, 0.0
    %3573 = vadd.xlane.f32.xlu0 %v3572
    %v3574 = vpop.xlane.xlu0 %3573
    %v3575 = vlog2.pop %v3574
    %v3576 = vmul.f32 %v3575, 0.6931472
    %v3577 = vadd.f32 %v3568, %v3576
    %v3578 = vlaneseq
    %v3579 = vshrl.u32 %v3578, 7
    %v3580 = vsub.s32 0, %v3579
    %v3581 = vrot.slane %v3202, %v3580
    %v3582 = vadd.f32 %v3345, %v3581
    %v3583 = vsel %vm3347, %v3582, -inf
    %3584 = vmax.xlane.f32.xlu0 %v3583
    %v3585 = vpop.xlane.xlu0 %3584
    %v3586 = vsub.f32 %v3582, %v3585
    %v3587 = vmul.f32 %v3586, 1.442695
    %v3588 = vpow.pop %v3587
    %v3589 = vsel %vm3347, %v3588, 0.0
    %3590 = vadd.xlane.f32.xlu0 %v3589
    %v3591 = vpop.xlane.xlu0 %3590
    %v3592 = vlog2.pop %v3591
    %v3593 = vmul.f32 %v3592, 0.6931472
    %v3594 = vadd.f32 %v3585, %v3593
    %v3595 = vlaneseq
    %v3596 = vshrl.u32 %v3595, 7
    %v3597 = vsub.s32 1, %v3596
    %v3598 = vrot.slane %v3202, %v3597
    %v3599 = vadd.f32 %v3345, %v3598
    %v3600 = vsel %vm3347, %v3599, -inf
    %3601 = vmax.xlane.f32.xlu0 %v3600
    %v3602 = vpop.xlane.xlu0 %3601
    %v3603 = vsub.f32 %v3599, %v3602
    %v3604 = vmul.f32 %v3603, 1.442695
    %v3605 = vpow.pop %v3604
    %v3606 = vsel %vm3347, %v3605, 0.0
    %3607 = vadd.xlane.f32.xlu0 %v3606
    %v3608 = vpop.xlane.xlu0 %3607
    %v3609 = vlog2.pop %v3608
    %v3610 = vmul.f32 %v3609, 0.6931472
    %v3611 = vadd.f32 %v3602, %v3610
    %v3612 = vlaneseq
    %v3613 = vshrl.u32 %v3612, 7
    %v3614 = vsub.s32 2, %v3613
    %v3615 = vrot.slane %v3202, %v3614
    %v3616 = vadd.f32 %v3345, %v3615
    %v3617 = vsel %vm3347, %v3616, -inf
    %3618 = vmax.xlane.f32.xlu0 %v3617
    %v3619 = vpop.xlane.xlu0 %3618
    %v3620 = vsub.f32 %v3616, %v3619
    %v3621 = vmul.f32 %v3620, 1.442695
    %v3622 = vpow.pop %v3621
    %v3623 = vsel %vm3347, %v3622, 0.0
    %3624 = vadd.xlane.f32.xlu0 %v3623
    %v3625 = vpop.xlane.xlu0 %3624
    %v3626 = vlog2.pop %v3625
    %v3627 = vmul.f32 %v3626, 0.6931472
    %v3628 = vadd.f32 %v3619, %v3627
    %v3629 = vsel %vm3503, %v3577, %v3594
    %vm3630 = vcmask 15360
    %v3631 = vsel %vm3630, %v3629, %v3611
    %vm3632 = vcmask 23552
    %v3633 = vsel %vm3632, %v3631, %v3628
    %v3635 = vrot.slane %v3321, 2
    %v3637 = vadd.f32 %v3633, %v3635
    %3638 = vset.pattern.permute.xlu0 0
    %3639 = vperm.xlu0 %3638, %v3323
    %v3640 = vpop.permute.xlu0 %3639
    %v3643 = vrot.slane %v3637, 6
    %v3645 = vmul.f32 %v3640, %v3643
    %v3646 = vsub.f32 1.0, %v3323
    %3648 = vset.pattern.permute.xlu0 0
    %3649 = vperm.xlu0 %3648, %v3646
    %v3650 = vpop.permute.xlu0 %3649
    %v3653 = vrot.slane %v3345, 6
    %v3655 = vmul.f32 %v3650, %v3653
    %v3656 = vadd.f32 %v3645, %v3655
    %v3657 = vadd.f32 %v3656, %v3564
    %vm3658 = vcmask 27650
    %v3659 = vsel %vm3658, %v3657, -inf
    %3660 = vmax.xlane.f32.xlu0 %v3659
    %v3661 = vpop.xlane.xlu0 %3660
    %v3662 = vsub.f32 %v3657, %v3661
    %v3663 = vmul.f32 %v3662, 1.442695
    %v3664 = vpow.pop %v3663
    %v3665 = vsel %vm3658, %v3664, 0.0
    %3666 = vadd.xlane.f32.xlu0 %v3665
    %v3667 = vpop.xlane.xlu0 %3666
    %v3668 = vlog2.pop %v3667
    %v3669 = vmul.f32 %v3668, 0.6931472
    %v3670 = vadd.f32 %v3661, %v3669
    %v3671 = vadd.f32 %v3656, %v3581
    %v3672 = vsel %vm3658, %v3671, -inf
    %3673 = vmax.xlane.f32.xlu0 %v3672
    %v3674 = vpop.xlane.xlu0 %3673
    %v3675 = vsub.f32 %v3671, %v3674
    %v3676 = vmul.f32 %v3675, 1.442695
    %v3677 = vpow.pop %v3676
    %v3678 = vsel %vm3658, %v3677, 0.0
    %3679 = vadd.xlane.f32.xlu0 %v3678
    %v3680 = vpop.xlane.xlu0 %3679
    %v3681 = vlog2.pop %v3680
    %v3682 = vmul.f32 %v3681, 0.6931472
    %v3683 = vadd.f32 %v3674, %v3682
    %v3684 = vadd.f32 %v3656, %v3598
    %v3685 = vsel %vm3658, %v3684, -inf
    %3686 = vmax.xlane.f32.xlu0 %v3685
    %v3687 = vpop.xlane.xlu0 %3686
    %v3688 = vsub.f32 %v3684, %v3687
    %v3689 = vmul.f32 %v3688, 1.442695
    %v3690 = vpow.pop %v3689
    %v3691 = vsel %vm3658, %v3690, 0.0
    %3692 = vadd.xlane.f32.xlu0 %v3691
    %v3693 = vpop.xlane.xlu0 %3692
    %v3694 = vlog2.pop %v3693
    %v3695 = vmul.f32 %v3694, 0.6931472
    %v3696 = vadd.f32 %v3687, %v3695
    %v3697 = vadd.f32 %v3656, %v3615
    %v3698 = vsel %vm3658, %v3697, -inf
    %3699 = vmax.xlane.f32.xlu0 %v3698
    %v3700 = vpop.xlane.xlu0 %3699
    %v3701 = vsub.f32 %v3697, %v3700
    %v3702 = vmul.f32 %v3701, 1.442695
    %v3703 = vpow.pop %v3702
    %v3704 = vsel %vm3658, %v3703, 0.0
    %3705 = vadd.xlane.f32.xlu0 %v3704
    %v3706 = vpop.xlane.xlu0 %3705
    %v3707 = vlog2.pop %v3706
    %v3708 = vmul.f32 %v3707, 0.6931472
    %v3709 = vadd.f32 %v3700, %v3708
    %v3710 = vsel %vm3503, %v3670, %v3683
    %v3711 = vsel %vm3630, %v3710, %v3696
    %v3712 = vsel %vm3632, %v3711, %v3709
    %v3713 = vadd.f32 %v3712, %v3635
    %v3715 = vrot.slane %v3713, 6
    %v3717 = vmul.f32 %v3640, %v3715
    %v3719 = vrot.slane %v3656, 6
    %v3721 = vmul.f32 %v3650, %v3719
    %v3722 = vadd.f32 %v3717, %v3721
    %v3723 = vadd.f32 %v3722, %v3564
    %vm3724 = vcmask 29700
    %v3725 = vsel %vm3724, %v3723, -inf
    %3726 = vmax.xlane.f32.xlu0 %v3725
    %v3727 = vpop.xlane.xlu0 %3726
    %v3728 = vsub.f32 %v3723, %v3727
    %v3729 = vmul.f32 %v3728, 1.442695
    %v3730 = vpow.pop %v3729
    %v3731 = vsel %vm3724, %v3730, 0.0
    %3732 = vadd.xlane.f32.xlu0 %v3731
    %v3733 = vpop.xlane.xlu0 %3732
    %v3734 = vlog2.pop %v3733
    %v3735 = vmul.f32 %v3734, 0.6931472
    %v3736 = vadd.f32 %v3727, %v3735
    %v3737 = vadd.f32 %v3722, %v3581
    %v3738 = vsel %vm3724, %v3737, -inf
    %3739 = vmax.xlane.f32.xlu0 %v3738
    %v3740 = vpop.xlane.xlu0 %3739
    %v3741 = vsub.f32 %v3737, %v3740
    %v3742 = vmul.f32 %v3741, 1.442695
    %v3743 = vpow.pop %v3742
    %v3744 = vsel %vm3724, %v3743, 0.0
    %3745 = vadd.xlane.f32.xlu0 %v3744
    %v3746 = vpop.xlane.xlu0 %3745
    %v3747 = vlog2.pop %v3746
    %v3748 = vmul.f32 %v3747, 0.6931472
    %v3749 = vadd.f32 %v3740, %v3748
    %v3750 = vadd.f32 %v3722, %v3598
    %v3751 = vsel %vm3724, %v3750, -inf
    %3752 = vmax.xlane.f32.xlu0 %v3751
    %v3753 = vpop.xlane.xlu0 %3752
    %v3754 = vsub.f32 %v3750, %v3753
    %v3755 = vmul.f32 %v3754, 1.442695
    %v3756 = vpow.pop %v3755
    %v3757 = vsel %vm3724, %v3756, 0.0
    %3758 = vadd.xlane.f32.xlu0 %v3757
    %v3759 = vpop.xlane.xlu0 %3758
    %v3760 = vlog2.pop %v3759
    %v3761 = vmul.f32 %v3760, 0.6931472
    %v3762 = vadd.f32 %v3753, %v3761
    %v3763 = vadd.f32 %v3722, %v3615
    %v3764 = vsel %vm3724, %v3763, -inf
    %3765 = vmax.xlane.f32.xlu0 %v3764
    %v3766 = vpop.xlane.xlu0 %3765
    %v3767 = vsub.f32 %v3763, %v3766
    %v3768 = vmul.f32 %v3767, 1.442695
    %v3769 = vpow.pop %v3768
    %v3770 = vsel %vm3724, %v3769, 0.0
    %3771 = vadd.xlane.f32.xlu0 %v3770
    %v3772 = vpop.xlane.xlu0 %3771
    %v3773 = vlog2.pop %v3772
    %v3774 = vmul.f32 %v3773, 0.6931472
    %v3775 = vadd.f32 %v3766, %v3774
    %v3776 = vsel %vm3503, %v3736, %v3749
    %v3777 = vsel %vm3630, %v3776, %v3762
    %v3778 = vsel %vm3632, %v3777, %v3775
    %v3779 = vadd.f32 %v3778, %v3635
    %v3781 = vrot.slane %v3779, 6
    %v3783 = vmul.f32 %v3640, %v3781
    %v3785 = vrot.slane %v3722, 6
    %v3787 = vmul.f32 %v3650, %v3785
    %v3788 = vadd.f32 %v3783, %v3787
    %v3789 = vadd.f32 %v3788, %v3564
    %vm3790 = vcmask 31750
    %v3791 = vsel %vm3790, %v3789, -inf
    %3792 = vmax.xlane.f32.xlu0 %v3791
    %v3793 = vpop.xlane.xlu0 %3792
    %v3794 = vsub.f32 %v3789, %v3793
    %v3795 = vmul.f32 %v3794, 1.442695
    %v3796 = vpow.pop %v3795
    %v3797 = vsel %vm3790, %v3796, 0.0
    %3798 = vadd.xlane.f32.xlu0 %v3797
    %v3799 = vpop.xlane.xlu0 %3798
    %v3800 = vlog2.pop %v3799
    %v3801 = vmul.f32 %v3800, 0.6931472
    %v3802 = vadd.f32 %v3793, %v3801
    %v3803 = vadd.f32 %v3788, %v3581
    %v3804 = vsel %vm3790, %v3803, -inf
    %3805 = vmax.xlane.f32.xlu0 %v3804
    %v3806 = vpop.xlane.xlu0 %3805
    %v3807 = vsub.f32 %v3803, %v3806
    %v3808 = vmul.f32 %v3807, 1.442695
    %v3809 = vpow.pop %v3808
    %v3810 = vsel %vm3790, %v3809, 0.0
    %3811 = vadd.xlane.f32.xlu0 %v3810
    %v3812 = vpop.xlane.xlu0 %3811
    %v3813 = vlog2.pop %v3812
    %v3814 = vmul.f32 %v3813, 0.6931472
    %v3815 = vadd.f32 %v3806, %v3814
    %v3816 = vadd.f32 %v3788, %v3598
    %v3817 = vsel %vm3790, %v3816, -inf
    %3818 = vmax.xlane.f32.xlu0 %v3817
    %v3819 = vpop.xlane.xlu0 %3818
    %v3820 = vsub.f32 %v3816, %v3819
    %v3821 = vmul.f32 %v3820, 1.442695
    %v3822 = vpow.pop %v3821
    %v3823 = vsel %vm3790, %v3822, 0.0
    %3824 = vadd.xlane.f32.xlu0 %v3823
    %v3825 = vpop.xlane.xlu0 %3824
    %v3826 = vlog2.pop %v3825
    %v3827 = vmul.f32 %v3826, 0.6931472
    %v3828 = vadd.f32 %v3819, %v3827
    %v3829 = vadd.f32 %v3788, %v3615
    %v3830 = vsel %vm3790, %v3829, -inf
    %3831 = vmax.xlane.f32.xlu0 %v3830
    %v3832 = vpop.xlane.xlu0 %3831
    %v3833 = vsub.f32 %v3829, %v3832
    %v3834 = vmul.f32 %v3833, 1.442695
    %v3835 = vpow.pop %v3834
    %v3836 = vsel %vm3790, %v3835, 0.0
    %3837 = vadd.xlane.f32.xlu0 %v3836
    %v3838 = vpop.xlane.xlu0 %3837
    %v3839 = vlog2.pop %v3838
    %v3840 = vmul.f32 %v3839, 0.6931472
    %v3841 = vadd.f32 %v3832, %v3840
    %v3842 = vsel %vm3503, %v3802, %v3815
    %v3843 = vsel %vm3630, %v3842, %v3828
    %v3844 = vsel %vm3632, %v3843, %v3841
    %v3846 = vrot.slane %v3322, 2
    %v3848 = vadd.f32 %v3844, %v3846
    %3849 = vset.pattern.permute.xlu0 0
    %3850 = vperm.xlu0 %3849, %v3324
    %v3851 = vpop.permute.xlu0 %3850
    %v3854 = vrot.slane %v3848, 6
    %v3856 = vmul.f32 %v3851, %v3854
    %v3857 = vsub.f32 1.0, %v3324
    %3859 = vset.pattern.permute.xlu0 0
    %3860 = vperm.xlu0 %3859, %v3857
    %v3861 = vpop.permute.xlu0 %3860
    %v3864 = vrot.slane %v3788, 6
    %v3866 = vmul.f32 %v3861, %v3864
    %v3867 = vadd.f32 %v3856, %v3866
    %v3868 = vadd.f32 %v3867, %v3564
    %v3869 = vsel %vm3347, %v3868, -inf
    %3870 = vmax.xlane.f32.xlu0 %v3869
    %v3871 = vpop.xlane.xlu0 %3870
    %v3872 = vsub.f32 %v3868, %v3871
    %v3873 = vmul.f32 %v3872, 1.442695
    %v3874 = vpow.pop %v3873
    %v3875 = vsel %vm3347, %v3874, 0.0
    %3876 = vadd.xlane.f32.xlu0 %v3875
    %v3877 = vpop.xlane.xlu0 %3876
    %v3878 = vlog2.pop %v3877
    %v3879 = vmul.f32 %v3878, 0.6931472
    %v3880 = vadd.f32 %v3871, %v3879
    %v3881 = vadd.f32 %v3867, %v3581
    %v3882 = vsel %vm3347, %v3881, -inf
    %3883 = vmax.xlane.f32.xlu0 %v3882
    %v3884 = vpop.xlane.xlu0 %3883
    %v3885 = vsub.f32 %v3881, %v3884
    %v3886 = vmul.f32 %v3885, 1.442695
    %v3887 = vpow.pop %v3886
    %v3888 = vsel %vm3347, %v3887, 0.0
    %3889 = vadd.xlane.f32.xlu0 %v3888
    %v3890 = vpop.xlane.xlu0 %3889
    %v3891 = vlog2.pop %v3890
    %v3892 = vmul.f32 %v3891, 0.6931472
    %v3893 = vadd.f32 %v3884, %v3892
    %v3894 = vadd.f32 %v3867, %v3598
    %v3895 = vsel %vm3347, %v3894, -inf
    %3896 = vmax.xlane.f32.xlu0 %v3895
    %v3897 = vpop.xlane.xlu0 %3896
    %v3898 = vsub.f32 %v3894, %v3897
    %v3899 = vmul.f32 %v3898, 1.442695
    %v3900 = vpow.pop %v3899
    %v3901 = vsel %vm3347, %v3900, 0.0
    %3902 = vadd.xlane.f32.xlu0 %v3901
    %v3903 = vpop.xlane.xlu0 %3902
    %v3904 = vlog2.pop %v3903
    %v3905 = vmul.f32 %v3904, 0.6931472
    %v3906 = vadd.f32 %v3897, %v3905
    %v3907 = vadd.f32 %v3867, %v3615
    %v3908 = vsel %vm3347, %v3907, -inf
    %3909 = vmax.xlane.f32.xlu0 %v3908
    %v3910 = vpop.xlane.xlu0 %3909
    %v3911 = vsub.f32 %v3907, %v3910
    %v3912 = vmul.f32 %v3911, 1.442695
    %v3913 = vpow.pop %v3912
    %v3914 = vsel %vm3347, %v3913, 0.0
    %3915 = vadd.xlane.f32.xlu0 %v3914
    %v3916 = vpop.xlane.xlu0 %3915
    %v3917 = vlog2.pop %v3916
    %v3918 = vmul.f32 %v3917, 0.6931472
    %v3919 = vadd.f32 %v3910, %v3918
    %v3920 = vsel %vm3503, %v3880, %v3893
    %v3921 = vsel %vm3630, %v3920, %v3906
    %v3922 = vsel %vm3632, %v3921, %v3919
    %v3923 = vadd.f32 %v3922, %v3846
    %v3925 = vrot.slane %v3923, 6
    %v3927 = vmul.f32 %v3851, %v3925
    %v3929 = vrot.slane %v3867, 6
    %v3931 = vmul.f32 %v3861, %v3929
    %v3932 = vadd.f32 %v3927, %v3931
    %v3933 = vadd.f32 %v3932, %v3564
    %v3934 = vsel %vm3658, %v3933, -inf
    %3935 = vmax.xlane.f32.xlu0 %v3934
    %v3936 = vpop.xlane.xlu0 %3935
    %v3937 = vsub.f32 %v3933, %v3936
    %v3938 = vmul.f32 %v3937, 1.442695
    %v3939 = vpow.pop %v3938
    %v3940 = vsel %vm3658, %v3939, 0.0
    %3941 = vadd.xlane.f32.xlu0 %v3940
    %v3942 = vpop.xlane.xlu0 %3941
    %v3943 = vlog2.pop %v3942
    %v3944 = vmul.f32 %v3943, 0.6931472
    %v3945 = vadd.f32 %v3936, %v3944
    %v3946 = vadd.f32 %v3932, %v3581
    %v3947 = vsel %vm3658, %v3946, -inf
    %3948 = vmax.xlane.f32.xlu0 %v3947
    %v3949 = vpop.xlane.xlu0 %3948
    %v3950 = vsub.f32 %v3946, %v3949
    %v3951 = vmul.f32 %v3950, 1.442695
    %v3952 = vpow.pop %v3951
    %v3953 = vsel %vm3658, %v3952, 0.0
    %3954 = vadd.xlane.f32.xlu0 %v3953
    %v3955 = vpop.xlane.xlu0 %3954
    %v3956 = vlog2.pop %v3955
    %v3957 = vmul.f32 %v3956, 0.6931472
    %v3958 = vadd.f32 %v3949, %v3957
    %v3959 = vadd.f32 %v3932, %v3598
    %v3960 = vsel %vm3658, %v3959, -inf
    %3961 = vmax.xlane.f32.xlu0 %v3960
    %v3962 = vpop.xlane.xlu0 %3961
    %v3963 = vsub.f32 %v3959, %v3962
    %v3964 = vmul.f32 %v3963, 1.442695
    %v3965 = vpow.pop %v3964
    %v3966 = vsel %vm3658, %v3965, 0.0
    %3967 = vadd.xlane.f32.xlu0 %v3966
    %v3968 = vpop.xlane.xlu0 %3967
    %v3969 = vlog2.pop %v3968
    %v3970 = vmul.f32 %v3969, 0.6931472
    %v3971 = vadd.f32 %v3962, %v3970
    %v3972 = vadd.f32 %v3932, %v3615
    %v3973 = vsel %vm3658, %v3972, -inf
    %3974 = vmax.xlane.f32.xlu0 %v3973
    %v3975 = vpop.xlane.xlu0 %3974
    %v3976 = vsub.f32 %v3972, %v3975
    %v3977 = vmul.f32 %v3976, 1.442695
    %v3978 = vpow.pop %v3977
    %v3979 = vsel %vm3658, %v3978, 0.0
    %3980 = vadd.xlane.f32.xlu0 %v3979
    %v3981 = vpop.xlane.xlu0 %3980
    %v3982 = vlog2.pop %v3981
    %v3983 = vmul.f32 %v3982, 0.6931472
    %v3984 = vadd.f32 %v3975, %v3983
    %v3985 = vsel %vm3503, %v3945, %v3958
    %v3986 = vsel %vm3630, %v3985, %v3971
    %v3987 = vsel %vm3632, %v3986, %v3984
    %v3988 = vadd.f32 %v3987, %v3846
    %v3990 = vrot.slane %v3988, 6
    %v3992 = vmul.f32 %v3851, %v3990
    %v3994 = vrot.slane %v3932, 6
    %v3996 = vmul.f32 %v3861, %v3994
    %v3997 = vadd.f32 %v3992, %v3996
    %v3998 = vadd.f32 %v3997, %v3564
    %v3999 = vsel %vm3724, %v3998, -inf
    %4000 = vmax.xlane.f32.xlu0 %v3999
    %v4001 = vpop.xlane.xlu0 %4000
    %v4002 = vsub.f32 %v3998, %v4001
    %v4003 = vmul.f32 %v4002, 1.442695
    %v4004 = vpow.pop %v4003
    %v4005 = vsel %vm3724, %v4004, 0.0
    %4006 = vadd.xlane.f32.xlu0 %v4005
    %v4007 = vpop.xlane.xlu0 %4006
    %v4008 = vlog2.pop %v4007
    %v4009 = vmul.f32 %v4008, 0.6931472
    %v4010 = vadd.f32 %v4001, %v4009
    %v4011 = vadd.f32 %v3997, %v3581
    %v4012 = vsel %vm3724, %v4011, -inf
    %4013 = vmax.xlane.f32.xlu0 %v4012
    %v4014 = vpop.xlane.xlu0 %4013
    %v4015 = vsub.f32 %v4011, %v4014
    %v4016 = vmul.f32 %v4015, 1.442695
    %v4017 = vpow.pop %v4016
    %v4018 = vsel %vm3724, %v4017, 0.0
    %4019 = vadd.xlane.f32.xlu0 %v4018
    %v4020 = vpop.xlane.xlu0 %4019
    %v4021 = vlog2.pop %v4020
    %v4022 = vmul.f32 %v4021, 0.6931472
    %v4023 = vadd.f32 %v4014, %v4022
    %v4024 = vadd.f32 %v3997, %v3598
    %v4025 = vsel %vm3724, %v4024, -inf
    %4026 = vmax.xlane.f32.xlu0 %v4025
    %v4027 = vpop.xlane.xlu0 %4026
    %v4028 = vsub.f32 %v4024, %v4027
    %v4029 = vmul.f32 %v4028, 1.442695
    %v4030 = vpow.pop %v4029
    %v4031 = vsel %vm3724, %v4030, 0.0
    %4032 = vadd.xlane.f32.xlu0 %v4031
    %v4033 = vpop.xlane.xlu0 %4032
    %v4034 = vlog2.pop %v4033
    %v4035 = vmul.f32 %v4034, 0.6931472
    %v4036 = vadd.f32 %v4027, %v4035
    %v4037 = vadd.f32 %v3997, %v3615
    %v4038 = vsel %vm3724, %v4037, -inf
    %4039 = vmax.xlane.f32.xlu0 %v4038
    %v4040 = vpop.xlane.xlu0 %4039
    %v4041 = vsub.f32 %v4037, %v4040
    %v4042 = vmul.f32 %v4041, 1.442695
    %v4043 = vpow.pop %v4042
    %v4044 = vsel %vm3724, %v4043, 0.0
    %4045 = vadd.xlane.f32.xlu0 %v4044
    %v4046 = vpop.xlane.xlu0 %4045
    %v4047 = vlog2.pop %v4046
    %v4048 = vmul.f32 %v4047, 0.6931472
    %v4049 = vadd.f32 %v4040, %v4048
    %v4050 = vsel %vm3503, %v4010, %v4023
    %v4051 = vsel %vm3630, %v4050, %v4036
    %v4052 = vsel %vm3632, %v4051, %v4049
    %v4053 = vadd.f32 %v4052, %v3846
    %v4055 = vrot.slane %v4053, 6
    %v4057 = vmul.f32 %v3851, %v4055
    %v4059 = vrot.slane %v3997, 6
    %v4061 = vmul.f32 %v3861, %v4059
    %v4062 = vadd.f32 %v4057, %v4061
    %v4063 = vadd.f32 %v4062, %v3517
    %v4064 = vsel %vm3790, %v4063, -inf
    %4065 = vmax.xlane.f32.xlu0 %v4064
    %v4066 = vpop.xlane.xlu0 %4065
    %v4067 = vsub.f32 %v4063, %v4066
    %v4068 = vmul.f32 %v4067, 1.442695
    %v4069 = vpow.pop %v4068
    %v4070 = vsel %vm3790, %v4069, 0.0
    %4071 = vadd.xlane.f32.xlu0 %v4070
    %v4072 = vpop.xlane.xlu0 %4071
    %v4073 = vlog2.pop %v4072
    %v4074 = vmul.f32 %v4073, 0.6931472
    %v4075 = vadd.f32 %v4066, %v4074
    %v4077 = vrot.slane %v4075, 6
    %v4079 = vsel %vm3351, %v4077, 0.0
    %v4080 = vrot.slane %v4079, 4
    %v4081 = vadd.f32 %v4079, %v4080
    %v4082 = vrot.slane %v4081, 2
    %v4083 = vadd.f32 %v4081, %v4082
    %v4084 = vrot.slane %v4083, 1
    %v4085 = vadd.f32 %v4083, %v4084
    %v4086 = vsub.f32 %v3560, %v4085
    %v4087 = vsub.f32 0.0, %v4086
    %v4088 = vrcp.pop 2.0
    %v4089 = vmul.f32 %v4087, %v4088
    %vm4090 = vcmask 0
    %4091 = vst.msk [vmem:[#allocation4] sm:$0x1] %vm4090, %v4089
    // Predicated region
    $region46: #{nercrf_loss.1} parent=1 // pred_check
      _
    $region47: #{nercrf_loss.1} parent=1 // pred_check_branch
      %4093 = sbr.rel (0) target = $region49
    $region48: #{nercrf_loss.1} parent=1 // pred_region
      %s4095 = ssub.s32 16, 16
      %4096 = vsyncadd [#allocation5], %s4095
      %s4098 = sshll.u32 [#allocation4], 4
      %s4099 = int_to_ptr.vmem [resolvable:$true] %s4098
      %4101 = dma.vmem_to_hbm [thread:$0]  %s4099, 16, %s11, [#allocation5]
    $region49: #{nercrf_loss.1} parent=1 // pred_fallthru
      _
    // Predicated region
    $region50: #{nercrf_loss.1} parent=1 // pred_check
      _
    $region51: #{nercrf_loss.1} parent=1 // pred_check_branch
      %4103 = sbr.rel (0) target = $region53
    $region52: #{nercrf_loss.1} parent=1 // pred_region
      %4104 = dma.done [#allocation5], 16
    $region53: #{nercrf_loss.1} parent=1 // pred_fallthru
      _
    %4105 = vsyncpa [#allocation5], 1

</llo_original>
